<compile_context>
chip_gen: v5e
topology: v5e:2x2
jax: 0.10.0
libtpu: 0.0.40
codegen_flags: <defaults>
</compile_context>

<pallas_src>
import functools
import math

import jax
import jax.numpy as jnp
from jax.experimental import pallas as pl
from jax.experimental.pallas import tpu as pltpu


def _round_up(x, m):
    return ((x + m - 1) // m) * m


# ---------------------------------------------------------------------------
# Kernel 1: time-parallel input projection   xWb = x @ W + b   (f32 output)
# ---------------------------------------------------------------------------
def _input_proj_kernel(x_ref, w_ref, b_ref, y_ref):
    y_ref[...] = (
        jnp.dot(x_ref[...], w_ref[...], preferred_element_type=jnp.float32)
        + b_ref[...].astype(jnp.float32))


# ---------------------------------------------------------------------------
# Kernel 2: sequential recurrence over a blocked time axis
# ---------------------------------------------------------------------------
def _lstm_recurrent_kernel(xwb_ref, h0_ref, c0_ref, u_ref,
                           h_out_ref, c_out_ref,
                           h_carry, c_carry, *, t_blk):
    blk = pl.program_id(0)

    @pl.when(blk == 0)
    def _():
        h_carry[...] = h0_ref[...]                       # bf16 carry
        c_carry[...] = c0_ref[...].astype(jnp.float32)   # f32 carry

    hdim = h_carry.shape[1]
    # Static unroll over the time block (T_BLK is small); every per-step
    # matmul operand / output index is a compile-time constant.
    for t in range(t_blk):
        gates = xwb_ref[t] + jnp.dot(h_carry[...], u_ref[...],
                                     preferred_element_type=jnp.float32)
        ifo = jax.nn.sigmoid(gates[:, :3 * hdim])        # one fused EUP slab
        gg = jnp.tanh(gates[:, 3 * hdim:])
        gi = ifo[:, :hdim]
        gf = ifo[:, hdim:2 * hdim]
        go = ifo[:, 2 * hdim:]

        c_new = gf * c_carry[...] + gi * gg
        h_new = go * jnp.tanh(c_new)

        c_carry[...] = c_new
        h_bf = h_new.astype(h_carry.dtype)
        h_carry[...] = h_bf
        h_out_ref[t] = h_bf
        c_out_ref[t] = c_new.astype(c_out_ref.dtype)


# ---------------------------------------------------------------------------
# Wrappers
# ---------------------------------------------------------------------------
def lstm_sequence_forward(x_seq, h0, c0, params, *, t_blk=8):
    """Run T LSTM-cell steps.

    x_seq:  [T, B, input_size]
    h0, c0: [B, hidden]
    params: (W, U, b) with W [in_pad, 4H] (zero-padded extra rows), U [H, 4H],
            b [1, 4H]; gate order along the 4H axis is (i, f, o, g).
    Returns (h_seq, c_seq), each [T, B, hidden], in the weight dtype.
    """
    W, U, b = params
    T, B, in_size = x_seq.shape
    H = h0.shape[1]
    in_pad = W.shape[0]
    assert H % 128 == 0, "hidden_size must be a multiple of 128"
    assert in_pad >= in_size and U.shape == (H, 4 * H)

    compute_dtype = U.dtype
    t_blk = max(1, min(t_blk, T))
    T_pad = _round_up(T, t_blk)
    B_pad = _round_up(max(B, 16), 16)      # bf16 sublane packing

    x = x_seq.astype(compute_dtype)
    x = jnp.pad(x, ((0, T_pad - T), (0, B_pad - B), (0, in_pad - in_size)))
    h0p = jnp.pad(h0.astype(compute_dtype), ((0, B_pad - B), (0, 0)))
    c0p = jnp.pad(c0.astype(compute_dtype), ((0, B_pad - B), (0, 0)))

    # ---- Stage 1: time-parallel input projection --------------------------
    M = T_pad * B_pad
    row_blk = t_blk * B_pad
    x_flat = x.reshape(M, in_pad)
    xwb_flat = pl.pallas_call(
        _input_proj_kernel,
        out_shape=jax.ShapeDtypeStruct((M, 4 * H), jnp.float32),
        grid_spec=pltpu.PrefetchScalarGridSpec(
            num_scalar_prefetch=0,
            grid=(M // row_blk,),
            in_specs=[
                pl.BlockSpec((row_blk, in_pad), lambda i: (i, 0)),
                pl.BlockSpec((in_pad, 4 * H), lambda i: (0, 0)),   # W resident
                pl.BlockSpec((1, 4 * H), lambda i: (0, 0)),        # b resident
            ],
            out_specs=pl.BlockSpec((row_blk, 4 * H), lambda i: (i, 0)),
        ),
        compiler_params=pltpu.CompilerParams(
            dimension_semantics=("parallel",)),
    )(x_flat, W, b)
    xwb = xwb_flat.reshape(T_pad, B_pad, 4 * H)

    # ---- Stage 2: sequential recurrence (blocked time) --------------------
    kernel = functools.partial(_lstm_recurrent_kernel, t_blk=t_blk)
    h_seq, c_seq = pl.pallas_call(
        kernel,
        out_shape=(jax.ShapeDtypeStruct((T_pad, B_pad, H), compute_dtype),
                   jax.ShapeDtypeStruct((T_pad, B_pad, H), compute_dtype)),
        grid_spec=pltpu.PrefetchScalarGridSpec(
            num_scalar_prefetch=0,
            grid=(T_pad // t_blk,),
            in_specs=[
                pl.BlockSpec((t_blk, B_pad, 4 * H), lambda i: (i, 0, 0)),  # xWb
                pl.BlockSpec((B_pad, H), lambda i: (0, 0)),        # h0 resident
                pl.BlockSpec((B_pad, H), lambda i: (0, 0)),        # c0 resident
                pl.BlockSpec((H, 4 * H), lambda i: (0, 0)),        # U  resident
            ],
            out_specs=(
                pl.BlockSpec((t_blk, B_pad, H), lambda i: (i, 0, 0)),  # h block
                pl.BlockSpec((t_blk, B_pad, H), lambda i: (i, 0, 0)),  # c block
            ),
            scratch_shapes=[
                pltpu.VMEM((B_pad, H), compute_dtype),   # h carry (bf16)
                pltpu.VMEM((B_pad, H), jnp.float32),     # c carry (f32)
            ],
        ),
        compiler_params=pltpu.CompilerParams(
            dimension_semantics=("arbitrary",)),   # time is sequential
    )(xwb, h0p, c0p, U)

    return h_seq[:T, :B], c_seq[:T, :B]


def lstm_cell_forward(x, state_prev, state_now, params):
    """Single-step forward, matching LSTMCell.forward's signature.

    `state_now` is kept only for API parity with the torch module (which
    writes into pre-allocated buffers); results are returned functionally.
    """
    del state_now
    h_prev, c_prev = state_prev
    h_seq, c_seq = lstm_sequence_forward(x[None], h_prev, c_prev, params,
                                         t_blk=1)
    return h_seq[0], c_seq[0]


# ---------------------------------------------------------------------------
# Parameter construction (mirrors the torch module's init)
# ---------------------------------------------------------------------------
def _xavier_normal(key, shape, dtype):
    fan_in, fan_out = shape
    std = math.sqrt(2.0 / (fan_in + fan_out))
    return (jax.random.normal(key, shape, jnp.float32) * std).astype(dtype)


def make_lstm_cell_params(key, input_size, hidden_size, dtype=jnp.bfloat16):
    """Pack gate matrices: W [in_pad, 4H] (rows >= input_size are zeros so the
    contraction dim is 128-aligned), U [H, 4H], b [1, 4H].  Gate order along
    4H is (i, f, o, g).  Biases init to ones (as in the torch module)."""
    keys = jax.random.split(key, 8)
    Wi, Wf, Wo, Wg = (_xavier_normal(keys[k], (input_size, hidden_size), dtype)
                      for k in range(4))
    Ui, Uf, Uo, Ug = (_xavier_normal(keys[4 + k], (hidden_size, hidden_size), dtype)
                      for k in range(4))
    bias = jnp.ones((4 * hidden_size,), dtype)[None]         # [1, 4H]
    W = jnp.concatenate([Wi, Wf, Wo, Wg], axis=1)            # [in, 4H]
    U = jnp.concatenate([Ui, Uf, Uo, Ug], axis=1)            # [H, 4H]
    in_pad = _round_up(input_size, 128)
    W = jnp.pad(W, ((0, in_pad - input_size), (0, 0)))        # [in_pad, 4H]
    return W, U, bias


# ---------------------------------------------------------------------------
# Pure-JAX reference (mirrors kernel numerics: f32 c carry, bf16 h operand)
# ---------------------------------------------------------------------------
def _reference_sequence(x_seq, h0, c0, params):
    W, U, b = params
    T, B, in_size = x_seq.shape
    H = h0.shape[1]
    Wf32 = W[:in_size].astype(jnp.float32)
    Uf32 = U.astype(jnp.float32)
    bias = b.astype(jnp.float32)
    h = h0.astype(jnp.float32)
    c = c0.astype(jnp.float32)
    hs, cs = [], []
    for t in range(T):
        xt = x_seq[t].astype(jnp.float32)
        hb = h.astype(U.dtype).astype(jnp.float32)   # h rounded to bf16 for matmul
        gates = xt @ Wf32 + hb @ Uf32 + bias
        gi = jax.nn.sigmoid(gates[:, 0 * H:1 * H])
        gf = jax.nn.sigmoid(gates[:, 1 * H:2 * H])
        go = jax.nn.sigmoid(gates[:, 2 * H:3 * H])
        gg = jnp.tanh(gates[:, 3 * H:4 * H])
        c = gf * c + gi * gg
        h = go * jnp.tanh(c)
        hs.append(h)
        cs.append(c)
    return jnp.stack(hs), jnp.stack(cs)


if __name__ == "__main__":
    key = jax.random.PRNGKey(0)
    batch_size = 8
    input_size = 32
    hidden_size = 128
    seq_len = 8
    dtype = jnp.bfloat16   # native MXU/VPU 16-bit format (torch used float16)

    k_x, k_h, k_c, k_p = jax.random.split(key, 4)
    x_seq = jax.random.normal(k_x, (seq_len, batch_size, input_size),
                              jnp.float32).astype(dtype)
    h0 = jax.random.normal(k_h, (batch_size, hidden_size), jnp.float32).astype(dtype)
    c0 = jax.random.normal(k_c, (batch_size, hidden_size), jnp.float32).astype(dtype)
    params = make_lstm_cell_params(k_p, input_size, hidden_size, dtype)

    # Full-sequence call: parallel x@W+b projection + one sequential pallas_call.
    seq_fn = jax.jit(functools.partial(lstm_sequence_forward, t_blk=8))
    h_seq, c_seq = seq_fn(x_seq, h0, c0, params)
    jax.block_until_ready((h_seq, c_seq))

    # Single-step call matching the torch module's forward signature.
    h_buf = jnp.zeros((batch_size, hidden_size), dtype)
    c_buf = jnp.zeros((batch_size, hidden_size), dtype)
    h1, c1 = jax.jit(lstm_cell_forward)(x_seq[0], (h0, c0), (h_buf, c_buf), params)
    jax.block_until_ready((h1, c1))

    # Correctness check against the pure-JAX reference.
    h_ref, c_ref = _reference_sequence(x_seq, h0, c0, params)

    assert h_seq.shape == (seq_len, batch_size, hidden_size) and h_seq.dtype == dtype
    assert c_seq.shape == (seq_len, batch_size, hidden_size) and c_seq.dtype == dtype
    assert h1.shape == (batch_size, hidden_size) and c1.shape == (batch_size, hidden_size)
    assert jnp.allclose(h_seq.astype(jnp.float32), h_ref, atol=3e-2, rtol=3e-2)
    assert jnp.allclose(c_seq.astype(jnp.float32), c_ref, atol=3e-2, rtol=3e-2)
    assert jnp.allclose(h1.astype(jnp.float32), h_ref[0], atol=3e-2, rtol=3e-2)
    assert jnp.allclose(c1.astype(jnp.float32), c_ref[0], atol=3e-2, rtol=3e-2)

    print("KERNEL_OK")
</pallas_src>

<mosaic_0001>
module attributes {stable_mosaic.version = 11 : i64} {
  func.func @_input_proj_kernel(%arg0: i32, %arg1: memref<128x128xbf16, #tpu.memory_space<vmem>>, %arg2: memref<128x512xbf16, #tpu.memory_space<vmem>>, %arg3: memref<1x512xbf16, #tpu.memory_space<vmem>>, %arg4: memref<128x512xf32, #tpu.memory_space<vmem>>) attributes {dimension_semantics = [#tpu.dimension_semantics<parallel>], iteration_bounds = array<i64: 1>, scalar_prefetch = 0 : i64, scratch_operands = 0 : i64, tpu.core_type = #tpu.core_type<tc>, window_params = [{transform_indices = @transform_0, window_bounds = array<i64: 128, 128>}, {pipeline_mode = #tpu.pipeline_mode<synchronous>, transform_indices = @transform_1, window_bounds = array<i64: 128, 512>}, {pipeline_mode = #tpu.pipeline_mode<synchronous>, transform_indices = @transform_2, window_bounds = array<i64: 1, 512>}, {transform_indices = @transform_3, window_bounds = array<i64: 128, 512>}]} {
    %c0 = arith.constant 0 : index
    %c0_0 = arith.constant 0 : index
    %0 = vector.load %arg1[%c0, %c0_0] : memref<128x128xbf16, #tpu.memory_space<vmem>>, vector<128x128xbf16>
    %c0_1 = arith.constant 0 : index
    %c0_2 = arith.constant 0 : index
    %1 = vector.load %arg2[%c0_1, %c0_2] : memref<128x512xbf16, #tpu.memory_space<vmem>>, vector<128x512xbf16>
    %cst = arith.constant dense<0.000000e+00> : vector<128x512xf32>
    %2 = tpu.matmul %0, %1, %cst {dimension_numbers = #tpu.dot_dimension_numbers<[1], [0], [0], [1], [0, 0, 1, 1], [], []>} : vector<128x128xbf16>, vector<128x512xbf16>, vector<128x512xf32> -> vector<128x512xf32>
    %c0_3 = arith.constant 0 : index
    %c0_4 = arith.constant 0 : index
    %3 = vector.load %arg3[%c0_3, %c0_4] : memref<1x512xbf16, #tpu.memory_space<vmem>>, vector<1x512xbf16>
    %4 = arith.extf %3 : vector<1x512xbf16> to vector<1x512xf32>
    %5 = vector.broadcast %4 : vector<1x512xf32> to vector<128x512xf32>
    %6 = arith.addf %2, %5 : vector<128x512xf32>
    %c0_5 = arith.constant 0 : index
    %c0_6 = arith.constant 0 : index
    %7 = vector.load %arg4[%c0_5, %c0_6] : memref<128x512xf32, #tpu.memory_space<vmem>>, vector<128x512xf32>
    tpu.vector_store %arg4[%c0_5, %c0_6], %6 {strides = array<i32>} : memref<128x512xf32, #tpu.memory_space<vmem>>, vector<128x512xf32>,
    return
  }
  func.func @transform_0(%arg0: i32) -> (i32, i32) {
    %c0_i32 = arith.constant 0 : i32
    %c0_i32_0 = arith.constant 0 : i32
    return %arg0, %c0_i32 : i32, i32
  }
  func.func @transform_1(%arg0: i32) -> (i32, i32) {
    %c0_i32 = arith.constant 0 : i32
    %c0_i32_0 = arith.constant 0 : i32
    %c0_i32_1 = arith.constant 0 : i32
    return %c0_i32, %c0_i32_0 : i32, i32
  }
  func.func @transform_2(%arg0: i32) -> (i32, i32) {
    %c0_i32 = arith.constant 0 : i32
    %c0_i32_0 = arith.constant 0 : i32
    %c0_i32_1 = arith.constant 0 : i32
    return %c0_i32, %c0_i32_0 : i32, i32
  }
  func.func @transform_3(%arg0: i32) -> (i32, i32) {
    %c0_i32 = arith.constant 0 : i32
    %c0_i32_0 = arith.constant 0 : i32
    return %arg0, %c0_i32 : i32, i32
  }
}

module attributes {stable_mosaic.version = 11 : i64} {
  func.func @_lstm_recurrent_kernel(%arg0: i32, %arg1: memref<8x16x512xf32, #tpu.memory_space<vmem>>, %arg2: memref<16x128xbf16, #tpu.memory_space<vmem>>, %arg3: memref<16x128xbf16, #tpu.memory_space<vmem>>, %arg4: memref<128x512xbf16, #tpu.memory_space<vmem>>, %arg5: memref<8x16x128xbf16, #tpu.memory_space<vmem>>, %arg6: memref<8x16x128xbf16, #tpu.memory_space<vmem>>, %arg7: memref<16x128xbf16, #tpu.memory_space<vmem>>, %arg8: memref<16x128xf32, #tpu.memory_space<vmem>>) attributes {dimension_semantics = [#tpu.dimension_semantics<arbitrary>], iteration_bounds = array<i64: 1>, scalar_prefetch = 0 : i64, scratch_operands = 2 : i64, tpu.core_type = #tpu.core_type<tc>, window_params = [{transform_indices = @transform_0, window_bounds = array<i64: 8, 16, 512>}, {pipeline_mode = #tpu.pipeline_mode<synchronous>, transform_indices = @transform_1, window_bounds = array<i64: 16, 128>}, {pipeline_mode = #tpu.pipeline_mode<synchronous>, transform_indices = @transform_2, window_bounds = array<i64: 16, 128>}, {pipeline_mode = #tpu.pipeline_mode<synchronous>, transform_indices = @transform_3, window_bounds = array<i64: 128, 512>}, {transform_indices = @transform_4, window_bounds = array<i64: 8, 16, 128>}, {transform_indices = @transform_5, window_bounds = array<i64: 8, 16, 128>}]} {
    %c0_i32 = arith.constant 0 : i32
    %0 = arith.cmpi eq, %arg0, %c0_i32 : i32
    %1 = arith.extui %0 : i1 to i32
    %c0_i32_0 = arith.constant 0 : i32
    %2 = arith.cmpi ne, %1, %c0_i32_0 : i32
    scf.if %2 {
      %c0_160 = arith.constant 0 : index
      %c0_161 = arith.constant 0 : index
      %267 = vector.load %arg2[%c0_160, %c0_161] : memref<16x128xbf16, #tpu.memory_space<vmem>>, vector<16x128xbf16>
      %c0_162 = arith.constant 0 : index
      %c0_163 = arith.constant 0 : index
      %268 = vector.load %arg7[%c0_162, %c0_163] : memref<16x128xbf16, #tpu.memory_space<vmem>>, vector<16x128xbf16>
      tpu.vector_store %arg7[%c0_162, %c0_163], %267 {strides = array<i32>} : memref<16x128xbf16, #tpu.memory_space<vmem>>, vector<16x128xbf16>,
      %c0_164 = arith.constant 0 : index
      %c0_165 = arith.constant 0 : index
      %269 = vector.load %arg3[%c0_164, %c0_165] : memref<16x128xbf16, #tpu.memory_space<vmem>>, vector<16x128xbf16>
      %270 = arith.extf %269 : vector<16x128xbf16> to vector<16x128xf32>
      %c0_166 = arith.constant 0 : index
      %c0_167 = arith.constant 0 : index
      %271 = vector.load %arg8[%c0_166, %c0_167] : memref<16x128xf32, #tpu.memory_space<vmem>>, vector<16x128xf32>
      tpu.vector_store %arg8[%c0_166, %c0_167], %270 {strides = array<i32>} : memref<16x128xf32, #tpu.memory_space<vmem>>, vector<16x128xf32>,
    } else {
    }
    %c0 = arith.constant 0 : index
    %c0_1 = arith.constant 0 : index
    %c0_2 = arith.constant 0 : index
    %3 = vector.load %arg1[%c0, %c0_1, %c0_2] : memref<8x16x512xf32, #tpu.memory_space<vmem>>, vector<1x16x512xf32>
    %4 = vector.shape_cast %3 : vector<1x16x512xf32> to vector<16x512xf32>
    %c0_3 = arith.constant 0 : index
    %c0_4 = arith.constant 0 : index
    %5 = vector.load %arg7[%c0_3, %c0_4] : memref<16x128xbf16, #tpu.memory_space<vmem>>, vector<16x128xbf16>
    %c0_5 = arith.constant 0 : index
    %c0_6 = arith.constant 0 : index
    %6 = vector.load %arg4[%c0_5, %c0_6] : memref<128x512xbf16, #tpu.memory_space<vmem>>, vector<128x512xbf16>
    %cst = arith.constant dense<0.000000e+00> : vector<16x512xf32>
    %7 = tpu.matmul %5, %6, %cst {dimension_numbers = #tpu.dot_dimension_numbers<[1], [0], [0], [1], [0, 0, 1, 1], [], []>} : vector<16x128xbf16>, vector<128x512xbf16>, vector<16x512xf32> -> vector<16x512xf32>
    %8 = arith.addf %4, %7 : vector<16x512xf32>
    %9 = vector.extract_strided_slice %8 {offsets = [0, 0], sizes = [16, 384], strides = [1, 1]} : vector<16x512xf32> to vector<16x384xf32>
    %10 = arith.negf %9 : vector<16x384xf32>
    %11 = math.exp %10 : vector<16x384xf32>
    %cst_7 = arith.constant 1.000000e+00 : f32
    %12 = vector.broadcast %cst_7 : f32 to vector<16x384xf32>
    %13 = arith.addf %12, %11 : vector<16x384xf32>
    %14 = arith.divf %12, %13 : vector<16x384xf32>
    %15 = vector.extract_strided_slice %8 {offsets = [0, 384], sizes = [16, 128], strides = [1, 1]} : vector<16x512xf32> to vector<16x128xf32>
    %16 = math.tanh %15 : vector<16x128xf32>
    %17 = vector.extract_strided_slice %14 {offsets = [0, 0], sizes = [16, 128], strides = [1, 1]} : vector<16x384xf32> to vector<16x128xf32>
    %18 = vector.extract_strided_slice %14 {offsets = [0, 128], sizes = [16, 128], strides = [1, 1]} : vector<16x384xf32> to vector<16x128xf32>
    %19 = vector.extract_strided_slice %14 {offsets = [0, 256], sizes = [16, 128], strides = [1, 1]} : vector<16x384xf32> to vector<16x128xf32>
    %c0_8 = arith.constant 0 : index
    %c0_9 = arith.constant 0 : index
    %20 = vector.load %arg8[%c0_8, %c0_9] : memref<16x128xf32, #tpu.memory_space<vmem>>, vector<16x128xf32>
    %21 = arith.mulf %18, %20 : vector<16x128xf32>
    %22 = arith.mulf %17, %16 : vector<16x128xf32>
    %23 = arith.addf %21, %22 : vector<16x128xf32>
    %24 = math.tanh %23 : vector<16x128xf32>
    %25 = arith.mulf %19, %24 : vector<16x128xf32>
    %c0_10 = arith.constant 0 : index
    %c0_11 = arith.constant 0 : index
    %26 = vector.load %arg8[%c0_10, %c0_11] : memref<16x128xf32, #tpu.memory_space<vmem>>, vector<16x128xf32>
    tpu.vector_store %arg8[%c0_10, %c0_11], %23 {strides = array<i32>} : memref<16x128xf32, #tpu.memory_space<vmem>>, vector<16x128xf32>,
    %27 = arith.truncf %25 : vector<16x128xf32> to vector<16x128xbf16>
    %c0_12 = arith.constant 0 : index
    %c0_13 = arith.constant 0 : index
    %28 = vector.load %arg7[%c0_12, %c0_13] : memref<16x128xbf16, #tpu.memory_space<vmem>>, vector<16x128xbf16>
    tpu.vector_store %arg7[%c0_12, %c0_13], %27 {strides = array<i32>} : memref<16x128xbf16, #tpu.memory_space<vmem>>, vector<16x128xbf16>,
    %c0_14 = arith.constant 0 : index
    %c0_15 = arith.constant 0 : index
    %c0_16 = arith.constant 0 : index
    %29 = vector.load %arg5[%c0_14, %c0_15, %c0_16] : memref<8x16x128xbf16, #tpu.memory_space<vmem>>, vector<1x16x128xbf16>
    %30 = vector.shape_cast %29 : vector<1x16x128xbf16> to vector<16x128xbf16>
    %31 = vector.shape_cast %27 : vector<16x128xbf16> to vector<1x16x128xbf16>
    tpu.vector_store %arg5[%c0_14, %c0_15, %c0_16], %31 {strides = array<i32>} : memref<8x16x128xbf16, #tpu.memory_space<vmem>>, vector<1x16x128xbf16>,
    %32 = arith.truncf %23 : vector<16x128xf32> to vector<16x128xbf16>
    %c0_17 = arith.constant 0 : index
    %c0_18 = arith.constant 0 : index
    %c0_19 = arith.constant 0 : index
    %33 = vector.load %arg6[%c0_17, %c0_18, %c0_19] : memref<8x16x128xbf16, #tpu.memory_space<vmem>>, vector<1x16x128xbf16>
    %34 = vector.shape_cast %33 : vector<1x16x128xbf16> to vector<16x128xbf16>
    %35 = vector.shape_cast %32 : vector<16x128xbf16> to vector<1x16x128xbf16>
    tpu.vector_store %arg6[%c0_17, %c0_18, %c0_19], %35 {strides = array<i32>} : memref<8x16x128xbf16, #tpu.memory_space<vmem>>, vector<1x16x128xbf16>,
    %c1 = arith.constant 1 : index
    %c0_20 = arith.constant 0 : index
    %c0_21 = arith.constant 0 : index
    %36 = vector.load %arg1[%c1, %c0_20, %c0_21] : memref<8x16x512xf32, #tpu.memory_space<vmem>>, vector<1x16x512xf32>
    %37 = vector.shape_cast %36 : vector<1x16x512xf32> to vector<16x512xf32>
    %c0_22 = arith.constant 0 : index
    %c0_23 = arith.constant 0 : index
    %38 = vector.load %arg7[%c0_22, %c0_23] : memref<16x128xbf16, #tpu.memory_space<vmem>>, vector<16x128xbf16>
    %c0_24 = arith.constant 0 : index
    %c0_25 = arith.constant 0 : index
    %39 = vector.load %arg4[%c0_24, %c0_25] : memref<128x512xbf16, #tpu.memory_space<vmem>>, vector<128x512xbf16>
    %cst_26 = arith.constant dense<0.000000e+00> : vector<16x512xf32>
    %40 = tpu.matmul %38, %39, %cst_26 {dimension_numbers = #tpu.dot_dimension_numbers<[1], [0], [0], [1], [0, 0, 1, 1], [], []>} : vector<16x128xbf16>, vector<128x512xbf16>, vector<16x512xf32> -> vector<16x512xf32>
    %41 = arith.addf %37, %40 : vector<16x512xf32>
    %42 = vector.extract_strided_slice %41 {offsets = [0, 0], sizes = [16, 384], strides = [1, 1]} : vector<16x512xf32> to vector<16x384xf32>
    %43 = arith.negf %42 : vector<16x384xf32>
    %44 = math.exp %43 : vector<16x384xf32>
    %cst_27 = arith.constant 1.000000e+00 : f32
    %45 = vector.broadcast %cst_27 : f32 to vector<16x384xf32>
    %46 = arith.addf %45, %44 : vector<16x384xf32>
    %47 = arith.divf %45, %46 : vector<16x384xf32>
    %48 = vector.extract_strided_slice %41 {offsets = [0, 384], sizes = [16, 128], strides = [1, 1]} : vector<16x512xf32> to vector<16x128xf32>
    %49 = math.tanh %48 : vector<16x128xf32>
    %50 = vector.extract_strided_slice %47 {offsets = [0, 0], sizes = [16, 128], strides = [1, 1]} : vector<16x384xf32> to vector<16x128xf32>
    %51 = vector.extract_strided_slice %47 {offsets = [0, 128], sizes = [16, 128], strides = [1, 1]} : vector<16x384xf32> to vector<16x128xf32>
    %52 = vector.extract_strided_slice %47 {offsets = [0, 256], sizes = [16, 128], strides = [1, 1]} : vector<16x384xf32> to vector<16x128xf32>
    %c0_28 = arith.constant 0 : index
    %c0_29 = arith.constant 0 : index
    %53 = vector.load %arg8[%c0_28, %c0_29] : memref<16x128xf32, #tpu.memory_space<vmem>>, vector<16x128xf32>
    %54 = arith.mulf %51, %53 : vector<16x128xf32>
    %55 = arith.mulf %50, %49 : vector<16x128xf32>
    %56 = arith.addf %54, %55 : vector<16x128xf32>
    %57 = math.tanh %56 : vector<16x128xf32>
    %58 = arith.mulf %52, %57 : vector<16x128xf32>
    %c0_30 = arith.constant 0 : index
    %c0_31 = arith.constant 0 : index
    %59 = vector.load %arg8[%c0_30, %c0_31] : memref<16x128xf32, #tpu.memory_space<vmem>>, vector<16x128xf32>
    tpu.vector_store %arg8[%c0_30, %c0_31], %56 {strides = array<i32>} : memref<16x128xf32, #tpu.memory_space<vmem>>, vector<16x128xf32>,
    %60 = arith.truncf %58 : vector<16x128xf32> to vector<16x128xbf16>
    %c0_32 = arith.constant 0 : index
    %c0_33 = arith.constant 0 : index
    %61 = vector.load %arg7[%c0_32, %c0_33] : memref<16x128xbf16, #tpu.memory_space<vmem>>, vector<16x128xbf16>
    tpu.vector_store %arg7[%c0_32, %c0_33], %60 {strides = array<i32>} : memref<16x128xbf16, #tpu.memory_space<vmem>>, vector<16x128xbf16>,
    %c1_34 = arith.constant 1 : index
    %c0_35 = arith.constant 0 : index
    %c0_36 = arith.constant 0 : index
    %62 = vector.load %arg5[%c1_34, %c0_35, %c0_36] : memref<8x16x128xbf16, #tpu.memory_space<vmem>>, vector<1x16x128xbf16>
    %63 = vector.shape_cast %62 : vector<1x16x128xbf16> to vector<16x128xbf16>
    %64 = vector.shape_cast %60 : vector<16x128xbf16> to vector<1x16x128xbf16>
    tpu.vector_store %arg5[%c1_34, %c0_35, %c0_36], %64 {strides = array<i32>} : memref<8x16x128xbf16, #tpu.memory_space<vmem>>, vector<1x16x128xbf16>,
    %65 = arith.truncf %56 : vector<16x128xf32> to vector<16x128xbf16>
    %c1_37 = arith.constant 1 : index
    %c0_38 = arith.constant 0 : index
    %c0_39 = arith.constant 0 : index
    %66 = vector.load %arg6[%c1_37, %c0_38, %c0_39] : memref<8x16x128xbf16, #tpu.memory_space<vmem>>, vector<1x16x128xbf16>
    %67 = vector.shape_cast %66 : vector<1x16x128xbf16> to vector<16x128xbf16>
    %68 = vector.shape_cast %65 : vector<16x128xbf16> to vector<1x16x128xbf16>
    tpu.vector_store %arg6[%c1_37, %c0_38, %c0_39], %68 {strides = array<i32>} : memref<8x16x128xbf16, #tpu.memory_space<vmem>>, vector<1x16x128xbf16>,
    %c2 = arith.constant 2 : index
    %c0_40 = arith.constant 0 : index
    %c0_41 = arith.constant 0 : index
    %69 = vector.load %arg1[%c2, %c0_40, %c0_41] : memref<8x16x512xf32, #tpu.memory_space<vmem>>, vector<1x16x512xf32>
    %70 = vector.shape_cast %69 : vector<1x16x512xf32> to vector<16x512xf32>
    %c0_42 = arith.constant 0 : index
    %c0_43 = arith.constant 0 : index
    %71 = vector.load %arg7[%c0_42, %c0_43] : memref<16x128xbf16, #tpu.memory_space<vmem>>, vector<16x128xbf16>
    %c0_44 = arith.constant 0 : index
    %c0_45 = arith.constant 0 : index
    %72 = vector.load %arg4[%c0_44, %c0_45] : memref<128x512xbf16, #tpu.memory_space<vmem>>, vector<128x512xbf16>
    %cst_46 = arith.constant dense<0.000000e+00> : vector<16x512xf32>
    %73 = tpu.matmul %71, %72, %cst_46 {dimension_numbers = #tpu.dot_dimension_numbers<[1], [0], [0], [1], [0, 0, 1, 1], [], []>} : vector<16x128xbf16>, vector<128x512xbf16>, vector<16x512xf32> -> vector<16x512xf32>
    %74 = arith.addf %70, %73 : vector<16x512xf32>
    %75 = vector.extract_strided_slice %74 {offsets = [0, 0], sizes = [16, 384], strides = [1, 1]} : vector<16x512xf32> to vector<16x384xf32>
    %76 = arith.negf %75 : vector<16x384xf32>
    %77 = math.exp %76 : vector<16x384xf32>
    %cst_47 = arith.constant 1.000000e+00 : f32
    %78 = vector.broadcast %cst_47 : f32 to vector<16x384xf32>
    %79 = arith.addf %78, %77 : vector<16x384xf32>
    %80 = arith.divf %78, %79 : vector<16x384xf32>
    %81 = vector.extract_strided_slice %74 {offsets = [0, 384], sizes = [16, 128], strides = [1, 1]} : vector<16x512xf32> to vector<16x128xf32>
    %82 = math.tanh %81 : vector<16x128xf32>
    %83 = vector.extract_strided_slice %80 {offsets = [0, 0], sizes = [16, 128], strides = [1, 1]} : vector<16x384xf32> to vector<16x128xf32>
    %84 = vector.extract_strided_slice %80 {offsets = [0, 128], sizes = [16, 128], strides = [1, 1]} : vector<16x384xf32> to vector<16x128xf32>
    %85 = vector.extract_strided_slice %80 {offsets = [0, 256], sizes = [16, 128], strides = [1, 1]} : vector<16x384xf32> to vector<16x128xf32>
    %c0_48 = arith.constant 0 : index
    %c0_49 = arith.constant 0 : index
    %86 = vector.load %arg8[%c0_48, %c0_49] : memref<16x128xf32, #tpu.memory_space<vmem>>, vector<16x128xf32>
    %87 = arith.mulf %84, %86 : vector<16x128xf32>
    %88 = arith.mulf %83, %82 : vector<16x128xf32>
    %89 = arith.addf %87, %88 : vector<16x128xf32>
    %90 = math.tanh %89 : vector<16x128xf32>
    %91 = arith.mulf %85, %90 : vector<16x128xf32>
    %c0_50 = arith.constant 0 : index
    %c0_51 = arith.constant 0 : index
    %92 = vector.load %arg8[%c0_50, %c0_51] : memref<16x128xf32, #tpu.memory_space<vmem>>, vector<16x128xf32>
    tpu.vector_store %arg8[%c0_50, %c0_51], %89 {strides = array<i32>} : memref<16x128xf32, #tpu.memory_space<vmem>>, vector<16x128xf32>,
    %93 = arith.truncf %91 : vector<16x128xf32> to vector<16x128xbf16>
    %c0_52 = arith.constant 0 : index
    %c0_53 = arith.constant 0 : index
    %94 = vector.load %arg7[%c0_52, %c0_53] : memref<16x128xbf16, #tpu.memory_space<vmem>>, vector<16x128xbf16>
    tpu.vector_store %arg7[%c0_52, %c0_53], %93 {strides = array<i32>} : memref<16x128xbf16, #tpu.memory_space<vmem>>, vector<16x128xbf16>,
    %c2_54 = arith.constant 2 : index
    %c0_55 = arith.constant 0 : index
    %c0_56 = arith.constant 0 : index
    %95 = vector.load %arg5[%c2_54, %c0_55, %c0_56] : memref<8x16x128xbf16, #tpu.memory_space<vmem>>, vector<1x16x128xbf16>
    %96 = vector.shape_cast %95 : vector<1x16x128xbf16> to vector<16x128xbf16>
    %97 = vector.shape_cast %93 : vector<16x128xbf16> to vector<1x16x128xbf16>
    tpu.vector_store %arg5[%c2_54, %c0_55, %c0_56], %97 {strides = array<i32>} : memref<8x16x128xbf16, #tpu.memory_space<vmem>>, vector<1x16x128xbf16>,
    %98 = arith.truncf %89 : vector<16x128xf32> to vector<16x128xbf16>
    %c2_57 = arith.constant 2 : index
    %c0_58 = arith.constant 0 : index
    %c0_59 = arith.constant 0 : index
    %99 = vector.load %arg6[%c2_57, %c0_58, %c0_59] : memref<8x16x128xbf16, #tpu.memory_space<vmem>>, vector<1x16x128xbf16>
    %100 = vector.shape_cast %99 : vector<1x16x128xbf16> to vector<16x128xbf16>
    %101 = vector.shape_cast %98 : vector<16x128xbf16> to vector<1x16x128xbf16>
    tpu.vector_store %arg6[%c2_57, %c0_58, %c0_59], %101 {strides = array<i32>} : memref<8x16x128xbf16, #tpu.memory_space<vmem>>, vector<1x16x128xbf16>,
    %c3 = arith.constant 3 : index
    %c0_60 = arith.constant 0 : index
    %c0_61 = arith.constant 0 : index
    %102 = vector.load %arg1[%c3, %c0_60, %c0_61] : memref<8x16x512xf32, #tpu.memory_space<vmem>>, vector<1x16x512xf32>
    %103 = vector.shape_cast %102 : vector<1x16x512xf32> to vector<16x512xf32>
    %c0_62 = arith.constant 0 : index
    %c0_63 = arith.constant 0 : index
    %104 = vector.load %arg7[%c0_62, %c0_63] : memref<16x128xbf16, #tpu.memory_space<vmem>>, vector<16x128xbf16>
    %c0_64 = arith.constant 0 : index
    %c0_65 = arith.constant 0 : index
    %105 = vector.load %arg4[%c0_64, %c0_65] : memref<128x512xbf16, #tpu.memory_space<vmem>>, vector<128x512xbf16>
    %cst_66 = arith.constant dense<0.000000e+00> : vector<16x512xf32>
    %106 = tpu.matmul %104, %105, %cst_66 {dimension_numbers = #tpu.dot_dimension_numbers<[1], [0], [0], [1], [0, 0, 1, 1], [], []>} : vector<16x128xbf16>, vector<128x512xbf16>, vector<16x512xf32> -> vector<16x512xf32>
    %107 = arith.addf %103, %106 : vector<16x512xf32>
    %108 = vector.extract_strided_slice %107 {offsets = [0, 0], sizes = [16, 384], strides = [1, 1]} : vector<16x512xf32> to vector<16x384xf32>
    %109 = arith.negf %108 : vector<16x384xf32>
    %110 = math.exp %109 : vector<16x384xf32>
    %cst_67 = arith.constant 1.000000e+00 : f32
    %111 = vector.broadcast %cst_67 : f32 to vector<16x384xf32>
    %112 = arith.addf %111, %110 : vector<16x384xf32>
    %113 = arith.divf %111, %112 : vector<16x384xf32>
    %114 = vector.extract_strided_slice %107 {offsets = [0, 384], sizes = [16, 128], strides = [1, 1]} : vector<16x512xf32> to vector<16x128xf32>
    %115 = math.tanh %114 : vector<16x128xf32>
    %116 = vector.extract_strided_slice %113 {offsets = [0, 0], sizes = [16, 128], strides = [1, 1]} : vector<16x384xf32> to vector<16x128xf32>
    %117 = vector.extract_strided_slice %113 {offsets = [0, 128], sizes = [16, 128], strides = [1, 1]} : vector<16x384xf32> to vector<16x128xf32>
    %118 = vector.extract_strided_slice %113 {offsets = [0, 256], sizes = [16, 128], strides = [1, 1]} : vector<16x384xf32> to vector<16x128xf32>
    %c0_68 = arith.constant 0 : index
    %c0_69 = arith.constant 0 : index
    %119 = vector.load %arg8[%c0_68, %c0_69] : memref<16x128xf32, #tpu.memory_space<vmem>>, vector<16x128xf32>
    %120 = arith.mulf %117, %119 : vector<16x128xf32>
    %121 = arith.mulf %116, %115 : vector<16x128xf32>
    %122 = arith.addf %120, %121 : vector<16x128xf32>
    %123 = math.tanh %122 : vector<16x128xf32>
    %124 = arith.mulf %118, %123 : vector<16x128xf32>
    %c0_70 = arith.constant 0 : index
    %c0_71 = arith.constant 0 : index
    %125 = vector.load %arg8[%c0_70, %c0_71] : memref<16x128xf32, #tpu.memory_space<vmem>>, vector<16x128xf32>
    tpu.vector_store %arg8[%c0_70, %c0_71], %122 {strides = array<i32>} : memref<16x128xf32, #tpu.memory_space<vmem>>, vector<16x128xf32>,
    %126 = arith.truncf %124 : vector<16x128xf32> to vector<16x128xbf16>
    %c0_72 = arith.constant 0 : index
    %c0_73 = arith.constant 0 : index
    %127 = vector.load %arg7[%c0_72, %c0_73] : memref<16x128xbf16, #tpu.memory_space<vmem>>, vector<16x128xbf16>
    tpu.vector_store %arg7[%c0_72, %c0_73], %126 {strides = array<i32>} : memref<16x128xbf16, #tpu.memory_space<vmem>>, vector<16x128xbf16>,
    %c3_74 = arith.constant 3 : index
    %c0_75 = arith.constant 0 : index
    %c0_76 = arith.constant 0 : index
    %128 = vector.load %arg5[%c3_74, %c0_75, %c0_76] : memref<8x16x128xbf16, #tpu.memory_space<vmem>>, vector<1x16x128xbf16>
    %129 = vector.shape_cast %128 : vector<1x16x128xbf16> to vector<16x128xbf16>
    %130 = vector.shape_cast %126 : vector<16x128xbf16> to vector<1x16x128xbf16>
    tpu.vector_store %arg5[%c3_74, %c0_75, %c0_76], %130 {strides = array<i32>} : memref<8x16x128xbf16, #tpu.memory_space<vmem>>, vector<1x16x128xbf16>,
    %131 = arith.truncf %122 : vector<16x128xf32> to vector<16x128xbf16>
    %c3_77 = arith.constant 3 : index
    %c0_78 = arith.constant 0 : index
    %c0_79 = arith.constant 0 : index
    %132 = vector.load %arg6[%c3_77, %c0_78, %c0_79] : memref<8x16x128xbf16, #tpu.memory_space<vmem>>, vector<1x16x128xbf16>
    %133 = vector.shape_cast %132 : vector<1x16x128xbf16> to vector<16x128xbf16>
    %134 = vector.shape_cast %131 : vector<16x128xbf16> to vector<1x16x128xbf16>
    tpu.vector_store %arg6[%c3_77, %c0_78, %c0_79], %134 {strides = array<i32>} : memref<8x16x128xbf16, #tpu.memory_space<vmem>>, vector<1x16x128xbf16>,
    %c4 = arith.constant 4 : index
    %c0_80 = arith.constant 0 : index
    %c0_81 = arith.constant 0 : index
    %135 = vector.load %arg1[%c4, %c0_80, %c0_81] : memref<8x16x512xf32, #tpu.memory_space<vmem>>, vector<1x16x512xf32>
    %136 = vector.shape_cast %135 : vector<1x16x512xf32> to vector<16x512xf32>
    %c0_82 = arith.constant 0 : index
    %c0_83 = arith.constant 0 : index
    %137 = vector.load %arg7[%c0_82, %c0_83] : memref<16x128xbf16, #tpu.memory_space<vmem>>, vector<16x128xbf16>
    %c0_84 = arith.constant 0 : index
    %c0_85 = arith.constant 0 : index
    %138 = vector.load %arg4[%c0_84, %c0_85] : memref<128x512xbf16, #tpu.memory_space<vmem>>, vector<128x512xbf16>
    %cst_86 = arith.constant dense<0.000000e+00> : vector<16x512xf32>
    %139 = tpu.matmul %137, %138, %cst_86 {dimension_numbers = #tpu.dot_dimension_numbers<[1], [0], [0], [1], [0, 0, 1, 1], [], []>} : vector<16x128xbf16>, vector<128x512xbf16>, vector<16x512xf32> -> vector<16x512xf32>
    %140 = arith.addf %136, %139 : vector<16x512xf32>
    %141 = vector.extract_strided_slice %140 {offsets = [0, 0], sizes = [16, 384], strides = [1, 1]} : vector<16x512xf32> to vector<16x384xf32>
    %142 = arith.negf %141 : vector<16x384xf32>
    %143 = math.exp %142 : vector<16x384xf32>
    %cst_87 = arith.constant 1.000000e+00 : f32
    %144 = vector.broadcast %cst_87 : f32 to vector<16x384xf32>
    %145 = arith.addf %144, %143 : vector<16x384xf32>
    %146 = arith.divf %144, %145 : vector<16x384xf32>
    %147 = vector.extract_strided_slice %140 {offsets = [0, 384], sizes = [16, 128], strides = [1, 1]} : vector<16x512xf32> to vector<16x128xf32>
    %148 = math.tanh %147 : vector<16x128xf32>
    %149 = vector.extract_strided_slice %146 {offsets = [0, 0], sizes = [16, 128], strides = [1, 1]} : vector<16x384xf32> to vector<16x128xf32>
    %150 = vector.extract_strided_slice %146 {offsets = [0, 128], sizes = [16, 128], strides = [1, 1]} : vector<16x384xf32> to vector<16x128xf32>
    %151 = vector.extract_strided_slice %146 {offsets = [0, 256], sizes = [16, 128], strides = [1, 1]} : vector<16x384xf32> to vector<16x128xf32>
    %c0_88 = arith.constant 0 : index
    %c0_89 = arith.constant 0 : index
    %152 = vector.load %arg8[%c0_88, %c0_89] : memref<16x128xf32, #tpu.memory_space<vmem>>, vector<16x128xf32>
    %153 = arith.mulf %150, %152 : vector<16x128xf32>
    %154 = arith.mulf %149, %148 : vector<16x128xf32>
    %155 = arith.addf %153, %154 : vector<16x128xf32>
    %156 = math.tanh %155 : vector<16x128xf32>
    %157 = arith.mulf %151, %156 : vector<16x128xf32>
    %c0_90 = arith.constant 0 : index
    %c0_91 = arith.constant 0 : index
    %158 = vector.load %arg8[%c0_90, %c0_91] : memref<16x128xf32, #tpu.memory_space<vmem>>, vector<16x128xf32>
    tpu.vector_store %arg8[%c0_90, %c0_91], %155 {strides = array<i32>} : memref<16x128xf32, #tpu.memory_space<vmem>>, vector<16x128xf32>,
    %159 = arith.truncf %157 : vector<16x128xf32> to vector<16x128xbf16>
    %c0_92 = arith.constant 0 : index
    %c0_93 = arith.constant 0 : index
    %160 = vector.load %arg7[%c0_92, %c0_93] : memref<16x128xbf16, #tpu.memory_space<vmem>>, vector<16x128xbf16>
    tpu.vector_store %arg7[%c0_92, %c0_93], %159 {strides = array<i32>} : memref<16x128xbf16, #tpu.memory_space<vmem>>, vector<16x128xbf16>,
    %c4_94 = arith.constant 4 : index
    %c0_95 = arith.constant 0 : index
    %c0_96 = arith.constant 0 : index
    %161 = vector.load %arg5[%c4_94, %c0_95, %c0_96] : memref<8x16x128xbf16, #tpu.memory_space<vmem>>, vector<1x16x128xbf16>
    %162 = vector.shape_cast %161 : vector<1x16x128xbf16> to vector<16x128xbf16>
    %163 = vector.shape_cast %159 : vector<16x128xbf16> to vector<1x16x128xbf16>
    tpu.vector_store %arg5[%c4_94, %c0_95, %c0_96], %163 {strides = array<i32>} : memref<8x16x128xbf16, #tpu.memory_space<vmem>>, vector<1x16x128xbf16>,
    %164 = arith.truncf %155 : vector<16x128xf32> to vector<16x128xbf16>
    %c4_97 = arith.constant 4 : index
    %c0_98 = arith.constant 0 : index
    %c0_99 = arith.constant 0 : index
    %165 = vector.load %arg6[%c4_97, %c0_98, %c0_99] : memref<8x16x128xbf16, #tpu.memory_space<vmem>>, vector<1x16x128xbf16>
    %166 = vector.shape_cast %165 : vector<1x16x128xbf16> to vector<16x128xbf16>
    %167 = vector.shape_cast %164 : vector<16x128xbf16> to vector<1x16x128xbf16>
    tpu.vector_store %arg6[%c4_97, %c0_98, %c0_99], %167 {strides = array<i32>} : memref<8x16x128xbf16, #tpu.memory_space<vmem>>, vector<1x16x128xbf16>,
    %c5 = arith.constant 5 : index
    %c0_100 = arith.constant 0 : index
    %c0_101 = arith.constant 0 : index
    %168 = vector.load %arg1[%c5, %c0_100, %c0_101] : memref<8x16x512xf32, #tpu.memory_space<vmem>>, vector<1x16x512xf32>
    %169 = vector.shape_cast %168 : vector<1x16x512xf32> to vector<16x512xf32>
    %c0_102 = arith.constant 0 : index
    %c0_103 = arith.constant 0 : index
    %170 = vector.load %arg7[%c0_102, %c0_103] : memref<16x128xbf16, #tpu.memory_space<vmem>>, vector<16x128xbf16>
    %c0_104 = arith.constant 0 : index
    %c0_105 = arith.constant 0 : index
    %171 = vector.load %arg4[%c0_104, %c0_105] : memref<128x512xbf16, #tpu.memory_space<vmem>>, vector<128x512xbf16>
    %cst_106 = arith.constant dense<0.000000e+00> : vector<16x512xf32>
    %172 = tpu.matmul %170, %171, %cst_106 {dimension_numbers = #tpu.dot_dimension_numbers<[1], [0], [0], [1], [0, 0, 1, 1], [], []>} : vector<16x128xbf16>, vector<128x512xbf16>, vector<16x512xf32> -> vector<16x512xf32>
    %173 = arith.addf %169, %172 : vector<16x512xf32>
    %174 = vector.extract_strided_slice %173 {offsets = [0, 0], sizes = [16, 384], strides = [1, 1]} : vector<16x512xf32> to vector<16x384xf32>
    %175 = arith.negf %174 : vector<16x384xf32>
    %176 = math.exp %175 : vector<16x384xf32>
    %cst_107 = arith.constant 1.000000e+00 : f32
    %177 = vector.broadcast %cst_107 : f32 to vector<16x384xf32>
    %178 = arith.addf %177, %176 : vector<16x384xf32>
    %179 = arith.divf %177, %178 : vector<16x384xf32>
    %180 = vector.extract_strided_slice %173 {offsets = [0, 384], sizes = [16, 128], strides = [1, 1]} : vector<16x512xf32> to vector<16x128xf32>
    %181 = math.tanh %180 : vector<16x128xf32>
    %182 = vector.extract_strided_slice %179 {offsets = [0, 0], sizes = [16, 128], strides = [1, 1]} : vector<16x384xf32> to vector<16x128xf32>
    %183 = vector.extract_strided_slice %179 {offsets = [0, 128], sizes = [16, 128], strides = [1, 1]} : vector<16x384xf32> to vector<16x128xf32>
    %184 = vector.extract_strided_slice %179 {offsets = [0, 256], sizes = [16, 128], strides = [1, 1]} : vector<16x384xf32> to vector<16x128xf32>
    %c0_108 = arith.constant 0 : index
    %c0_109 = arith.constant 0 : index
    %185 = vector.load %arg8[%c0_108, %c0_109] : memref<16x128xf32, #tpu.memory_space<vmem>>, vector<16x128xf32>
    %186 = arith.mulf %183, %185 : vector<16x128xf32>
    %187 = arith.mulf %182, %181 : vector<16x128xf32>
    %188 = arith.addf %186, %187 : vector<16x128xf32>
    %189 = math.tanh %188 : vector<16x128xf32>
    %190 = arith.mulf %184, %189 : vector<16x128xf32>
    %c0_110 = arith.constant 0 : index
    %c0_111 = arith.constant 0 : index
    %191 = vector.load %arg8[%c0_110, %c0_111] : memref<16x128xf32, #tpu.memory_space<vmem>>, vector<16x128xf32>
    tpu.vector_store %arg8[%c0_110, %c0_111], %188 {strides = array<i32>} : memref<16x128xf32, #tpu.memory_space<vmem>>, vector<16x128xf32>,
    %192 = arith.truncf %190 : vector<16x128xf32> to vector<16x128xbf16>
    %c0_112 = arith.constant 0 : index
    %c0_113 = arith.constant 0 : index
    %193 = vector.load %arg7[%c0_112, %c0_113] : memref<16x128xbf16, #tpu.memory_space<vmem>>, vector<16x128xbf16>
    tpu.vector_store %arg7[%c0_112, %c0_113], %192 {strides = array<i32>} : memref<16x128xbf16, #tpu.memory_space<vmem>>, vector<16x128xbf16>,
    %c5_114 = arith.constant 5 : index
    %c0_115 = arith.constant 0 : index
    %c0_116 = arith.constant 0 : index
    %194 = vector.load %arg5[%c5_114, %c0_115, %c0_116] : memref<8x16x128xbf16, #tpu.memory_space<vmem>>, vector<1x16x128xbf16>
    %195 = vector.shape_cast %194 : vector<1x16x128xbf16> to vector<16x128xbf16>
    %196 = vector.shape_cast %192 : vector<16x128xbf16> to vector<1x16x128xbf16>
    tpu.vector_store %arg5[%c5_114, %c0_115, %c0_116], %196 {strides = array<i32>} : memref<8x16x128xbf16, #tpu.memory_space<vmem>>, vector<1x16x128xbf16>,
    %197 = arith.truncf %188 : vector<16x128xf32> to vector<16x128xbf16>
    %c5_117 = arith.constant 5 : index
    %c0_118 = arith.constant 0 : index
    %c0_119 = arith.constant 0 : index
    %198 = vector.load %arg6[%c5_117, %c0_118, %c0_119] : memref<8x16x128xbf16, #tpu.memory_space<vmem>>, vector<1x16x128xbf16>
    %199 = vector.shape_cast %198 : vector<1x16x128xbf16> to vector<16x128xbf16>
    %200 = vector.shape_cast %197 : vector<16x128xbf16> to vector<1x16x128xbf16>
    tpu.vector_store %arg6[%c5_117, %c0_118, %c0_119], %200 {strides = array<i32>} : memref<8x16x128xbf16, #tpu.memory_space<vmem>>, vector<1x16x128xbf16>,
    %c6 = arith.constant 6 : index
    %c0_120 = arith.constant 0 : index
    %c0_121 = arith.constant 0 : index
    %201 = vector.load %arg1[%c6, %c0_120, %c0_121] : memref<8x16x512xf32, #tpu.memory_space<vmem>>, vector<1x16x512xf32>
    %202 = vector.shape_cast %201 : vector<1x16x512xf32> to vector<16x512xf32>
    %c0_122 = arith.constant 0 : index
    %c0_123 = arith.constant 0 : index
    %203 = vector.load %arg7[%c0_122, %c0_123] : memref<16x128xbf16, #tpu.memory_space<vmem>>, vector<16x128xbf16>
    %c0_124 = arith.constant 0 : index
    %c0_125 = arith.constant 0 : index
    %204 = vector.load %arg4[%c0_124, %c0_125] : memref<128x512xbf16, #tpu.memory_space<vmem>>, vector<128x512xbf16>
    %cst_126 = arith.constant dense<0.000000e+00> : vector<16x512xf32>
    %205 = tpu.matmul %203, %204, %cst_126 {dimension_numbers = #tpu.dot_dimension_numbers<[1], [0], [0], [1], [0, 0, 1, 1], [], []>} : vector<16x128xbf16>, vector<128x512xbf16>, vector<16x512xf32> -> vector<16x512xf32>
    %206 = arith.addf %202, %205 : vector<16x512xf32>
    %207 = vector.extract_strided_slice %206 {offsets = [0, 0], sizes = [16, 384], strides = [1, 1]} : vector<16x512xf32> to vector<16x384xf32>
    %208 = arith.negf %207 : vector<16x384xf32>
    %209 = math.exp %208 : vector<16x384xf32>
    %cst_127 = arith.constant 1.000000e+00 : f32
    %210 = vector.broadcast %cst_127 : f32 to vector<16x384xf32>
    %211 = arith.addf %210, %209 : vector<16x384xf32>
    %212 = arith.divf %210, %211 : vector<16x384xf32>
    %213 = vector.extract_strided_slice %206 {offsets = [0, 384], sizes = [16, 128], strides = [1, 1]} : vector<16x512xf32> to vector<16x128xf32>
    %214 = math.tanh %213 : vector<16x128xf32>
    %215 = vector.extract_strided_slice %212 {offsets = [0, 0], sizes = [16, 128], strides = [1, 1]} : vector<16x384xf32> to vector<16x128xf32>
    %216 = vector.extract_strided_slice %212 {offsets = [0, 128], sizes = [16, 128], strides = [1, 1]} : vector<16x384xf32> to vector<16x128xf32>
    %217 = vector.extract_strided_slice %212 {offsets = [0, 256], sizes = [16, 128], strides = [1, 1]} : vector<16x384xf32> to vector<16x128xf32>
    %c0_128 = arith.constant 0 : index
    %c0_129 = arith.constant 0 : index
    %218 = vector.load %arg8[%c0_128, %c0_129] : memref<16x128xf32, #tpu.memory_space<vmem>>, vector<16x128xf32>
    %219 = arith.mulf %216, %218 : vector<16x128xf32>
    %220 = arith.mulf %215, %214 : vector<16x128xf32>
    %221 = arith.addf %219, %220 : vector<16x128xf32>
    %222 = math.tanh %221 : vector<16x128xf32>
    %223 = arith.mulf %217, %222 : vector<16x128xf32>
    %c0_130 = arith.constant 0 : index
    %c0_131 = arith.constant 0 : index
    %224 = vector.load %arg8[%c0_130, %c0_131] : memref<16x128xf32, #tpu.memory_space<vmem>>, vector<16x128xf32>
    tpu.vector_store %arg8[%c0_130, %c0_131], %221 {strides = array<i32>} : memref<16x128xf32, #tpu.memory_space<vmem>>, vector<16x128xf32>,
    %225 = arith.truncf %223 : vector<16x128xf32> to vector<16x128xbf16>
    %c0_132 = arith.constant 0 : index
    %c0_133 = arith.constant 0 : index
    %226 = vector.load %arg7[%c0_132, %c0_133] : memref<16x128xbf16, #tpu.memory_space<vmem>>, vector<16x128xbf16>
    tpu.vector_store %arg7[%c0_132, %c0_133], %225 {strides = array<i32>} : memref<16x128xbf16, #tpu.memory_space<vmem>>, vector<16x128xbf16>,
    %c6_134 = arith.constant 6 : index
    %c0_135 = arith.constant 0 : index
    %c0_136 = arith.constant 0 : index
    %227 = vector.load %arg5[%c6_134, %c0_135, %c0_136] : memref<8x16x128xbf16, #tpu.memory_space<vmem>>, vector<1x16x128xbf16>
    %228 = vector.shape_cast %227 : vector<1x16x128xbf16> to vector<16x128xbf16>
    %229 = vector.shape_cast %225 : vector<16x128xbf16> to vector<1x16x128xbf16>
    tpu.vector_store %arg5[%c6_134, %c0_135, %c0_136], %229 {strides = array<i32>} : memref<8x16x128xbf16, #tpu.memory_space<vmem>>, vector<1x16x128xbf16>,
    %230 = arith.truncf %221 : vector<16x128xf32> to vector<16x128xbf16>
    %c6_137 = arith.constant 6 : index
    %c0_138 = arith.constant 0 : index
    %c0_139 = arith.constant 0 : index
    %231 = vector.load %arg6[%c6_137, %c0_138, %c0_139] : memref<8x16x128xbf16, #tpu.memory_space<vmem>>, vector<1x16x128xbf16>
    %232 = vector.shape_cast %231 : vector<1x16x128xbf16> to vector<16x128xbf16>
    %233 = vector.shape_cast %230 : vector<16x128xbf16> to vector<1x16x128xbf16>
    tpu.vector_store %arg6[%c6_137, %c0_138, %c0_139], %233 {strides = array<i32>} : memref<8x16x128xbf16, #tpu.memory_space<vmem>>, vector<1x16x128xbf16>,
    %c7 = arith.constant 7 : index
    %c0_140 = arith.constant 0 : index
    %c0_141 = arith.constant 0 : index
    %234 = vector.load %arg1[%c7, %c0_140, %c0_141] : memref<8x16x512xf32, #tpu.memory_space<vmem>>, vector<1x16x512xf32>
    %235 = vector.shape_cast %234 : vector<1x16x512xf32> to vector<16x512xf32>
    %c0_142 = arith.constant 0 : index
    %c0_143 = arith.constant 0 : index
    %236 = vector.load %arg7[%c0_142, %c0_143] : memref<16x128xbf16, #tpu.memory_space<vmem>>, vector<16x128xbf16>
    %c0_144 = arith.constant 0 : index
    %c0_145 = arith.constant 0 : index
    %237 = vector.load %arg4[%c0_144, %c0_145] : memref<128x512xbf16, #tpu.memory_space<vmem>>, vector<128x512xbf16>
    %cst_146 = arith.constant dense<0.000000e+00> : vector<16x512xf32>
    %238 = tpu.matmul %236, %237, %cst_146 {dimension_numbers = #tpu.dot_dimension_numbers<[1], [0], [0], [1], [0, 0, 1, 1], [], []>} : vector<16x128xbf16>, vector<128x512xbf16>, vector<16x512xf32> -> vector<16x512xf32>
    %239 = arith.addf %235, %238 : vector<16x512xf32>
    %240 = vector.extract_strided_slice %239 {offsets = [0, 0], sizes = [16, 384], strides = [1, 1]} : vector<16x512xf32> to vector<16x384xf32>
    %241 = arith.negf %240 : vector<16x384xf32>
    %242 = math.exp %241 : vector<16x384xf32>
    %cst_147 = arith.constant 1.000000e+00 : f32
    %243 = vector.broadcast %cst_147 : f32 to vector<16x384xf32>
    %244 = arith.addf %243, %242 : vector<16x384xf32>
    %245 = arith.divf %243, %244 : vector<16x384xf32>
    %246 = vector.extract_strided_slice %239 {offsets = [0, 384], sizes = [16, 128], strides = [1, 1]} : vector<16x512xf32> to vector<16x128xf32>
    %247 = math.tanh %246 : vector<16x128xf32>
    %248 = vector.extract_strided_slice %245 {offsets = [0, 0], sizes = [16, 128], strides = [1, 1]} : vector<16x384xf32> to vector<16x128xf32>
    %249 = vector.extract_strided_slice %245 {offsets = [0, 128], sizes = [16, 128], strides = [1, 1]} : vector<16x384xf32> to vector<16x128xf32>
    %250 = vector.extract_strided_slice %245 {offsets = [0, 256], sizes = [16, 128], strides = [1, 1]} : vector<16x384xf32> to vector<16x128xf32>
    %c0_148 = arith.constant 0 : index
    %c0_149 = arith.constant 0 : index
    %251 = vector.load %arg8[%c0_148, %c0_149] : memref<16x128xf32, #tpu.memory_space<vmem>>, vector<16x128xf32>
    %252 = arith.mulf %249, %251 : vector<16x128xf32>
    %253 = arith.mulf %248, %247 : vector<16x128xf32>
    %254 = arith.addf %252, %253 : vector<16x128xf32>
    %255 = math.tanh %254 : vector<16x128xf32>
    %256 = arith.mulf %250, %255 : vector<16x128xf32>
    %c0_150 = arith.constant 0 : index
    %c0_151 = arith.constant 0 : index
    %257 = vector.load %arg8[%c0_150, %c0_151] : memref<16x128xf32, #tpu.memory_space<vmem>>, vector<16x128xf32>
    tpu.vector_store %arg8[%c0_150, %c0_151], %254 {strides = array<i32>} : memref<16x128xf32, #tpu.memory_space<vmem>>, vector<16x128xf32>,
    %258 = arith.truncf %256 : vector<16x128xf32> to vector<16x128xbf16>
    %c0_152 = arith.constant 0 : index
    %c0_153 = arith.constant 0 : index
    %259 = vector.load %arg7[%c0_152, %c0_153] : memref<16x128xbf16, #tpu.memory_space<vmem>>, vector<16x128xbf16>
    tpu.vector_store %arg7[%c0_152, %c0_153], %258 {strides = array<i32>} : memref<16x128xbf16, #tpu.memory_space<vmem>>, vector<16x128xbf16>,
    %c7_154 = arith.constant 7 : index
    %c0_155 = arith.constant 0 : index
    %c0_156 = arith.constant 0 : index
    %260 = vector.load %arg5[%c7_154, %c0_155, %c0_156] : memref<8x16x128xbf16, #tpu.memory_space<vmem>>, vector<1x16x128xbf16>
    %261 = vector.shape_cast %260 : vector<1x16x128xbf16> to vector<16x128xbf16>
    %262 = vector.shape_cast %258 : vector<16x128xbf16> to vector<1x16x128xbf16>
    tpu.vector_store %arg5[%c7_154, %c0_155, %c0_156], %262 {strides = array<i32>} : memref<8x16x128xbf16, #tpu.memory_space<vmem>>, vector<1x16x128xbf16>,
    %263 = arith.truncf %254 : vector<16x128xf32> to vector<16x128xbf16>
    %c7_157 = arith.constant 7 : index
    %c0_158 = arith.constant 0 : index
    %c0_159 = arith.constant 0 : index
    %264 = vector.load %arg6[%c7_157, %c0_158, %c0_159] : memref<8x16x128xbf16, #tpu.memory_space<vmem>>, vector<1x16x128xbf16>
    %265 = vector.shape_cast %264 : vector<1x16x128xbf16> to vector<16x128xbf16>
    %266 = vector.shape_cast %263 : vector<16x128xbf16> to vector<1x16x128xbf16>
    tpu.vector_store %arg6[%c7_157, %c0_158, %c0_159], %266 {strides = array<i32>} : memref<8x16x128xbf16, #tpu.memory_space<vmem>>, vector<1x16x128xbf16>,
    return
  }
  func.func @transform_0(%arg0: i32) -> (i32, i32, i32) {
    %c0_i32 = arith.constant 0 : i32
    %c0_i32_0 = arith.constant 0 : i32
    %c0_i32_1 = arith.constant 0 : i32
    return %arg0, %c0_i32, %c0_i32_0 : i32, i32, i32
  }
  func.func @transform_1(%arg0: i32) -> (i32, i32) {
    %c0_i32 = arith.constant 0 : i32
    %c0_i32_0 = arith.constant 0 : i32
    %c0_i32_1 = arith.constant 0 : i32
    return %c0_i32, %c0_i32_0 : i32, i32
  }
  func.func @transform_2(%arg0: i32) -> (i32, i32) {
    %c0_i32 = arith.constant 0 : i32
    %c0_i32_0 = arith.constant 0 : i32
    %c0_i32_1 = arith.constant 0 : i32
    return %c0_i32, %c0_i32_0 : i32, i32
  }
  func.func @transform_3(%arg0: i32) -> (i32, i32) {
    %c0_i32 = arith.constant 0 : i32
    %c0_i32_0 = arith.constant 0 : i32
    %c0_i32_1 = arith.constant 0 : i32
    return %c0_i32, %c0_i32_0 : i32, i32
  }
  func.func @transform_4(%arg0: i32) -> (i32, i32, i32) {
    %c0_i32 = arith.constant 0 : i32
    %c0_i32_0 = arith.constant 0 : i32
    %c0_i32_1 = arith.constant 0 : i32
    return %arg0, %c0_i32, %c0_i32_0 : i32, i32, i32
  }
  func.func @transform_5(%arg0: i32) -> (i32, i32, i32) {
    %c0_i32 = arith.constant 0 : i32
    %c0_i32_0 = arith.constant 0 : i32
    %c0_i32_1 = arith.constant 0 : i32
    return %arg0, %c0_i32, %c0_i32_0 : i32, i32, i32
  }
}

</mosaic_0001>

<llo_original>
// kernel: lstm_sequence_forward.2
$region0: #{lstm_sequence_forward.2}
  #allocation0 [shape = 'u32[]', space=smem, size = 0x4, offset = 0x4, fixed_abs, tag = 'smem constant byte address 0x4 - core index']
  #allocation1 [shape = 'u32[72,128]{1,0:T(1,128)}', space=vmem, size = 0x9000, scoped, tag = 'internal scratch']
  %s0 = inlined_call_operand.vmem [shape: bf16[128,128], index: 0, kind: input, shape index: {}]
  %s1 = inlined_call_operand.hbm [shape: bf16[128,512], index: 1, kind: input, shape index: {}]
  %s2 = inlined_call_operand.vmem [shape: bf16[1,512], index: 2, kind: input, shape index: {}]
  %s3 = inlined_call_operand.vmem [shape: f32[128,512], index: 3, kind: output, shape index: {}]
  %s4 = sld [smem:[#allocation0]]
  $region26: #{lstm_sequence_forward.2} parent=0
    _
  %s6 = ssub.s32 1, %s4
  %s7 = scalar_select 0, %s6, %s4
  $region1: #{lstm_sequence_forward.2} parent=0
    #allocation2 [shape = 'u8[131072]{0}', space=vmem, size = 0x20000, scoped, tag = 'input window, operand 1, single buffered']
    #allocation3 [shape = 's32[1]{0}', space=sflag, size = 0x4, scoped, tag = 'scoped memory for lstm_sequence_forward.2']
    %8 = vsyncpa [#allocation3], 0
    // Predicated region
    $region2: #{lstm_sequence_forward.2} parent=1 // pred_check
      _
    $region3: #{lstm_sequence_forward.2} parent=1 // pred_check_branch
      %10 = sbr.rel (0) target = $region5
    $region4: #{lstm_sequence_forward.2} parent=1 // pred_region
      _
    $region5: #{lstm_sequence_forward.2} parent=1 // pred_fallthru
      _
    // Predicated region
    $region6: #{lstm_sequence_forward.2} parent=1 // pred_check
      _
    $region7: #{lstm_sequence_forward.2} parent=1 // pred_check_branch
      %12 = sbr.rel (0) target = $region9
    $region8: #{lstm_sequence_forward.2} parent=1 // pred_region
      %14 = vsyncadd [#allocation3], 0
      %s15 = sshll.u32 %s1, 4
      %s16 = int_to_ptr.hbm [resolvable:$true] %s15
      %s17 = sshll.u32 [#allocation2], 4
      %s18 = int_to_ptr.vmem [resolvable:$true] %s17
      %23 = dma.hbm_to_vmem [thread:$0]  %s16, 4096, %s18, [#allocation3], 256, 256, 16
    $region9: #{lstm_sequence_forward.2} parent=1 // pred_fallthru
      _
    // Predicated region
    $region10: #{lstm_sequence_forward.2} parent=1 // pred_check
      _
    $region11: #{lstm_sequence_forward.2} parent=1 // pred_check_branch
      %25 = sbr.rel (0) target = $region13
    $region12: #{lstm_sequence_forward.2} parent=1 // pred_region
      _
    $region13: #{lstm_sequence_forward.2} parent=1 // pred_fallthru
      _
    // Predicated region
    $region14: #{lstm_sequence_forward.2} parent=1 // pred_check
      _
    $region15: #{lstm_sequence_forward.2} parent=1 // pred_check_branch
      %27 = sbr.rel (0) target = $region17
    $region16: #{lstm_sequence_forward.2} parent=1 // pred_region
      %29 = dma.done [#allocation3], 4096
    $region17: #{lstm_sequence_forward.2} parent=1 // pred_fallthru
      _
    %v30 = vld [vmem:[%s0] sm:$0xf]
    %v31 = vld [vmem:[%s0 + $0x4] sm:$0xf]
    %v32 = vld [vmem:[%s0 + $0x8] sm:$0xf]
    %v33 = vld [vmem:[%s0 + $0xc] sm:$0xf]
    %v34 = vld [vmem:[%s0 + $0x10] sm:$0xf]
    %v35 = vld [vmem:[%s0 + $0x14] sm:$0xf]
    %v36 = vld [vmem:[%s0 + $0x18] sm:$0xf]
    %v37 = vld [vmem:[%s0 + $0x1c] sm:$0xf]
    %v38 = vld [vmem:[%s0 + $0x20] sm:$0xf]
    %v39 = vld [vmem:[%s0 + $0x24] sm:$0xf]
    %v40 = vld [vmem:[%s0 + $0x28] sm:$0xf]
    %v41 = vld [vmem:[%s0 + $0x2c] sm:$0xf]
    %v42 = vld [vmem:[%s0 + $0x30] sm:$0xf]
    %v43 = vld [vmem:[%s0 + $0x34] sm:$0xf]
    %v44 = vld [vmem:[%s0 + $0x38] sm:$0xf]
    %v45 = vld [vmem:[%s0 + $0x3c] sm:$0xf]
    %v46 = vld [vmem:[#allocation2] sm:$0xff]
    %v47 = vld [vmem:[#allocation2 + $0x8] sm:$0xff]
    %v48 = vld [vmem:[#allocation2 + $0x10] sm:$0xff]
    %v49 = vld [vmem:[#allocation2 + $0x18] sm:$0xff]
    %v50 = vld [vmem:[#allocation2 + $0x20] sm:$0xff]
    %v51 = vld [vmem:[#allocation2 + $0x28] sm:$0xff]
    %v52 = vld [vmem:[#allocation2 + $0x30] sm:$0xff]
    %v53 = vld [vmem:[#allocation2 + $0x38] sm:$0xff]
    %v54 = vld [vmem:[#allocation2 + $0x40] sm:$0xff]
    %v55 = vld [vmem:[#allocation2 + $0x48] sm:$0xff]
    %v56 = vld [vmem:[#allocation2 + $0x50] sm:$0xff]
    %v57 = vld [vmem:[#allocation2 + $0x58] sm:$0xff]
    %v58 = vld [vmem:[#allocation2 + $0x60] sm:$0xff]
    %v59 = vld [vmem:[#allocation2 + $0x68] sm:$0xff]
    %v60 = vld [vmem:[#allocation2 + $0x70] sm:$0xff]
    %v61 = vld [vmem:[#allocation2 + $0x78] sm:$0xff]
    %v62 = vld [vmem:[#allocation2 + $0x80] sm:$0xff]
    %v63 = vld [vmem:[#allocation2 + $0x88] sm:$0xff]
    %v64 = vld [vmem:[#allocation2 + $0x90] sm:$0xff]
    %v65 = vld [vmem:[#allocation2 + $0x98] sm:$0xff]
    %v66 = vld [vmem:[#allocation2 + $0xa0] sm:$0xff]
    %v67 = vld [vmem:[#allocation2 + $0xa8] sm:$0xff]
    %v68 = vld [vmem:[#allocation2 + $0xb0] sm:$0xff]
    %v69 = vld [vmem:[#allocation2 + $0xb8] sm:$0xff]
    %v70 = vld [vmem:[#allocation2 + $0xc0] sm:$0xff]
    %v71 = vld [vmem:[#allocation2 + $0xc8] sm:$0xff]
    %v72 = vld [vmem:[#allocation2 + $0xd0] sm:$0xff]
    %v73 = vld [vmem:[#allocation2 + $0xd8] sm:$0xff]
    %v74 = vld [vmem:[#allocation2 + $0xe0] sm:$0xff]
    %v75 = vld [vmem:[#allocation2 + $0xe8] sm:$0xff]
    %v76 = vld [vmem:[#allocation2 + $0xf0] sm:$0xff]
    %v77 = vld [vmem:[#allocation2 + $0xf8] sm:$0xff]
    %v78 = vld [vmem:[%s2] sm:$0xf]
    %v79 = vunpack.c.l.bf16 %v78
    %v81 = vperm.slane %v79, 0
    %v82 = vperm.slane %v79, 2
    %v83 = vperm.slane %v79, 4
    %v84 = vperm.slane %v79, 6
    %v89 = vperm.slane %v81, 0
    %v90 = vperm.slane %v82, 0
    %v91 = vperm.slane %v83, 0
    %v92 = vperm.slane %v84, 0
    %v109 = vunpack.c.l.b16 %v30
    %v110 = vunpack.c.l.b16 %v31
    %v111 = vunpack.c.l.b16 %v32
    %v112 = vunpack.c.l.b16 %v33
    %v113 = vunpack.c.l.b16 %v34
    %v114 = vunpack.c.l.b16 %v35
    %v115 = vunpack.c.l.b16 %v36
    %v116 = vunpack.c.l.b16 %v37
    %v117 = vunpack.c.l.b16 %v38
    %v118 = vunpack.c.l.b16 %v39
    %v119 = vunpack.c.l.b16 %v40
    %v120 = vunpack.c.l.b16 %v41
    %v121 = vunpack.c.l.b16 %v42
    %v122 = vunpack.c.l.b16 %v43
    %v123 = vunpack.c.l.b16 %v44
    %v124 = vunpack.c.l.b16 %v45
    %v125 = vpack.c.b16 %v110, %v109
    %v126 = vpack.c.b16 %v112, %v111
    %v127 = vpack.c.b16 %v114, %v113
    %v128 = vpack.c.b16 %v116, %v115
    %v129 = vpack.c.b16 %v118, %v117
    %v130 = vpack.c.b16 %v120, %v119
    %v131 = vpack.c.b16 %v122, %v121
    %v132 = vpack.c.b16 %v124, %v123
    %v173 = vunpack.c.l.b16 %v46
    %v174 = vunpack.c.h.b16 %v46
    %v175 = vunpack.c.l.b16 %v47
    %v176 = vunpack.c.h.b16 %v47
    %v177 = vunpack.c.l.b16 %v48
    %v178 = vunpack.c.h.b16 %v48
    %v179 = vunpack.c.l.b16 %v49
    %v180 = vunpack.c.h.b16 %v49
    %v181 = vunpack.c.l.b16 %v50
    %v182 = vunpack.c.h.b16 %v50
    %v183 = vunpack.c.l.b16 %v51
    %v184 = vunpack.c.h.b16 %v51
    %v185 = vunpack.c.l.b16 %v52
    %v186 = vunpack.c.h.b16 %v52
    %v187 = vunpack.c.l.b16 %v53
    %v188 = vunpack.c.h.b16 %v53
    %v189 = vunpack.c.l.b16 %v54
    %v190 = vunpack.c.h.b16 %v54
    %v191 = vunpack.c.l.b16 %v55
    %v192 = vunpack.c.h.b16 %v55
    %v193 = vunpack.c.l.b16 %v56
    %v194 = vunpack.c.h.b16 %v56
    %v195 = vunpack.c.l.b16 %v57
    %v196 = vunpack.c.h.b16 %v57
    %v197 = vunpack.c.l.b16 %v58
    %v198 = vunpack.c.h.b16 %v58
    %v199 = vunpack.c.l.b16 %v59
    %v200 = vunpack.c.h.b16 %v59
    %v201 = vunpack.c.l.b16 %v60
    %v202 = vunpack.c.h.b16 %v60
    %v203 = vunpack.c.l.b16 %v61
    %v204 = vunpack.c.h.b16 %v61
    %v205 = vunpack.c.l.b16 %v62
    %v206 = vunpack.c.h.b16 %v62
    %v207 = vunpack.c.l.b16 %v63
    %v208 = vunpack.c.h.b16 %v63
    %v209 = vunpack.c.l.b16 %v64
    %v210 = vunpack.c.h.b16 %v64
    %v211 = vunpack.c.l.b16 %v65
    %v212 = vunpack.c.h.b16 %v65
    %v213 = vunpack.c.l.b16 %v66
    %v214 = vunpack.c.h.b16 %v66
    %v215 = vunpack.c.l.b16 %v67
    %v216 = vunpack.c.h.b16 %v67
    %v217 = vunpack.c.l.b16 %v68
    %v218 = vunpack.c.h.b16 %v68
    %v219 = vunpack.c.l.b16 %v69
    %v220 = vunpack.c.h.b16 %v69
    %v221 = vunpack.c.l.b16 %v70
    %v222 = vunpack.c.h.b16 %v70
    %v223 = vunpack.c.l.b16 %v71
    %v224 = vunpack.c.h.b16 %v71
    %v225 = vunpack.c.l.b16 %v72
    %v226 = vunpack.c.h.b16 %v72
    %v227 = vunpack.c.l.b16 %v73
    %v228 = vunpack.c.h.b16 %v73
    %v229 = vunpack.c.l.b16 %v74
    %v230 = vunpack.c.h.b16 %v74
    %v231 = vunpack.c.l.b16 %v75
    %v232 = vunpack.c.h.b16 %v75
    %v233 = vunpack.c.l.b16 %v76
    %v234 = vunpack.c.h.b16 %v76
    %v235 = vunpack.c.l.b16 %v77
    %v236 = vunpack.c.h.b16 %v77
    %v237 = vpack.c.b16 %v177, %v173
    %v238 = vpack.c.b16 %v178, %v174
    %v239 = vpack.c.b16 %v179, %v175
    %v240 = vpack.c.b16 %v180, %v176
    %v241 = vpack.c.b16 %v185, %v181
    %v242 = vpack.c.b16 %v186, %v182
    %v243 = vpack.c.b16 %v187, %v183
    %v244 = vpack.c.b16 %v188, %v184
    %v245 = vpack.c.b16 %v193, %v189
    %v246 = vpack.c.b16 %v194, %v190
    %v247 = vpack.c.b16 %v195, %v191
    %v248 = vpack.c.b16 %v196, %v192
    %v249 = vpack.c.b16 %v201, %v197
    %v250 = vpack.c.b16 %v202, %v198
    %v251 = vpack.c.b16 %v203, %v199
    %v252 = vpack.c.b16 %v204, %v200
    %v253 = vpack.c.b16 %v209, %v205
    %v254 = vpack.c.b16 %v210, %v206
    %v255 = vpack.c.b16 %v211, %v207
    %v256 = vpack.c.b16 %v212, %v208
    %v257 = vpack.c.b16 %v217, %v213
    %v258 = vpack.c.b16 %v218, %v214
    %v259 = vpack.c.b16 %v219, %v215
    %v260 = vpack.c.b16 %v220, %v216
    %v261 = vpack.c.b16 %v225, %v221
    %v262 = vpack.c.b16 %v226, %v222
    %v263 = vpack.c.b16 %v227, %v223
    %v264 = vpack.c.b16 %v228, %v224
    %v265 = vpack.c.b16 %v233, %v229
    %v266 = vpack.c.b16 %v234, %v230
    %v267 = vpack.c.b16 %v235, %v231
    %v268 = vpack.c.b16 %v236, %v232
    %301 = vmatpush.bf16.msra.mxu0 %v265
    %302 = vmatpush.bf16.msra.mxu0 %v261
    %303 = vmatpush.bf16.msra.mxu0 %v257
    %304 = vmatpush.bf16.msra.mxu0 %v253
    %305 = vmatpush.bf16.msra.mxu0 %v249
    %306 = vmatpush.bf16.msra.mxu0 %v245
    %307 = vmatpush.bf16.msra.mxu0 %v241
    %308 = vmatpush.bf16.msra.mxu0 %v237
    %309 = vmatmul.bf16.gmra.mxu0 %v125
    %v310 = vpop.f32.mrf.mxu0
    %v311 = vadd.f32 %v89, %v310
    %v312 = vpop.f32.mrf.mxu0
    %v313 = vadd.f32 %v89, %v312
    %314 = vmatmul.bf16.gmra.mxu0 %v126
    %v315 = vpop.f32.mrf.mxu0
    %v316 = vadd.f32 %v89, %v315
    %v317 = vpop.f32.mrf.mxu0
    %v318 = vadd.f32 %v89, %v317
    %319 = vmatmul.bf16.gmra.mxu0 %v127
    %v320 = vpop.f32.mrf.mxu0
    %v321 = vadd.f32 %v89, %v320
    %v322 = vpop.f32.mrf.mxu0
    %v323 = vadd.f32 %v89, %v322
    %324 = vmatmul.bf16.gmra.mxu0 %v128
    %v325 = vpop.f32.mrf.mxu0
    %v326 = vadd.f32 %v89, %v325
    %v327 = vpop.f32.mrf.mxu0
    %v328 = vadd.f32 %v89, %v327
    %329 = vmatmul.bf16.gmra.mxu0 %v129
    %v330 = vpop.f32.mrf.mxu0
    %v331 = vadd.f32 %v89, %v330
    %v332 = vpop.f32.mrf.mxu0
    %v333 = vadd.f32 %v89, %v332
    %334 = vmatmul.bf16.gmra.mxu0 %v130
    %v335 = vpop.f32.mrf.mxu0
    %v336 = vadd.f32 %v89, %v335
    %v337 = vpop.f32.mrf.mxu0
    %v338 = vadd.f32 %v89, %v337
    %339 = vmatmul.bf16.gmra.mxu0 %v131
    %v340 = vpop.f32.mrf.mxu0
    %v341 = vadd.f32 %v89, %v340
    %v342 = vpop.f32.mrf.mxu0
    %v343 = vadd.f32 %v89, %v342
    %344 = vmatmul.bf16.gmra.mxu0 %v132
    %v345 = vpop.f32.mrf.mxu0
    %v346 = vadd.f32 %v89, %v345
    %v347 = vpop.f32.mrf.mxu0
    %v348 = vadd.f32 %v89, %v347
    %349 = vdwg.mxu0
    %350 = vmatpush.bf16.msra.mxu0 %v266
    %351 = vmatpush.bf16.msra.mxu0 %v262
    %352 = vmatpush.bf16.msra.mxu0 %v258
    %353 = vmatpush.bf16.msra.mxu0 %v254
    %354 = vmatpush.bf16.msra.mxu0 %v250
    %355 = vmatpush.bf16.msra.mxu0 %v246
    %356 = vmatpush.bf16.msra.mxu0 %v242
    %357 = vmatpush.bf16.msra.mxu0 %v238
    %358 = vmatmul.bf16.gmra.mxu0 %v125
    %v359 = vpop.f32.mrf.mxu0
    %v360 = vadd.f32 %v90, %v359
    %v361 = vpop.f32.mrf.mxu0
    %v362 = vadd.f32 %v90, %v361
    %363 = vmatmul.bf16.gmra.mxu0 %v126
    %v364 = vpop.f32.mrf.mxu0
    %v365 = vadd.f32 %v90, %v364
    %v366 = vpop.f32.mrf.mxu0
    %v367 = vadd.f32 %v90, %v366
    %368 = vmatmul.bf16.gmra.mxu0 %v127
    %v369 = vpop.f32.mrf.mxu0
    %v370 = vadd.f32 %v90, %v369
    %v371 = vpop.f32.mrf.mxu0
    %v372 = vadd.f32 %v90, %v371
    %373 = vmatmul.bf16.gmra.mxu0 %v128
    %v374 = vpop.f32.mrf.mxu0
    %v375 = vadd.f32 %v90, %v374
    %v376 = vpop.f32.mrf.mxu0
    %v377 = vadd.f32 %v90, %v376
    %378 = vmatmul.bf16.gmra.mxu0 %v129
    %v379 = vpop.f32.mrf.mxu0
    %v380 = vadd.f32 %v90, %v379
    %v381 = vpop.f32.mrf.mxu0
    %v382 = vadd.f32 %v90, %v381
    %383 = vmatmul.bf16.gmra.mxu0 %v130
    %v384 = vpop.f32.mrf.mxu0
    %v385 = vadd.f32 %v90, %v384
    %v386 = vpop.f32.mrf.mxu0
    %v387 = vadd.f32 %v90, %v386
    %388 = vmatmul.bf16.gmra.mxu0 %v131
    %v389 = vpop.f32.mrf.mxu0
    %v390 = vadd.f32 %v90, %v389
    %v391 = vpop.f32.mrf.mxu0
    %v392 = vadd.f32 %v90, %v391
    %393 = vmatmul.bf16.gmra.mxu0 %v132
    %v394 = vpop.f32.mrf.mxu0
    %v395 = vadd.f32 %v90, %v394
    %v396 = vpop.f32.mrf.mxu0
    %v397 = vadd.f32 %v90, %v396
    %398 = vdwg.mxu0
    %399 = vmatpush.bf16.msra.mxu0 %v267
    %400 = vmatpush.bf16.msra.mxu0 %v263
    %401 = vmatpush.bf16.msra.mxu0 %v259
    %402 = vmatpush.bf16.msra.mxu0 %v255
    %403 = vmatpush.bf16.msra.mxu0 %v251
    %404 = vmatpush.bf16.msra.mxu0 %v247
    %405 = vmatpush.bf16.msra.mxu0 %v243
    %406 = vmatpush.bf16.msra.mxu0 %v239
    %407 = vmatmul.bf16.gmra.mxu0 %v125
    %v408 = vpop.f32.mrf.mxu0
    %v409 = vadd.f32 %v91, %v408
    %v410 = vpop.f32.mrf.mxu0
    %v411 = vadd.f32 %v91, %v410
    %412 = vmatmul.bf16.gmra.mxu0 %v126
    %v413 = vpop.f32.mrf.mxu0
    %v414 = vadd.f32 %v91, %v413
    %v415 = vpop.f32.mrf.mxu0
    %v416 = vadd.f32 %v91, %v415
    %417 = vmatmul.bf16.gmra.mxu0 %v127
    %v418 = vpop.f32.mrf.mxu0
    %v419 = vadd.f32 %v91, %v418
    %v420 = vpop.f32.mrf.mxu0
    %v421 = vadd.f32 %v91, %v420
    %422 = vmatmul.bf16.gmra.mxu0 %v128
    %v423 = vpop.f32.mrf.mxu0
    %v424 = vadd.f32 %v91, %v423
    %v425 = vpop.f32.mrf.mxu0
    %v426 = vadd.f32 %v91, %v425
    %427 = vmatmul.bf16.gmra.mxu0 %v129
    %v428 = vpop.f32.mrf.mxu0
    %v429 = vadd.f32 %v91, %v428
    %v430 = vpop.f32.mrf.mxu0
    %v431 = vadd.f32 %v91, %v430
    %432 = vmatmul.bf16.gmra.mxu0 %v130
    %v433 = vpop.f32.mrf.mxu0
    %v434 = vadd.f32 %v91, %v433
    %v435 = vpop.f32.mrf.mxu0
    %v436 = vadd.f32 %v91, %v435
    %437 = vmatmul.bf16.gmra.mxu0 %v131
    %v438 = vpop.f32.mrf.mxu0
    %v439 = vadd.f32 %v91, %v438
    %v440 = vpop.f32.mrf.mxu0
    %v441 = vadd.f32 %v91, %v440
    %442 = vmatmul.bf16.gmra.mxu0 %v132
    %v443 = vpop.f32.mrf.mxu0
    %v444 = vadd.f32 %v91, %v443
    %v445 = vpop.f32.mrf.mxu0
    %v446 = vadd.f32 %v91, %v445
    %447 = vdwg.mxu0
    %448 = vmatpush.bf16.msra.mxu0 %v268
    %449 = vmatpush.bf16.msra.mxu0 %v264
    %450 = vmatpush.bf16.msra.mxu0 %v260
    %451 = vmatpush.bf16.msra.mxu0 %v256
    %452 = vmatpush.bf16.msra.mxu0 %v252
    %453 = vmatpush.bf16.msra.mxu0 %v248
    %454 = vmatpush.bf16.msra.mxu0 %v244
    %455 = vmatpush.bf16.msra.mxu0 %v240
    %456 = vmatmul.bf16.gmra.mxu0 %v125
    %v457 = vpop.f32.mrf.mxu0
    %v458 = vadd.f32 %v92, %v457
    %v459 = vpop.f32.mrf.mxu0
    %v460 = vadd.f32 %v92, %v459
    %461 = vmatmul.bf16.gmra.mxu0 %v126
    %v462 = vpop.f32.mrf.mxu0
    %v463 = vadd.f32 %v92, %v462
    %v464 = vpop.f32.mrf.mxu0
    %v465 = vadd.f32 %v92, %v464
    %466 = vmatmul.bf16.gmra.mxu0 %v127
    %v467 = vpop.f32.mrf.mxu0
    %v468 = vadd.f32 %v92, %v467
    %v469 = vpop.f32.mrf.mxu0
    %v470 = vadd.f32 %v92, %v469
    %471 = vmatmul.bf16.gmra.mxu0 %v128
    %v472 = vpop.f32.mrf.mxu0
    %v473 = vadd.f32 %v92, %v472
    %v474 = vpop.f32.mrf.mxu0
    %v475 = vadd.f32 %v92, %v474
    %476 = vmatmul.bf16.gmra.mxu0 %v129
    %v477 = vpop.f32.mrf.mxu0
    %v478 = vadd.f32 %v92, %v477
    %v479 = vpop.f32.mrf.mxu0
    %v480 = vadd.f32 %v92, %v479
    %481 = vmatmul.bf16.gmra.mxu0 %v130
    %v482 = vpop.f32.mrf.mxu0
    %v483 = vadd.f32 %v92, %v482
    %v484 = vpop.f32.mrf.mxu0
    %v485 = vadd.f32 %v92, %v484
    %486 = vmatmul.bf16.gmra.mxu0 %v131
    %v487 = vpop.f32.mrf.mxu0
    %v488 = vadd.f32 %v92, %v487
    %v489 = vpop.f32.mrf.mxu0
    %v490 = vadd.f32 %v92, %v489
    %491 = vmatmul.bf16.gmra.mxu0 %v132
    %v492 = vpop.f32.mrf.mxu0
    %v493 = vadd.f32 %v92, %v492
    %v494 = vpop.f32.mrf.mxu0
    %v495 = vadd.f32 %v92, %v494
    %496 = vdwg.mxu0
    %497 = vst [vmem:[%s3] sm:$0xff] %v311
    %498 = vst [vmem:[%s3 + $0x8] sm:$0xff] %v360
    %499 = vst [vmem:[%s3 + $0x10] sm:$0xff] %v409
    %500 = vst [vmem:[%s3 + $0x18] sm:$0xff] %v458
    %501 = vst [vmem:[%s3 + $0x20] sm:$0xff] %v313
    %502 = vst [vmem:[%s3 + $0x28] sm:$0xff] %v362
    %503 = vst [vmem:[%s3 + $0x30] sm:$0xff] %v411
    %504 = vst [vmem:[%s3 + $0x38] sm:$0xff] %v460
    %505 = vst [vmem:[%s3 + $0x40] sm:$0xff] %v316
    %506 = vst [vmem:[%s3 + $0x48] sm:$0xff] %v365
    %507 = vst [vmem:[%s3 + $0x50] sm:$0xff] %v414
    %508 = vst [vmem:[%s3 + $0x58] sm:$0xff] %v463
    %509 = vst [vmem:[%s3 + $0x60] sm:$0xff] %v318
    %510 = vst [vmem:[%s3 + $0x68] sm:$0xff] %v367
    %511 = vst [vmem:[%s3 + $0x70] sm:$0xff] %v416
    %512 = vst [vmem:[%s3 + $0x78] sm:$0xff] %v465
    %513 = vst [vmem:[%s3 + $0x80] sm:$0xff] %v321
    %514 = vst [vmem:[%s3 + $0x88] sm:$0xff] %v370
    %515 = vst [vmem:[%s3 + $0x90] sm:$0xff] %v419
    %516 = vst [vmem:[%s3 + $0x98] sm:$0xff] %v468
    %517 = vst [vmem:[%s3 + $0xa0] sm:$0xff] %v323
    %518 = vst [vmem:[%s3 + $0xa8] sm:$0xff] %v372
    %519 = vst [vmem:[%s3 + $0xb0] sm:$0xff] %v421
    %520 = vst [vmem:[%s3 + $0xb8] sm:$0xff] %v470
    %521 = vst [vmem:[%s3 + $0xc0] sm:$0xff] %v326
    %522 = vst [vmem:[%s3 + $0xc8] sm:$0xff] %v375
    %523 = vst [vmem:[%s3 + $0xd0] sm:$0xff] %v424
    %524 = vst [vmem:[%s3 + $0xd8] sm:$0xff] %v473
    %525 = vst [vmem:[%s3 + $0xe0] sm:$0xff] %v328
    %526 = vst [vmem:[%s3 + $0xe8] sm:$0xff] %v377
    %527 = vst [vmem:[%s3 + $0xf0] sm:$0xff] %v426
    %528 = vst [vmem:[%s3 + $0xf8] sm:$0xff] %v475
    %529 = vst [vmem:[%s3 + $0x100] sm:$0xff] %v331
    %530 = vst [vmem:[%s3 + $0x108] sm:$0xff] %v380
    %531 = vst [vmem:[%s3 + $0x110] sm:$0xff] %v429
    %532 = vst [vmem:[%s3 + $0x118] sm:$0xff] %v478
    %533 = vst [vmem:[%s3 + $0x120] sm:$0xff] %v333
    %534 = vst [vmem:[%s3 + $0x128] sm:$0xff] %v382
    %535 = vst [vmem:[%s3 + $0x130] sm:$0xff] %v431
    %536 = vst [vmem:[%s3 + $0x138] sm:$0xff] %v480
    %537 = vst [vmem:[%s3 + $0x140] sm:$0xff] %v336
    %538 = vst [vmem:[%s3 + $0x148] sm:$0xff] %v385
    %539 = vst [vmem:[%s3 + $0x150] sm:$0xff] %v434
    %540 = vst [vmem:[%s3 + $0x158] sm:$0xff] %v483
    %541 = vst [vmem:[%s3 + $0x160] sm:$0xff] %v338
    %542 = vst [vmem:[%s3 + $0x168] sm:$0xff] %v387
    %543 = vst [vmem:[%s3 + $0x170] sm:$0xff] %v436
    %544 = vst [vmem:[%s3 + $0x178] sm:$0xff] %v485
    %545 = vst [vmem:[%s3 + $0x180] sm:$0xff] %v341
    %546 = vst [vmem:[%s3 + $0x188] sm:$0xff] %v390
    %547 = vst [vmem:[%s3 + $0x190] sm:$0xff] %v439
    %548 = vst [vmem:[%s3 + $0x198] sm:$0xff] %v488
    %549 = vst [vmem:[%s3 + $0x1a0] sm:$0xff] %v343
    %550 = vst [vmem:[%s3 + $0x1a8] sm:$0xff] %v392
    %551 = vst [vmem:[%s3 + $0x1b0] sm:$0xff] %v441
    %552 = vst [vmem:[%s3 + $0x1b8] sm:$0xff] %v490
    %553 = vst [vmem:[%s3 + $0x1c0] sm:$0xff] %v346
    %554 = vst [vmem:[%s3 + $0x1c8] sm:$0xff] %v395
    %555 = vst [vmem:[%s3 + $0x1d0] sm:$0xff] %v444
    %556 = vst [vmem:[%s3 + $0x1d8] sm:$0xff] %v493
    %557 = vst [vmem:[%s3 + $0x1e0] sm:$0xff] %v348
    %558 = vst [vmem:[%s3 + $0x1e8] sm:$0xff] %v397
    %559 = vst [vmem:[%s3 + $0x1f0] sm:$0xff] %v446
    %560 = vst [vmem:[%s3 + $0x1f8] sm:$0xff] %v495
    // Predicated region
    $region18: #{lstm_sequence_forward.2} parent=1 // pred_check
      _
    $region19: #{lstm_sequence_forward.2} parent=1 // pred_check_branch
      %562 = sbr.rel (0) target = $region21
    $region20: #{lstm_sequence_forward.2} parent=1 // pred_region
      _
    $region21: #{lstm_sequence_forward.2} parent=1 // pred_fallthru
      _
    // Predicated region
    $region22: #{lstm_sequence_forward.2} parent=1 // pred_check
      _
    $region23: #{lstm_sequence_forward.2} parent=1 // pred_check_branch
      %564 = sbr.rel (0) target = $region25
    $region24: #{lstm_sequence_forward.2} parent=1 // pred_region
      _
    $region25: #{lstm_sequence_forward.2} parent=1 // pred_fallthru
      _
    %565 = vsyncpa [#allocation3], 1

// kernel: lstm_sequence_forward.3
$region0: #{lstm_sequence_forward.3}
  #allocation0 [shape = 'u32[]', space=smem, size = 0x4, offset = 0x4, fixed_abs, tag = 'smem constant byte address 0x4 - core index']
  #allocation1 [shape = 'u32[72,128]{1,0:T(1,128)}', space=vmem, size = 0x9000, scoped, tag = 'internal scratch']
  #allocation2 [shape = 'bf16[16,128]{1,0:T(8,128)(2,1)}', space=vmem, size = 0x1000, scoped, tag = 'scratch operand']
  #allocation3 [shape = 'f32[16,128]{1,0:T(8,128)}', space=vmem, size = 0x2000, scoped, tag = 'scratch operand']
  %s0 = inlined_call_operand.vmem [shape: f32[8,16,512], index: 0, kind: input, shape index: {}]
  %s1 = inlined_call_operand.vmem [shape: bf16[16,128], index: 1, kind: input, shape index: {}]
  %s2 = inlined_call_operand.vmem [shape: bf16[16,128], index: 2, kind: input, shape index: {}]
  %s3 = inlined_call_operand.hbm [shape: bf16[128,512], index: 3, kind: input, shape index: {}]
  %s4 = inlined_call_operand.vmem [shape: bf16[8,16,128], index: 4, kind: output, shape index: {0}]
  %s5 = inlined_call_operand.vmem [shape: bf16[8,16,128], index: 5, kind: output, shape index: {1}]
  %6 = xla_tuple %s4, %s5
  %s7 = sld [smem:[#allocation0]]
  $region42: #{lstm_sequence_forward.3} parent=0
    _
  %s9 = ssub.s32 1, %s7
  %s10 = scalar_select 0, %s9, %s7
  $region1: #{lstm_sequence_forward.3} parent=0
    #allocation4 [shape = 'u8[131072]{0}', space=vmem, size = 0x20000, scoped, tag = 'input window, operand 3, single buffered']
    #allocation5 [shape = 's32[1]{0}', space=sflag, size = 0x4, scoped, tag = 'scoped memory for lstm_sequence_forward.3']
    %11 = vsyncpa [#allocation5], 0
    // Predicated region
    $region2: #{lstm_sequence_forward.3} parent=1 // pred_check
      _
    $region3: #{lstm_sequence_forward.3} parent=1 // pred_check_branch
      %13 = sbr.rel (0) target = $region5
    $region4: #{lstm_sequence_forward.3} parent=1 // pred_region
      _
    $region5: #{lstm_sequence_forward.3} parent=1 // pred_fallthru
      _
    // Predicated region
    $region6: #{lstm_sequence_forward.3} parent=1 // pred_check
      _
    $region7: #{lstm_sequence_forward.3} parent=1 // pred_check_branch
      %15 = sbr.rel (0) target = $region9
    $region8: #{lstm_sequence_forward.3} parent=1 // pred_region
      _
    $region9: #{lstm_sequence_forward.3} parent=1 // pred_fallthru
      _
    // Predicated region
    $region10: #{lstm_sequence_forward.3} parent=1 // pred_check
      _
    $region11: #{lstm_sequence_forward.3} parent=1 // pred_check_branch
      %17 = sbr.rel (0) target = $region13
    $region12: #{lstm_sequence_forward.3} parent=1 // pred_region
      _
    $region13: #{lstm_sequence_forward.3} parent=1 // pred_fallthru
      _
    // Predicated region
    $region14: #{lstm_sequence_forward.3} parent=1 // pred_check
      _
    $region15: #{lstm_sequence_forward.3} parent=1 // pred_check_branch
      %19 = sbr.rel (0) target = $region17
    $region16: #{lstm_sequence_forward.3} parent=1 // pred_region
      %21 = vsyncadd [#allocation5], 0
      %s22 = sshll.u32 %s3, 4
      %s23 = int_to_ptr.hbm [resolvable:$true] %s22
      %s24 = sshll.u32 [#allocation4], 4
      %s25 = int_to_ptr.vmem [resolvable:$true] %s24
      %30 = dma.hbm_to_vmem [thread:$0]  %s23, 4096, %s25, [#allocation5], 256, 256, 16
    $region17: #{lstm_sequence_forward.3} parent=1 // pred_fallthru
      _
    // Predicated region
    $region18: #{lstm_sequence_forward.3} parent=1 // pred_check
      _
    $region19: #{lstm_sequence_forward.3} parent=1 // pred_check_branch
      %32 = sbr.rel (0) target = $region21
    $region20: #{lstm_sequence_forward.3} parent=1 // pred_region
      %34 = dma.done [#allocation5], 4096
    $region21: #{lstm_sequence_forward.3} parent=1 // pred_fallthru
      _
    %p35 = scmp.eq.s32.totalorder 0, 0
    // Predicated region
    $region22: #{lstm_sequence_forward.3} parent=1 // pred_check
      %p36 = pneg %p35
    $region23: #{lstm_sequence_forward.3} parent=1 // pred_check_branch
      %38 = sbr.rel (%p36) target = $region25
    $region24: #{lstm_sequence_forward.3} parent=1 // pred_region
      %v39 = vld [vmem:[%s1] sm:$0xf]
      %v40 = vld [vmem:[%s1 + $0x4] sm:$0xf]
      %41 = vst [vmem:[#allocation2] sm:$0xf] %v39
      %42 = vst [vmem:[#allocation2 + $0x4] sm:$0xf] %v40
      %v43 = vld [vmem:[%s2] sm:$0xf]
      %v44 = vld [vmem:[%s2 + $0x4] sm:$0xf]
      %v45 = vunpack.c.l.bf16 %v43
      %v46 = vunpack.c.l.bf16 %v44
      %47 = vst [vmem:[#allocation3] sm:$0xff] %v45
      %48 = vst [vmem:[#allocation3 + $0x8] sm:$0xff] %v46
    $region25: #{lstm_sequence_forward.3} parent=1 // pred_fallthru
      _
    %v49 = vld [vmem:[%s0] sm:$0xff]
    %v50 = vld [vmem:[%s0 + $0x8] sm:$0xff]
    %v51 = vld [vmem:[%s0 + $0x10] sm:$0xff]
    %v52 = vld [vmem:[%s0 + $0x18] sm:$0xff]
    %v53 = vld [vmem:[%s0 + $0x20] sm:$0xff]
    %v54 = vld [vmem:[%s0 + $0x28] sm:$0xff]
    %v55 = vld [vmem:[%s0 + $0x30] sm:$0xff]
    %v56 = vld [vmem:[%s0 + $0x38] sm:$0xff]
    %v57 = vld [vmem:[#allocation2] sm:$0xf]
    %v58 = vld [vmem:[#allocation2 + $0x4] sm:$0xf]
    %v59 = vld [vmem:[#allocation4] sm:$0xff]
    %v60 = vld [vmem:[#allocation4 + $0x8] sm:$0xff]
    %v61 = vld [vmem:[#allocation4 + $0x10] sm:$0xff]
    %v62 = vld [vmem:[#allocation4 + $0x18] sm:$0xff]
    %v63 = vld [vmem:[#allocation4 + $0x20] sm:$0xff]
    %v64 = vld [vmem:[#allocation4 + $0x28] sm:$0xff]
    %v65 = vld [vmem:[#allocation4 + $0x30] sm:$0xff]
    %v66 = vld [vmem:[#allocation4 + $0x38] sm:$0xff]
    %v67 = vld [vmem:[#allocation4 + $0x40] sm:$0xff]
    %v68 = vld [vmem:[#allocation4 + $0x48] sm:$0xff]
    %v69 = vld [vmem:[#allocation4 + $0x50] sm:$0xff]
    %v70 = vld [vmem:[#allocation4 + $0x58] sm:$0xff]
    %v71 = vld [vmem:[#allocation4 + $0x60] sm:$0xff]
    %v72 = vld [vmem:[#allocation4 + $0x68] sm:$0xff]
    %v73 = vld [vmem:[#allocation4 + $0x70] sm:$0xff]
    %v74 = vld [vmem:[#allocation4 + $0x78] sm:$0xff]
    %v75 = vld [vmem:[#allocation4 + $0x80] sm:$0xff]
    %v76 = vld [vmem:[#allocation4 + $0x88] sm:$0xff]
    %v77 = vld [vmem:[#allocation4 + $0x90] sm:$0xff]
    %v78 = vld [vmem:[#allocation4 + $0x98] sm:$0xff]
    %v79 = vld [vmem:[#allocation4 + $0xa0] sm:$0xff]
    %v80 = vld [vmem:[#allocation4 + $0xa8] sm:$0xff]
    %v81 = vld [vmem:[#allocation4 + $0xb0] sm:$0xff]
    %v82 = vld [vmem:[#allocation4 + $0xb8] sm:$0xff]
    %v83 = vld [vmem:[#allocation4 + $0xc0] sm:$0xff]
    %v84 = vld [vmem:[#allocation4 + $0xc8] sm:$0xff]
    %v85 = vld [vmem:[#allocation4 + $0xd0] sm:$0xff]
    %v86 = vld [vmem:[#allocation4 + $0xd8] sm:$0xff]
    %v87 = vld [vmem:[#allocation4 + $0xe0] sm:$0xff]
    %v88 = vld [vmem:[#allocation4 + $0xe8] sm:$0xff]
    %v89 = vld [vmem:[#allocation4 + $0xf0] sm:$0xff]
    %v90 = vld [vmem:[#allocation4 + $0xf8] sm:$0xff]
    %v93 = vunpack.c.l.b16 %v57
    %v94 = vunpack.c.l.b16 %v58
    %v95 = vpack.c.b16 %v94, %v93
    %v129 = vunpack.c.l.b16 %v59
    %v130 = vunpack.c.h.b16 %v59
    %v131 = vunpack.c.l.b16 %v60
    %v132 = vunpack.c.h.b16 %v60
    %v133 = vunpack.c.l.b16 %v61
    %v134 = vunpack.c.h.b16 %v61
    %v135 = vunpack.c.l.b16 %v62
    %v136 = vunpack.c.h.b16 %v62
    %v137 = vunpack.c.l.b16 %v63
    %v138 = vunpack.c.h.b16 %v63
    %v139 = vunpack.c.l.b16 %v64
    %v140 = vunpack.c.h.b16 %v64
    %v141 = vunpack.c.l.b16 %v65
    %v142 = vunpack.c.h.b16 %v65
    %v143 = vunpack.c.l.b16 %v66
    %v144 = vunpack.c.h.b16 %v66
    %v145 = vunpack.c.l.b16 %v67
    %v146 = vunpack.c.h.b16 %v67
    %v147 = vunpack.c.l.b16 %v68
    %v148 = vunpack.c.h.b16 %v68
    %v149 = vunpack.c.l.b16 %v69
    %v150 = vunpack.c.h.b16 %v69
    %v151 = vunpack.c.l.b16 %v70
    %v152 = vunpack.c.h.b16 %v70
    %v153 = vunpack.c.l.b16 %v71
    %v154 = vunpack.c.h.b16 %v71
    %v155 = vunpack.c.l.b16 %v72
    %v156 = vunpack.c.h.b16 %v72
    %v157 = vunpack.c.l.b16 %v73
    %v158 = vunpack.c.h.b16 %v73
    %v159 = vunpack.c.l.b16 %v74
    %v160 = vunpack.c.h.b16 %v74
    %v161 = vunpack.c.l.b16 %v75
    %v162 = vunpack.c.h.b16 %v75
    %v163 = vunpack.c.l.b16 %v76
    %v164 = vunpack.c.h.b16 %v76
    %v165 = vunpack.c.l.b16 %v77
    %v166 = vunpack.c.h.b16 %v77
    %v167 = vunpack.c.l.b16 %v78
    %v168 = vunpack.c.h.b16 %v78
    %v169 = vunpack.c.l.b16 %v79
    %v170 = vunpack.c.h.b16 %v79
    %v171 = vunpack.c.l.b16 %v80
    %v172 = vunpack.c.h.b16 %v80
    %v173 = vunpack.c.l.b16 %v81
    %v174 = vunpack.c.h.b16 %v81
    %v175 = vunpack.c.l.b16 %v82
    %v176 = vunpack.c.h.b16 %v82
    %v177 = vunpack.c.l.b16 %v83
    %v178 = vunpack.c.h.b16 %v83
    %v179 = vunpack.c.l.b16 %v84
    %v180 = vunpack.c.h.b16 %v84
    %v181 = vunpack.c.l.b16 %v85
    %v182 = vunpack.c.h.b16 %v85
    %v183 = vunpack.c.l.b16 %v86
    %v184 = vunpack.c.h.b16 %v86
    %v185 = vunpack.c.l.b16 %v87
    %v186 = vunpack.c.h.b16 %v87
    %v187 = vunpack.c.l.b16 %v88
    %v188 = vunpack.c.h.b16 %v88
    %v189 = vunpack.c.l.b16 %v89
    %v190 = vunpack.c.h.b16 %v89
    %v191 = vunpack.c.l.b16 %v90
    %v192 = vunpack.c.h.b16 %v90
    %v193 = vpack.c.b16 %v133, %v129
    %v194 = vpack.c.b16 %v134, %v130
    %v195 = vpack.c.b16 %v135, %v131
    %v196 = vpack.c.b16 %v136, %v132
    %v197 = vpack.c.b16 %v141, %v137
    %v198 = vpack.c.b16 %v142, %v138
    %v199 = vpack.c.b16 %v143, %v139
    %v200 = vpack.c.b16 %v144, %v140
    %v201 = vpack.c.b16 %v149, %v145
    %v202 = vpack.c.b16 %v150, %v146
    %v203 = vpack.c.b16 %v151, %v147
    %v204 = vpack.c.b16 %v152, %v148
    %v205 = vpack.c.b16 %v157, %v153
    %v206 = vpack.c.b16 %v158, %v154
    %v207 = vpack.c.b16 %v159, %v155
    %v208 = vpack.c.b16 %v160, %v156
    %v209 = vpack.c.b16 %v165, %v161
    %v210 = vpack.c.b16 %v166, %v162
    %v211 = vpack.c.b16 %v167, %v163
    %v212 = vpack.c.b16 %v168, %v164
    %v213 = vpack.c.b16 %v173, %v169
    %v214 = vpack.c.b16 %v174, %v170
    %v215 = vpack.c.b16 %v175, %v171
    %v216 = vpack.c.b16 %v176, %v172
    %v217 = vpack.c.b16 %v181, %v177
    %v218 = vpack.c.b16 %v182, %v178
    %v219 = vpack.c.b16 %v183, %v179
    %v220 = vpack.c.b16 %v184, %v180
    %v221 = vpack.c.b16 %v189, %v185
    %v222 = vpack.c.b16 %v190, %v186
    %v223 = vpack.c.b16 %v191, %v187
    %v224 = vpack.c.b16 %v192, %v188
    %257 = vmatpush.bf16.msra.mxu0 %v221
    %258 = vmatpush.bf16.msra.mxu0 %v217
    %259 = vmatpush.bf16.msra.mxu0 %v213
    %260 = vmatpush.bf16.msra.mxu0 %v209
    %261 = vmatpush.bf16.msra.mxu0 %v205
    %262 = vmatpush.bf16.msra.mxu0 %v201
    %263 = vmatpush.bf16.msra.mxu0 %v197
    %264 = vmatpush.bf16.msra.mxu0 %v193
    %265 = vmatmul.bf16.gmra.mxu0 %v95
    %v266 = vpop.f32.mrf.mxu0
    %v267 = vadd.f32 0.0, %v266
    %v268 = vpop.f32.mrf.mxu0
    %v269 = vadd.f32 0.0, %v268
    %270 = vdwg.mxu0
    %271 = vmatpush.bf16.msra.mxu0 %v222
    %272 = vmatpush.bf16.msra.mxu0 %v218
    %273 = vmatpush.bf16.msra.mxu0 %v214
    %274 = vmatpush.bf16.msra.mxu0 %v210
    %275 = vmatpush.bf16.msra.mxu0 %v206
    %276 = vmatpush.bf16.msra.mxu0 %v202
    %277 = vmatpush.bf16.msra.mxu0 %v198
    %278 = vmatpush.bf16.msra.mxu0 %v194
    %279 = vmatmul.bf16.gmra.mxu0 %v95
    %v280 = vpop.f32.mrf.mxu0
    %v281 = vadd.f32 0.0, %v280
    %v282 = vpop.f32.mrf.mxu0
    %v283 = vadd.f32 0.0, %v282
    %284 = vdwg.mxu0
    %285 = vmatpush.bf16.msra.mxu0 %v223
    %286 = vmatpush.bf16.msra.mxu0 %v219
    %287 = vmatpush.bf16.msra.mxu0 %v215
    %288 = vmatpush.bf16.msra.mxu0 %v211
    %289 = vmatpush.bf16.msra.mxu0 %v207
    %290 = vmatpush.bf16.msra.mxu0 %v203
    %291 = vmatpush.bf16.msra.mxu0 %v199
    %292 = vmatpush.bf16.msra.mxu0 %v195
    %293 = vmatmul.bf16.gmra.mxu0 %v95
    %v294 = vpop.f32.mrf.mxu0
    %v295 = vadd.f32 0.0, %v294
    %v296 = vpop.f32.mrf.mxu0
    %v297 = vadd.f32 0.0, %v296
    %298 = vdwg.mxu0
    %299 = vmatpush.bf16.msra.mxu0 %v224
    %300 = vmatpush.bf16.msra.mxu0 %v220
    %301 = vmatpush.bf16.msra.mxu0 %v216
    %302 = vmatpush.bf16.msra.mxu0 %v212
    %303 = vmatpush.bf16.msra.mxu0 %v208
    %304 = vmatpush.bf16.msra.mxu0 %v204
    %305 = vmatpush.bf16.msra.mxu0 %v200
    %306 = vmatpush.bf16.msra.mxu0 %v196
    %307 = vmatmul.bf16.gmra.mxu0 %v95
    %v308 = vpop.f32.mrf.mxu0
    %v309 = vadd.f32 0.0, %v308
    %v310 = vpop.f32.mrf.mxu0
    %v311 = vadd.f32 0.0, %v310
    %312 = vdwg.mxu0
    %v313 = vadd.f32 %v49, %v267
    %v314 = vadd.f32 %v50, %v281
    %v315 = vadd.f32 %v51, %v295
    %v316 = vadd.f32 %v52, %v309
    %v317 = vadd.f32 %v53, %v269
    %v318 = vadd.f32 %v54, %v283
    %v319 = vadd.f32 %v55, %v297
    %v320 = vadd.f32 %v56, %v311
    %v321 = vxor.u32 %v313, 2147483648
    %v322 = vxor.u32 %v314, 2147483648
    %v323 = vxor.u32 %v315, 2147483648
    %v324 = vxor.u32 %v317, 2147483648
    %v325 = vxor.u32 %v318, 2147483648
    %v326 = vxor.u32 %v319, 2147483648
    %v327 = vmul.f32 %v321, 1.442695
    %v328 = vpow.pop %v327
    %v329 = vmul.f32 %v322, 1.442695
    %v330 = vpow.pop %v329
    %v331 = vmul.f32 %v323, 1.442695
    %v332 = vpow.pop %v331
    %v333 = vmul.f32 %v324, 1.442695
    %v334 = vpow.pop %v333
    %v335 = vmul.f32 %v325, 1.442695
    %v336 = vpow.pop %v335
    %v337 = vmul.f32 %v326, 1.442695
    %v338 = vpow.pop %v337
    %v339 = vadd.f32 %v328, 1.0
    %v340 = vadd.f32 %v330, 1.0
    %v341 = vadd.f32 %v332, 1.0
    %v342 = vadd.f32 %v334, 1.0
    %v343 = vadd.f32 %v336, 1.0
    %v344 = vadd.f32 %v338, 1.0
    %v345 = vrcp.pop %v339
    %v346 = vmul.f32 %v339, %v345
    %v347 = vsub.f32 1.0, %v346
    %v348 = vmul.f32 %v345, %v347
    %v349 = vadd.f32 %v345, %v348
    %vm350 = vweird.f32 %v339
    %vm351 = vweird.f32 %v345
    %vm352 = vmor %vm350, %vm351
    %v353 = vsel %vm352, %v345, %v349
    %v354 = vand.u32 2147483647, %v339
    %vm355 = vcmp.eq.f32.partialorder %v354, 8.507059e+37
    %v356 = vand.u32 %v339, 2147483648
    %v357 = vor.u32 1.1754944e-38, %v356
    %v358 = vsel %vm355, %v357, %v353
    %v359 = vmul.f32 1.0, %v358
    %v360 = vrcp.pop %v340
    %v361 = vmul.f32 %v340, %v360
    %v362 = vsub.f32 1.0, %v361
    %v363 = vmul.f32 %v360, %v362
    %v364 = vadd.f32 %v360, %v363
    %vm365 = vweird.f32 %v340
    %vm366 = vweird.f32 %v360
    %vm367 = vmor %vm365, %vm366
    %v368 = vsel %vm367, %v360, %v364
    %v369 = vand.u32 2147483647, %v340
    %vm370 = vcmp.eq.f32.partialorder %v369, 8.507059e+37
    %v371 = vand.u32 %v340, 2147483648
    %v372 = vor.u32 1.1754944e-38, %v371
    %v373 = vsel %vm370, %v372, %v368
    %v374 = vmul.f32 1.0, %v373
    %v375 = vrcp.pop %v341
    %v376 = vmul.f32 %v341, %v375
    %v377 = vsub.f32 1.0, %v376
    %v378 = vmul.f32 %v375, %v377
    %v379 = vadd.f32 %v375, %v378
    %vm380 = vweird.f32 %v341
    %vm381 = vweird.f32 %v375
    %vm382 = vmor %vm380, %vm381
    %v383 = vsel %vm382, %v375, %v379
    %v384 = vand.u32 2147483647, %v341
    %vm385 = vcmp.eq.f32.partialorder %v384, 8.507059e+37
    %v386 = vand.u32 %v341, 2147483648
    %v387 = vor.u32 1.1754944e-38, %v386
    %v388 = vsel %vm385, %v387, %v383
    %v389 = vmul.f32 1.0, %v388
    %v390 = vrcp.pop %v342
    %v391 = vmul.f32 %v342, %v390
    %v392 = vsub.f32 1.0, %v391
    %v393 = vmul.f32 %v390, %v392
    %v394 = vadd.f32 %v390, %v393
    %vm395 = vweird.f32 %v342
    %vm396 = vweird.f32 %v390
    %vm397 = vmor %vm395, %vm396
    %v398 = vsel %vm397, %v390, %v394
    %v399 = vand.u32 2147483647, %v342
    %vm400 = vcmp.eq.f32.partialorder %v399, 8.507059e+37
    %v401 = vand.u32 %v342, 2147483648
    %v402 = vor.u32 1.1754944e-38, %v401
    %v403 = vsel %vm400, %v402, %v398
    %v404 = vmul.f32 1.0, %v403
    %v405 = vrcp.pop %v343
    %v406 = vmul.f32 %v343, %v405
    %v407 = vsub.f32 1.0, %v406
    %v408 = vmul.f32 %v405, %v407
    %v409 = vadd.f32 %v405, %v408
    %vm410 = vweird.f32 %v343
    %vm411 = vweird.f32 %v405
    %vm412 = vmor %vm410, %vm411
    %v413 = vsel %vm412, %v405, %v409
    %v414 = vand.u32 2147483647, %v343
    %vm415 = vcmp.eq.f32.partialorder %v414, 8.507059e+37
    %v416 = vand.u32 %v343, 2147483648
    %v417 = vor.u32 1.1754944e-38, %v416
    %v418 = vsel %vm415, %v417, %v413
    %v419 = vmul.f32 1.0, %v418
    %v420 = vrcp.pop %v344
    %v421 = vmul.f32 %v344, %v420
    %v422 = vsub.f32 1.0, %v421
    %v423 = vmul.f32 %v420, %v422
    %v424 = vadd.f32 %v420, %v423
    %vm425 = vweird.f32 %v344
    %vm426 = vweird.f32 %v420
    %vm427 = vmor %vm425, %vm426
    %v428 = vsel %vm427, %v420, %v424
    %v429 = vand.u32 2147483647, %v344
    %vm430 = vcmp.eq.f32.partialorder %v429, 8.507059e+37
    %v431 = vand.u32 %v344, 2147483648
    %v432 = vor.u32 1.1754944e-38, %v431
    %v433 = vsel %vm430, %v432, %v428
    %v434 = vmul.f32 1.0, %v433
    %v435 = vtanh.pop %v316
    %v436 = vtanh.pop %v320
    %v437 = vld [vmem:[#allocation3] sm:$0xff]
    %v438 = vld [vmem:[#allocation3 + $0x8] sm:$0xff]
    %v439 = vmul.f32 %v374, %v437
    %v440 = vmul.f32 %v419, %v438
    %v441 = vmul.f32 %v359, %v435
    %v442 = vmul.f32 %v404, %v436
    %v443 = vadd.f32 %v439, %v441
    %v444 = vadd.f32 %v440, %v442
    %v445 = vtanh.pop %v443
    %v446 = vtanh.pop %v444
    %v447 = vmul.f32 %v389, %v445
    %v448 = vmul.f32 %v434, %v446
    %449 = vst [vmem:[#allocation3] sm:$0xff] %v443
    %450 = vst [vmem:[#allocation3 + $0x8] sm:$0xff] %v444
    %v451 = vpack.c.bf16 %v447, %v447
    %v452 = vpack.c.bf16 %v448, %v448
    %453 = vst [vmem:[#allocation2] sm:$0xf] %v451
    %454 = vst [vmem:[#allocation2 + $0x4] sm:$0xf] %v452
    %455 = vst [vmem:[%s4] sm:$0xf] %v451
    %456 = vst [vmem:[%s4 + $0x4] sm:$0xf] %v452
    %v457 = vpack.c.bf16 %v443, %v443
    %v458 = vpack.c.bf16 %v444, %v444
    %459 = vst [vmem:[%s5] sm:$0xf] %v457
    %460 = vst [vmem:[%s5 + $0x4] sm:$0xf] %v458
    %s461 = scalar_lea.vmem %s0, 64
    %v462 = vld [vmem:[%s461] sm:$0xff]
    %v463 = vld [vmem:[%s461 + $0x8] sm:$0xff]
    %v464 = vld [vmem:[%s461 + $0x10] sm:$0xff]
    %v465 = vld [vmem:[%s461 + $0x18] sm:$0xff]
    %v466 = vld [vmem:[%s461 + $0x20] sm:$0xff]
    %v467 = vld [vmem:[%s461 + $0x28] sm:$0xff]
    %v468 = vld [vmem:[%s461 + $0x30] sm:$0xff]
    %v469 = vld [vmem:[%s461 + $0x38] sm:$0xff]
    %v470 = vld [vmem:[#allocation2] sm:$0xf]
    %v471 = vld [vmem:[#allocation2 + $0x4] sm:$0xf]
    %v472 = vld [vmem:[#allocation4] sm:$0xff]
    %v473 = vld [vmem:[#allocation4 + $0x8] sm:$0xff]
    %v474 = vld [vmem:[#allocation4 + $0x10] sm:$0xff]
    %v475 = vld [vmem:[#allocation4 + $0x18] sm:$0xff]
    %v476 = vld [vmem:[#allocation4 + $0x20] sm:$0xff]
    %v477 = vld [vmem:[#allocation4 + $0x28] sm:$0xff]
    %v478 = vld [vmem:[#allocation4 + $0x30] sm:$0xff]
    %v479 = vld [vmem:[#allocation4 + $0x38] sm:$0xff]
    %v480 = vld [vmem:[#allocation4 + $0x40] sm:$0xff]
    %v481 = vld [vmem:[#allocation4 + $0x48] sm:$0xff]
    %v482 = vld [vmem:[#allocation4 + $0x50] sm:$0xff]
    %v483 = vld [vmem:[#allocation4 + $0x58] sm:$0xff]
    %v484 = vld [vmem:[#allocation4 + $0x60] sm:$0xff]
    %v485 = vld [vmem:[#allocation4 + $0x68] sm:$0xff]
    %v486 = vld [vmem:[#allocation4 + $0x70] sm:$0xff]
    %v487 = vld [vmem:[#allocation4 + $0x78] sm:$0xff]
    %v488 = vld [vmem:[#allocation4 + $0x80] sm:$0xff]
    %v489 = vld [vmem:[#allocation4 + $0x88] sm:$0xff]
    %v490 = vld [vmem:[#allocation4 + $0x90] sm:$0xff]
    %v491 = vld [vmem:[#allocation4 + $0x98] sm:$0xff]
    %v492 = vld [vmem:[#allocation4 + $0xa0] sm:$0xff]
    %v493 = vld [vmem:[#allocation4 + $0xa8] sm:$0xff]
    %v494 = vld [vmem:[#allocation4 + $0xb0] sm:$0xff]
    %v495 = vld [vmem:[#allocation4 + $0xb8] sm:$0xff]
    %v496 = vld [vmem:[#allocation4 + $0xc0] sm:$0xff]
    %v497 = vld [vmem:[#allocation4 + $0xc8] sm:$0xff]
    %v498 = vld [vmem:[#allocation4 + $0xd0] sm:$0xff]
    %v499 = vld [vmem:[#allocation4 + $0xd8] sm:$0xff]
    %v500 = vld [vmem:[#allocation4 + $0xe0] sm:$0xff]
    %v501 = vld [vmem:[#allocation4 + $0xe8] sm:$0xff]
    %v502 = vld [vmem:[#allocation4 + $0xf0] sm:$0xff]
    %v503 = vld [vmem:[#allocation4 + $0xf8] sm:$0xff]
    %v506 = vunpack.c.l.b16 %v470
    %v507 = vunpack.c.l.b16 %v471
    %v508 = vpack.c.b16 %v507, %v506
    %v542 = vunpack.c.l.b16 %v472
    %v543 = vunpack.c.h.b16 %v472
    %v544 = vunpack.c.l.b16 %v473
    %v545 = vunpack.c.h.b16 %v473
    %v546 = vunpack.c.l.b16 %v474
    %v547 = vunpack.c.h.b16 %v474
    %v548 = vunpack.c.l.b16 %v475
    %v549 = vunpack.c.h.b16 %v475
    %v550 = vunpack.c.l.b16 %v476
    %v551 = vunpack.c.h.b16 %v476
    %v552 = vunpack.c.l.b16 %v477
    %v553 = vunpack.c.h.b16 %v477
    %v554 = vunpack.c.l.b16 %v478
    %v555 = vunpack.c.h.b16 %v478
    %v556 = vunpack.c.l.b16 %v479
    %v557 = vunpack.c.h.b16 %v479
    %v558 = vunpack.c.l.b16 %v480
    %v559 = vunpack.c.h.b16 %v480
    %v560 = vunpack.c.l.b16 %v481
    %v561 = vunpack.c.h.b16 %v481
    %v562 = vunpack.c.l.b16 %v482
    %v563 = vunpack.c.h.b16 %v482
    %v564 = vunpack.c.l.b16 %v483
    %v565 = vunpack.c.h.b16 %v483
    %v566 = vunpack.c.l.b16 %v484
    %v567 = vunpack.c.h.b16 %v484
    %v568 = vunpack.c.l.b16 %v485
    %v569 = vunpack.c.h.b16 %v485
    %v570 = vunpack.c.l.b16 %v486
    %v571 = vunpack.c.h.b16 %v486
    %v572 = vunpack.c.l.b16 %v487
    %v573 = vunpack.c.h.b16 %v487
    %v574 = vunpack.c.l.b16 %v488
    %v575 = vunpack.c.h.b16 %v488
    %v576 = vunpack.c.l.b16 %v489
    %v577 = vunpack.c.h.b16 %v489
    %v578 = vunpack.c.l.b16 %v490
    %v579 = vunpack.c.h.b16 %v490
    %v580 = vunpack.c.l.b16 %v491
    %v581 = vunpack.c.h.b16 %v491
    %v582 = vunpack.c.l.b16 %v492
    %v583 = vunpack.c.h.b16 %v492
    %v584 = vunpack.c.l.b16 %v493
    %v585 = vunpack.c.h.b16 %v493
    %v586 = vunpack.c.l.b16 %v494
    %v587 = vunpack.c.h.b16 %v494
    %v588 = vunpack.c.l.b16 %v495
    %v589 = vunpack.c.h.b16 %v495
    %v590 = vunpack.c.l.b16 %v496
    %v591 = vunpack.c.h.b16 %v496
    %v592 = vunpack.c.l.b16 %v497
    %v593 = vunpack.c.h.b16 %v497
    %v594 = vunpack.c.l.b16 %v498
    %v595 = vunpack.c.h.b16 %v498
    %v596 = vunpack.c.l.b16 %v499
    %v597 = vunpack.c.h.b16 %v499
    %v598 = vunpack.c.l.b16 %v500
    %v599 = vunpack.c.h.b16 %v500
    %v600 = vunpack.c.l.b16 %v501
    %v601 = vunpack.c.h.b16 %v501
    %v602 = vunpack.c.l.b16 %v502
    %v603 = vunpack.c.h.b16 %v502
    %v604 = vunpack.c.l.b16 %v503
    %v605 = vunpack.c.h.b16 %v503
    %v606 = vpack.c.b16 %v546, %v542
    %v607 = vpack.c.b16 %v547, %v543
    %v608 = vpack.c.b16 %v548, %v544
    %v609 = vpack.c.b16 %v549, %v545
    %v610 = vpack.c.b16 %v554, %v550
    %v611 = vpack.c.b16 %v555, %v551
    %v612 = vpack.c.b16 %v556, %v552
    %v613 = vpack.c.b16 %v557, %v553
    %v614 = vpack.c.b16 %v562, %v558
    %v615 = vpack.c.b16 %v563, %v559
    %v616 = vpack.c.b16 %v564, %v560
    %v617 = vpack.c.b16 %v565, %v561
    %v618 = vpack.c.b16 %v570, %v566
    %v619 = vpack.c.b16 %v571, %v567
    %v620 = vpack.c.b16 %v572, %v568
    %v621 = vpack.c.b16 %v573, %v569
    %v622 = vpack.c.b16 %v578, %v574
    %v623 = vpack.c.b16 %v579, %v575
    %v624 = vpack.c.b16 %v580, %v576
    %v625 = vpack.c.b16 %v581, %v577
    %v626 = vpack.c.b16 %v586, %v582
    %v627 = vpack.c.b16 %v587, %v583
    %v628 = vpack.c.b16 %v588, %v584
    %v629 = vpack.c.b16 %v589, %v585
    %v630 = vpack.c.b16 %v594, %v590
    %v631 = vpack.c.b16 %v595, %v591
    %v632 = vpack.c.b16 %v596, %v592
    %v633 = vpack.c.b16 %v597, %v593
    %v634 = vpack.c.b16 %v602, %v598
    %v635 = vpack.c.b16 %v603, %v599
    %v636 = vpack.c.b16 %v604, %v600
    %v637 = vpack.c.b16 %v605, %v601
    %670 = vmatpush.bf16.msra.mxu0 %v634
    %671 = vmatpush.bf16.msra.mxu0 %v630
    %672 = vmatpush.bf16.msra.mxu0 %v626
    %673 = vmatpush.bf16.msra.mxu0 %v622
    %674 = vmatpush.bf16.msra.mxu0 %v618
    %675 = vmatpush.bf16.msra.mxu0 %v614
    %676 = vmatpush.bf16.msra.mxu0 %v610
    %677 = vmatpush.bf16.msra.mxu0 %v606
    %678 = vmatmul.bf16.gmra.mxu0 %v508
    %v679 = vpop.f32.mrf.mxu0
    %v680 = vadd.f32 0.0, %v679
    %v681 = vpop.f32.mrf.mxu0
    %v682 = vadd.f32 0.0, %v681
    %683 = vdwg.mxu0
    %684 = vmatpush.bf16.msra.mxu0 %v635
    %685 = vmatpush.bf16.msra.mxu0 %v631
    %686 = vmatpush.bf16.msra.mxu0 %v627
    %687 = vmatpush.bf16.msra.mxu0 %v623
    %688 = vmatpush.bf16.msra.mxu0 %v619
    %689 = vmatpush.bf16.msra.mxu0 %v615
    %690 = vmatpush.bf16.msra.mxu0 %v611
    %691 = vmatpush.bf16.msra.mxu0 %v607
    %692 = vmatmul.bf16.gmra.mxu0 %v508
    %v693 = vpop.f32.mrf.mxu0
    %v694 = vadd.f32 0.0, %v693
    %v695 = vpop.f32.mrf.mxu0
    %v696 = vadd.f32 0.0, %v695
    %697 = vdwg.mxu0
    %698 = vmatpush.bf16.msra.mxu0 %v636
    %699 = vmatpush.bf16.msra.mxu0 %v632
    %700 = vmatpush.bf16.msra.mxu0 %v628
    %701 = vmatpush.bf16.msra.mxu0 %v624
    %702 = vmatpush.bf16.msra.mxu0 %v620
    %703 = vmatpush.bf16.msra.mxu0 %v616
    %704 = vmatpush.bf16.msra.mxu0 %v612
    %705 = vmatpush.bf16.msra.mxu0 %v608
    %706 = vmatmul.bf16.gmra.mxu0 %v508
    %v707 = vpop.f32.mrf.mxu0
    %v708 = vadd.f32 0.0, %v707
    %v709 = vpop.f32.mrf.mxu0
    %v710 = vadd.f32 0.0, %v709
    %711 = vdwg.mxu0
    %712 = vmatpush.bf16.msra.mxu0 %v637
    %713 = vmatpush.bf16.msra.mxu0 %v633
    %714 = vmatpush.bf16.msra.mxu0 %v629
    %715 = vmatpush.bf16.msra.mxu0 %v625
    %716 = vmatpush.bf16.msra.mxu0 %v621
    %717 = vmatpush.bf16.msra.mxu0 %v617
    %718 = vmatpush.bf16.msra.mxu0 %v613
    %719 = vmatpush.bf16.msra.mxu0 %v609
    %720 = vmatmul.bf16.gmra.mxu0 %v508
    %v721 = vpop.f32.mrf.mxu0
    %v722 = vadd.f32 0.0, %v721
    %v723 = vpop.f32.mrf.mxu0
    %v724 = vadd.f32 0.0, %v723
    %725 = vdwg.mxu0
    %v726 = vadd.f32 %v462, %v680
    %v727 = vadd.f32 %v463, %v694
    %v728 = vadd.f32 %v464, %v708
    %v729 = vadd.f32 %v465, %v722
    %v730 = vadd.f32 %v466, %v682
    %v731 = vadd.f32 %v467, %v696
    %v732 = vadd.f32 %v468, %v710
    %v733 = vadd.f32 %v469, %v724
    %v734 = vxor.u32 %v726, 2147483648
    %v735 = vxor.u32 %v727, 2147483648
    %v736 = vxor.u32 %v728, 2147483648
    %v737 = vxor.u32 %v730, 2147483648
    %v738 = vxor.u32 %v731, 2147483648
    %v739 = vxor.u32 %v732, 2147483648
    %v740 = vmul.f32 %v734, 1.442695
    %v741 = vpow.pop %v740
    %v742 = vmul.f32 %v735, 1.442695
    %v743 = vpow.pop %v742
    %v744 = vmul.f32 %v736, 1.442695
    %v745 = vpow.pop %v744
    %v746 = vmul.f32 %v737, 1.442695
    %v747 = vpow.pop %v746
    %v748 = vmul.f32 %v738, 1.442695
    %v749 = vpow.pop %v748
    %v750 = vmul.f32 %v739, 1.442695
    %v751 = vpow.pop %v750
    %v752 = vadd.f32 %v741, 1.0
    %v753 = vadd.f32 %v743, 1.0
    %v754 = vadd.f32 %v745, 1.0
    %v755 = vadd.f32 %v747, 1.0
    %v756 = vadd.f32 %v749, 1.0
    %v757 = vadd.f32 %v751, 1.0
    %v758 = vrcp.pop %v752
    %v759 = vmul.f32 %v752, %v758
    %v760 = vsub.f32 1.0, %v759
    %v761 = vmul.f32 %v758, %v760
    %v762 = vadd.f32 %v758, %v761
    %vm763 = vweird.f32 %v752
    %vm764 = vweird.f32 %v758
    %vm765 = vmor %vm763, %vm764
    %v766 = vsel %vm765, %v758, %v762
    %v767 = vand.u32 2147483647, %v752
    %vm768 = vcmp.eq.f32.partialorder %v767, 8.507059e+37
    %v769 = vand.u32 %v752, 2147483648
    %v770 = vor.u32 1.1754944e-38, %v769
    %v771 = vsel %vm768, %v770, %v766
    %v772 = vmul.f32 1.0, %v771
    %v773 = vrcp.pop %v753
    %v774 = vmul.f32 %v753, %v773
    %v775 = vsub.f32 1.0, %v774
    %v776 = vmul.f32 %v773, %v775
    %v777 = vadd.f32 %v773, %v776
    %vm778 = vweird.f32 %v753
    %vm779 = vweird.f32 %v773
    %vm780 = vmor %vm778, %vm779
    %v781 = vsel %vm780, %v773, %v777
    %v782 = vand.u32 2147483647, %v753
    %vm783 = vcmp.eq.f32.partialorder %v782, 8.507059e+37
    %v784 = vand.u32 %v753, 2147483648
    %v785 = vor.u32 1.1754944e-38, %v784
    %v786 = vsel %vm783, %v785, %v781
    %v787 = vmul.f32 1.0, %v786
    %v788 = vrcp.pop %v754
    %v789 = vmul.f32 %v754, %v788
    %v790 = vsub.f32 1.0, %v789
    %v791 = vmul.f32 %v788, %v790
    %v792 = vadd.f32 %v788, %v791
    %vm793 = vweird.f32 %v754
    %vm794 = vweird.f32 %v788
    %vm795 = vmor %vm793, %vm794
    %v796 = vsel %vm795, %v788, %v792
    %v797 = vand.u32 2147483647, %v754
    %vm798 = vcmp.eq.f32.partialorder %v797, 8.507059e+37
    %v799 = vand.u32 %v754, 2147483648
    %v800 = vor.u32 1.1754944e-38, %v799
    %v801 = vsel %vm798, %v800, %v796
    %v802 = vmul.f32 1.0, %v801
    %v803 = vrcp.pop %v755
    %v804 = vmul.f32 %v755, %v803
    %v805 = vsub.f32 1.0, %v804
    %v806 = vmul.f32 %v803, %v805
    %v807 = vadd.f32 %v803, %v806
    %vm808 = vweird.f32 %v755
    %vm809 = vweird.f32 %v803
    %vm810 = vmor %vm808, %vm809
    %v811 = vsel %vm810, %v803, %v807
    %v812 = vand.u32 2147483647, %v755
    %vm813 = vcmp.eq.f32.partialorder %v812, 8.507059e+37
    %v814 = vand.u32 %v755, 2147483648
    %v815 = vor.u32 1.1754944e-38, %v814
    %v816 = vsel %vm813, %v815, %v811
    %v817 = vmul.f32 1.0, %v816
    %v818 = vrcp.pop %v756
    %v819 = vmul.f32 %v756, %v818
    %v820 = vsub.f32 1.0, %v819
    %v821 = vmul.f32 %v818, %v820
    %v822 = vadd.f32 %v818, %v821
    %vm823 = vweird.f32 %v756
    %vm824 = vweird.f32 %v818
    %vm825 = vmor %vm823, %vm824
    %v826 = vsel %vm825, %v818, %v822
    %v827 = vand.u32 2147483647, %v756
    %vm828 = vcmp.eq.f32.partialorder %v827, 8.507059e+37
    %v829 = vand.u32 %v756, 2147483648
    %v830 = vor.u32 1.1754944e-38, %v829
    %v831 = vsel %vm828, %v830, %v826
    %v832 = vmul.f32 1.0, %v831
    %v833 = vrcp.pop %v757
    %v834 = vmul.f32 %v757, %v833
    %v835 = vsub.f32 1.0, %v834
    %v836 = vmul.f32 %v833, %v835
    %v837 = vadd.f32 %v833, %v836
    %vm838 = vweird.f32 %v757
    %vm839 = vweird.f32 %v833
    %vm840 = vmor %vm838, %vm839
    %v841 = vsel %vm840, %v833, %v837
    %v842 = vand.u32 2147483647, %v757
    %vm843 = vcmp.eq.f32.partialorder %v842, 8.507059e+37
    %v844 = vand.u32 %v757, 2147483648
    %v845 = vor.u32 1.1754944e-38, %v844
    %v846 = vsel %vm843, %v845, %v841
    %v847 = vmul.f32 1.0, %v846
    %v848 = vtanh.pop %v729
    %v849 = vtanh.pop %v733
    %v850 = vld [vmem:[#allocation3] sm:$0xff]
    %v851 = vld [vmem:[#allocation3 + $0x8] sm:$0xff]
    %v852 = vmul.f32 %v787, %v850
    %v853 = vmul.f32 %v832, %v851
    %v854 = vmul.f32 %v772, %v848
    %v855 = vmul.f32 %v817, %v849
    %v856 = vadd.f32 %v852, %v854
    %v857 = vadd.f32 %v853, %v855
    %v858 = vtanh.pop %v856
    %v859 = vtanh.pop %v857
    %v860 = vmul.f32 %v802, %v858
    %v861 = vmul.f32 %v847, %v859
    %862 = vst [vmem:[#allocation3] sm:$0xff] %v856
    %863 = vst [vmem:[#allocation3 + $0x8] sm:$0xff] %v857
    %v864 = vpack.c.bf16 %v860, %v860
    %v865 = vpack.c.bf16 %v861, %v861
    %866 = vst [vmem:[#allocation2] sm:$0xf] %v864
    %867 = vst [vmem:[#allocation2 + $0x4] sm:$0xf] %v865
    %s868 = scalar_lea.vmem %s4, 8
    %869 = vst [vmem:[%s868] sm:$0xf] %v864
    %870 = vst [vmem:[%s868 + $0x4] sm:$0xf] %v865
    %v871 = vpack.c.bf16 %v856, %v856
    %v872 = vpack.c.bf16 %v857, %v857
    %s873 = scalar_lea.vmem %s5, 8
    %874 = vst [vmem:[%s873] sm:$0xf] %v871
    %875 = vst [vmem:[%s873 + $0x4] sm:$0xf] %v872
    %s876 = scalar_lea.vmem %s0, 128
    %v877 = vld [vmem:[%s876] sm:$0xff]
    %v878 = vld [vmem:[%s876 + $0x8] sm:$0xff]
    %v879 = vld [vmem:[%s876 + $0x10] sm:$0xff]
    %v880 = vld [vmem:[%s876 + $0x18] sm:$0xff]
    %v881 = vld [vmem:[%s876 + $0x20] sm:$0xff]
    %v882 = vld [vmem:[%s876 + $0x28] sm:$0xff]
    %v883 = vld [vmem:[%s876 + $0x30] sm:$0xff]
    %v884 = vld [vmem:[%s876 + $0x38] sm:$0xff]
    %v885 = vld [vmem:[#allocation2] sm:$0xf]
    %v886 = vld [vmem:[#allocation2 + $0x4] sm:$0xf]
    %v887 = vld [vmem:[#allocation4] sm:$0xff]
    %v888 = vld [vmem:[#allocation4 + $0x8] sm:$0xff]
    %v889 = vld [vmem:[#allocation4 + $0x10] sm:$0xff]
    %v890 = vld [vmem:[#allocation4 + $0x18] sm:$0xff]
    %v891 = vld [vmem:[#allocation4 + $0x20] sm:$0xff]
    %v892 = vld [vmem:[#allocation4 + $0x28] sm:$0xff]
    %v893 = vld [vmem:[#allocation4 + $0x30] sm:$0xff]
    %v894 = vld [vmem:[#allocation4 + $0x38] sm:$0xff]
    %v895 = vld [vmem:[#allocation4 + $0x40] sm:$0xff]
    %v896 = vld [vmem:[#allocation4 + $0x48] sm:$0xff]
    %v897 = vld [vmem:[#allocation4 + $0x50] sm:$0xff]
    %v898 = vld [vmem:[#allocation4 + $0x58] sm:$0xff]
    %v899 = vld [vmem:[#allocation4 + $0x60] sm:$0xff]
    %v900 = vld [vmem:[#allocation4 + $0x68] sm:$0xff]
    %v901 = vld [vmem:[#allocation4 + $0x70] sm:$0xff]
    %v902 = vld [vmem:[#allocation4 + $0x78] sm:$0xff]
    %v903 = vld [vmem:[#allocation4 + $0x80] sm:$0xff]
    %v904 = vld [vmem:[#allocation4 + $0x88] sm:$0xff]
    %v905 = vld [vmem:[#allocation4 + $0x90] sm:$0xff]
    %v906 = vld [vmem:[#allocation4 + $0x98] sm:$0xff]
    %v907 = vld [vmem:[#allocation4 + $0xa0] sm:$0xff]
    %v908 = vld [vmem:[#allocation4 + $0xa8] sm:$0xff]
    %v909 = vld [vmem:[#allocation4 + $0xb0] sm:$0xff]
    %v910 = vld [vmem:[#allocation4 + $0xb8] sm:$0xff]
    %v911 = vld [vmem:[#allocation4 + $0xc0] sm:$0xff]
    %v912 = vld [vmem:[#allocation4 + $0xc8] sm:$0xff]
    %v913 = vld [vmem:[#allocation4 + $0xd0] sm:$0xff]
    %v914 = vld [vmem:[#allocation4 + $0xd8] sm:$0xff]
    %v915 = vld [vmem:[#allocation4 + $0xe0] sm:$0xff]
    %v916 = vld [vmem:[#allocation4 + $0xe8] sm:$0xff]
    %v917 = vld [vmem:[#allocation4 + $0xf0] sm:$0xff]
    %v918 = vld [vmem:[#allocation4 + $0xf8] sm:$0xff]
    %v921 = vunpack.c.l.b16 %v885
    %v922 = vunpack.c.l.b16 %v886
    %v923 = vpack.c.b16 %v922, %v921
    %v957 = vunpack.c.l.b16 %v887
    %v958 = vunpack.c.h.b16 %v887
    %v959 = vunpack.c.l.b16 %v888
    %v960 = vunpack.c.h.b16 %v888
    %v961 = vunpack.c.l.b16 %v889
    %v962 = vunpack.c.h.b16 %v889
    %v963 = vunpack.c.l.b16 %v890
    %v964 = vunpack.c.h.b16 %v890
    %v965 = vunpack.c.l.b16 %v891
    %v966 = vunpack.c.h.b16 %v891
    %v967 = vunpack.c.l.b16 %v892
    %v968 = vunpack.c.h.b16 %v892
    %v969 = vunpack.c.l.b16 %v893
    %v970 = vunpack.c.h.b16 %v893
    %v971 = vunpack.c.l.b16 %v894
    %v972 = vunpack.c.h.b16 %v894
    %v973 = vunpack.c.l.b16 %v895
    %v974 = vunpack.c.h.b16 %v895
    %v975 = vunpack.c.l.b16 %v896
    %v976 = vunpack.c.h.b16 %v896
    %v977 = vunpack.c.l.b16 %v897
    %v978 = vunpack.c.h.b16 %v897
    %v979 = vunpack.c.l.b16 %v898
    %v980 = vunpack.c.h.b16 %v898
    %v981 = vunpack.c.l.b16 %v899
    %v982 = vunpack.c.h.b16 %v899
    %v983 = vunpack.c.l.b16 %v900
    %v984 = vunpack.c.h.b16 %v900
    %v985 = vunpack.c.l.b16 %v901
    %v986 = vunpack.c.h.b16 %v901
    %v987 = vunpack.c.l.b16 %v902
    %v988 = vunpack.c.h.b16 %v902
    %v989 = vunpack.c.l.b16 %v903
    %v990 = vunpack.c.h.b16 %v903
    %v991 = vunpack.c.l.b16 %v904
    %v992 = vunpack.c.h.b16 %v904
    %v993 = vunpack.c.l.b16 %v905
    %v994 = vunpack.c.h.b16 %v905
    %v995 = vunpack.c.l.b16 %v906
    %v996 = vunpack.c.h.b16 %v906
    %v997 = vunpack.c.l.b16 %v907
    %v998 = vunpack.c.h.b16 %v907
    %v999 = vunpack.c.l.b16 %v908
    %v1000 = vunpack.c.h.b16 %v908
    %v1001 = vunpack.c.l.b16 %v909
    %v1002 = vunpack.c.h.b16 %v909
    %v1003 = vunpack.c.l.b16 %v910
    %v1004 = vunpack.c.h.b16 %v910
    %v1005 = vunpack.c.l.b16 %v911
    %v1006 = vunpack.c.h.b16 %v911
    %v1007 = vunpack.c.l.b16 %v912
    %v1008 = vunpack.c.h.b16 %v912
    %v1009 = vunpack.c.l.b16 %v913
    %v1010 = vunpack.c.h.b16 %v913
    %v1011 = vunpack.c.l.b16 %v914
    %v1012 = vunpack.c.h.b16 %v914
    %v1013 = vunpack.c.l.b16 %v915
    %v1014 = vunpack.c.h.b16 %v915
    %v1015 = vunpack.c.l.b16 %v916
    %v1016 = vunpack.c.h.b16 %v916
    %v1017 = vunpack.c.l.b16 %v917
    %v1018 = vunpack.c.h.b16 %v917
    %v1019 = vunpack.c.l.b16 %v918
    %v1020 = vunpack.c.h.b16 %v918
    %v1021 = vpack.c.b16 %v961, %v957
    %v1022 = vpack.c.b16 %v962, %v958
    %v1023 = vpack.c.b16 %v963, %v959
    %v1024 = vpack.c.b16 %v964, %v960
    %v1025 = vpack.c.b16 %v969, %v965
    %v1026 = vpack.c.b16 %v970, %v966
    %v1027 = vpack.c.b16 %v971, %v967
    %v1028 = vpack.c.b16 %v972, %v968
    %v1029 = vpack.c.b16 %v977, %v973
    %v1030 = vpack.c.b16 %v978, %v974
    %v1031 = vpack.c.b16 %v979, %v975
    %v1032 = vpack.c.b16 %v980, %v976
    %v1033 = vpack.c.b16 %v985, %v981
    %v1034 = vpack.c.b16 %v986, %v982
    %v1035 = vpack.c.b16 %v987, %v983
    %v1036 = vpack.c.b16 %v988, %v984
    %v1037 = vpack.c.b16 %v993, %v989
    %v1038 = vpack.c.b16 %v994, %v990
    %v1039 = vpack.c.b16 %v995, %v991
    %v1040 = vpack.c.b16 %v996, %v992
    %v1041 = vpack.c.b16 %v1001, %v997
    %v1042 = vpack.c.b16 %v1002, %v998
    %v1043 = vpack.c.b16 %v1003, %v999
    %v1044 = vpack.c.b16 %v1004, %v1000
    %v1045 = vpack.c.b16 %v1009, %v1005
    %v1046 = vpack.c.b16 %v1010, %v1006
    %v1047 = vpack.c.b16 %v1011, %v1007
    %v1048 = vpack.c.b16 %v1012, %v1008
    %v1049 = vpack.c.b16 %v1017, %v1013
    %v1050 = vpack.c.b16 %v1018, %v1014
    %v1051 = vpack.c.b16 %v1019, %v1015
    %v1052 = vpack.c.b16 %v1020, %v1016
    %1085 = vmatpush.bf16.msra.mxu0 %v1049
    %1086 = vmatpush.bf16.msra.mxu0 %v1045
    %1087 = vmatpush.bf16.msra.mxu0 %v1041
    %1088 = vmatpush.bf16.msra.mxu0 %v1037
    %1089 = vmatpush.bf16.msra.mxu0 %v1033
    %1090 = vmatpush.bf16.msra.mxu0 %v1029
    %1091 = vmatpush.bf16.msra.mxu0 %v1025
    %1092 = vmatpush.bf16.msra.mxu0 %v1021
    %1093 = vmatmul.bf16.gmra.mxu0 %v923
    %v1094 = vpop.f32.mrf.mxu0
    %v1095 = vadd.f32 0.0, %v1094
    %v1096 = vpop.f32.mrf.mxu0
    %v1097 = vadd.f32 0.0, %v1096
    %1098 = vdwg.mxu0
    %1099 = vmatpush.bf16.msra.mxu0 %v1050
    %1100 = vmatpush.bf16.msra.mxu0 %v1046
    %1101 = vmatpush.bf16.msra.mxu0 %v1042
    %1102 = vmatpush.bf16.msra.mxu0 %v1038
    %1103 = vmatpush.bf16.msra.mxu0 %v1034
    %1104 = vmatpush.bf16.msra.mxu0 %v1030
    %1105 = vmatpush.bf16.msra.mxu0 %v1026
    %1106 = vmatpush.bf16.msra.mxu0 %v1022
    %1107 = vmatmul.bf16.gmra.mxu0 %v923
    %v1108 = vpop.f32.mrf.mxu0
    %v1109 = vadd.f32 0.0, %v1108
    %v1110 = vpop.f32.mrf.mxu0
    %v1111 = vadd.f32 0.0, %v1110
    %1112 = vdwg.mxu0
    %1113 = vmatpush.bf16.msra.mxu0 %v1051
    %1114 = vmatpush.bf16.msra.mxu0 %v1047
    %1115 = vmatpush.bf16.msra.mxu0 %v1043
    %1116 = vmatpush.bf16.msra.mxu0 %v1039
    %1117 = vmatpush.bf16.msra.mxu0 %v1035
    %1118 = vmatpush.bf16.msra.mxu0 %v1031
    %1119 = vmatpush.bf16.msra.mxu0 %v1027
    %1120 = vmatpush.bf16.msra.mxu0 %v1023
    %1121 = vmatmul.bf16.gmra.mxu0 %v923
    %v1122 = vpop.f32.mrf.mxu0
    %v1123 = vadd.f32 0.0, %v1122
    %v1124 = vpop.f32.mrf.mxu0
    %v1125 = vadd.f32 0.0, %v1124
    %1126 = vdwg.mxu0
    %1127 = vmatpush.bf16.msra.mxu0 %v1052
    %1128 = vmatpush.bf16.msra.mxu0 %v1048
    %1129 = vmatpush.bf16.msra.mxu0 %v1044
    %1130 = vmatpush.bf16.msra.mxu0 %v1040
    %1131 = vmatpush.bf16.msra.mxu0 %v1036
    %1132 = vmatpush.bf16.msra.mxu0 %v1032
    %1133 = vmatpush.bf16.msra.mxu0 %v1028
    %1134 = vmatpush.bf16.msra.mxu0 %v1024
    %1135 = vmatmul.bf16.gmra.mxu0 %v923
    %v1136 = vpop.f32.mrf.mxu0
    %v1137 = vadd.f32 0.0, %v1136
    %v1138 = vpop.f32.mrf.mxu0
    %v1139 = vadd.f32 0.0, %v1138
    %1140 = vdwg.mxu0
    %v1141 = vadd.f32 %v877, %v1095
    %v1142 = vadd.f32 %v878, %v1109
    %v1143 = vadd.f32 %v879, %v1123
    %v1144 = vadd.f32 %v880, %v1137
    %v1145 = vadd.f32 %v881, %v1097
    %v1146 = vadd.f32 %v882, %v1111
    %v1147 = vadd.f32 %v883, %v1125
    %v1148 = vadd.f32 %v884, %v1139
    %v1149 = vxor.u32 %v1141, 2147483648
    %v1150 = vxor.u32 %v1142, 2147483648
    %v1151 = vxor.u32 %v1143, 2147483648
    %v1152 = vxor.u32 %v1145, 2147483648
    %v1153 = vxor.u32 %v1146, 2147483648
    %v1154 = vxor.u32 %v1147, 2147483648
    %v1155 = vmul.f32 %v1149, 1.442695
    %v1156 = vpow.pop %v1155
    %v1157 = vmul.f32 %v1150, 1.442695
    %v1158 = vpow.pop %v1157
    %v1159 = vmul.f32 %v1151, 1.442695
    %v1160 = vpow.pop %v1159
    %v1161 = vmul.f32 %v1152, 1.442695
    %v1162 = vpow.pop %v1161
    %v1163 = vmul.f32 %v1153, 1.442695
    %v1164 = vpow.pop %v1163
    %v1165 = vmul.f32 %v1154, 1.442695
    %v1166 = vpow.pop %v1165
    %v1167 = vadd.f32 %v1156, 1.0
    %v1168 = vadd.f32 %v1158, 1.0
    %v1169 = vadd.f32 %v1160, 1.0
    %v1170 = vadd.f32 %v1162, 1.0
    %v1171 = vadd.f32 %v1164, 1.0
    %v1172 = vadd.f32 %v1166, 1.0
    %v1173 = vrcp.pop %v1167
    %v1174 = vmul.f32 %v1167, %v1173
    %v1175 = vsub.f32 1.0, %v1174
    %v1176 = vmul.f32 %v1173, %v1175
    %v1177 = vadd.f32 %v1173, %v1176
    %vm1178 = vweird.f32 %v1167
    %vm1179 = vweird.f32 %v1173
    %vm1180 = vmor %vm1178, %vm1179
    %v1181 = vsel %vm1180, %v1173, %v1177
    %v1182 = vand.u32 2147483647, %v1167
    %vm1183 = vcmp.eq.f32.partialorder %v1182, 8.507059e+37
    %v1184 = vand.u32 %v1167, 2147483648
    %v1185 = vor.u32 1.1754944e-38, %v1184
    %v1186 = vsel %vm1183, %v1185, %v1181
    %v1187 = vmul.f32 1.0, %v1186
    %v1188 = vrcp.pop %v1168
    %v1189 = vmul.f32 %v1168, %v1188
    %v1190 = vsub.f32 1.0, %v1189
    %v1191 = vmul.f32 %v1188, %v1190
    %v1192 = vadd.f32 %v1188, %v1191
    %vm1193 = vweird.f32 %v1168
    %vm1194 = vweird.f32 %v1188
    %vm1195 = vmor %vm1193, %vm1194
    %v1196 = vsel %vm1195, %v1188, %v1192
    %v1197 = vand.u32 2147483647, %v1168
    %vm1198 = vcmp.eq.f32.partialorder %v1197, 8.507059e+37
    %v1199 = vand.u32 %v1168, 2147483648
    %v1200 = vor.u32 1.1754944e-38, %v1199
    %v1201 = vsel %vm1198, %v1200, %v1196
    %v1202 = vmul.f32 1.0, %v1201
    %v1203 = vrcp.pop %v1169
    %v1204 = vmul.f32 %v1169, %v1203
    %v1205 = vsub.f32 1.0, %v1204
    %v1206 = vmul.f32 %v1203, %v1205
    %v1207 = vadd.f32 %v1203, %v1206
    %vm1208 = vweird.f32 %v1169
    %vm1209 = vweird.f32 %v1203
    %vm1210 = vmor %vm1208, %vm1209
    %v1211 = vsel %vm1210, %v1203, %v1207
    %v1212 = vand.u32 2147483647, %v1169
    %vm1213 = vcmp.eq.f32.partialorder %v1212, 8.507059e+37
    %v1214 = vand.u32 %v1169, 2147483648
    %v1215 = vor.u32 1.1754944e-38, %v1214
    %v1216 = vsel %vm1213, %v1215, %v1211
    %v1217 = vmul.f32 1.0, %v1216
    %v1218 = vrcp.pop %v1170
    %v1219 = vmul.f32 %v1170, %v1218
    %v1220 = vsub.f32 1.0, %v1219
    %v1221 = vmul.f32 %v1218, %v1220
    %v1222 = vadd.f32 %v1218, %v1221
    %vm1223 = vweird.f32 %v1170
    %vm1224 = vweird.f32 %v1218
    %vm1225 = vmor %vm1223, %vm1224
    %v1226 = vsel %vm1225, %v1218, %v1222
    %v1227 = vand.u32 2147483647, %v1170
    %vm1228 = vcmp.eq.f32.partialorder %v1227, 8.507059e+37
    %v1229 = vand.u32 %v1170, 2147483648
    %v1230 = vor.u32 1.1754944e-38, %v1229
    %v1231 = vsel %vm1228, %v1230, %v1226
    %v1232 = vmul.f32 1.0, %v1231
    %v1233 = vrcp.pop %v1171
    %v1234 = vmul.f32 %v1171, %v1233
    %v1235 = vsub.f32 1.0, %v1234
    %v1236 = vmul.f32 %v1233, %v1235
    %v1237 = vadd.f32 %v1233, %v1236
    %vm1238 = vweird.f32 %v1171
    %vm1239 = vweird.f32 %v1233
    %vm1240 = vmor %vm1238, %vm1239
    %v1241 = vsel %vm1240, %v1233, %v1237
    %v1242 = vand.u32 2147483647, %v1171
    %vm1243 = vcmp.eq.f32.partialorder %v1242, 8.507059e+37
    %v1244 = vand.u32 %v1171, 2147483648
    %v1245 = vor.u32 1.1754944e-38, %v1244
    %v1246 = vsel %vm1243, %v1245, %v1241
    %v1247 = vmul.f32 1.0, %v1246
    %v1248 = vrcp.pop %v1172
    %v1249 = vmul.f32 %v1172, %v1248
    %v1250 = vsub.f32 1.0, %v1249
    %v1251 = vmul.f32 %v1248, %v1250
    %v1252 = vadd.f32 %v1248, %v1251
    %vm1253 = vweird.f32 %v1172
    %vm1254 = vweird.f32 %v1248
    %vm1255 = vmor %vm1253, %vm1254
    %v1256 = vsel %vm1255, %v1248, %v1252
    %v1257 = vand.u32 2147483647, %v1172
    %vm1258 = vcmp.eq.f32.partialorder %v1257, 8.507059e+37
    %v1259 = vand.u32 %v1172, 2147483648
    %v1260 = vor.u32 1.1754944e-38, %v1259
    %v1261 = vsel %vm1258, %v1260, %v1256
    %v1262 = vmul.f32 1.0, %v1261
    %v1263 = vtanh.pop %v1144
    %v1264 = vtanh.pop %v1148
    %v1265 = vld [vmem:[#allocation3] sm:$0xff]
    %v1266 = vld [vmem:[#allocation3 + $0x8] sm:$0xff]
    %v1267 = vmul.f32 %v1202, %v1265
    %v1268 = vmul.f32 %v1247, %v1266
    %v1269 = vmul.f32 %v1187, %v1263
    %v1270 = vmul.f32 %v1232, %v1264
    %v1271 = vadd.f32 %v1267, %v1269
    %v1272 = vadd.f32 %v1268, %v1270
    %v1273 = vtanh.pop %v1271
    %v1274 = vtanh.pop %v1272
    %v1275 = vmul.f32 %v1217, %v1273
    %v1276 = vmul.f32 %v1262, %v1274
    %1277 = vst [vmem:[#allocation3] sm:$0xff] %v1271
    %1278 = vst [vmem:[#allocation3 + $0x8] sm:$0xff] %v1272
    %v1279 = vpack.c.bf16 %v1275, %v1275
    %v1280 = vpack.c.bf16 %v1276, %v1276
    %1281 = vst [vmem:[#allocation2] sm:$0xf] %v1279
    %1282 = vst [vmem:[#allocation2 + $0x4] sm:$0xf] %v1280
    %s1283 = scalar_lea.vmem %s4, 16
    %1284 = vst [vmem:[%s1283] sm:$0xf] %v1279
    %1285 = vst [vmem:[%s1283 + $0x4] sm:$0xf] %v1280
    %v1286 = vpack.c.bf16 %v1271, %v1271
    %v1287 = vpack.c.bf16 %v1272, %v1272
    %s1288 = scalar_lea.vmem %s5, 16
    %1289 = vst [vmem:[%s1288] sm:$0xf] %v1286
    %1290 = vst [vmem:[%s1288 + $0x4] sm:$0xf] %v1287
    %s1291 = scalar_lea.vmem %s0, 192
    %v1292 = vld [vmem:[%s1291] sm:$0xff]
    %v1293 = vld [vmem:[%s1291 + $0x8] sm:$0xff]
    %v1294 = vld [vmem:[%s1291 + $0x10] sm:$0xff]
    %v1295 = vld [vmem:[%s1291 + $0x18] sm:$0xff]
    %v1296 = vld [vmem:[%s1291 + $0x20] sm:$0xff]
    %v1297 = vld [vmem:[%s1291 + $0x28] sm:$0xff]
    %v1298 = vld [vmem:[%s1291 + $0x30] sm:$0xff]
    %v1299 = vld [vmem:[%s1291 + $0x38] sm:$0xff]
    %v1300 = vld [vmem:[#allocation2] sm:$0xf]
    %v1301 = vld [vmem:[#allocation2 + $0x4] sm:$0xf]
    %v1302 = vld [vmem:[#allocation4] sm:$0xff]
    %v1303 = vld [vmem:[#allocation4 + $0x8] sm:$0xff]
    %v1304 = vld [vmem:[#allocation4 + $0x10] sm:$0xff]
    %v1305 = vld [vmem:[#allocation4 + $0x18] sm:$0xff]
    %v1306 = vld [vmem:[#allocation4 + $0x20] sm:$0xff]
    %v1307 = vld [vmem:[#allocation4 + $0x28] sm:$0xff]
    %v1308 = vld [vmem:[#allocation4 + $0x30] sm:$0xff]
    %v1309 = vld [vmem:[#allocation4 + $0x38] sm:$0xff]
    %v1310 = vld [vmem:[#allocation4 + $0x40] sm:$0xff]
    %v1311 = vld [vmem:[#allocation4 + $0x48] sm:$0xff]
    %v1312 = vld [vmem:[#allocation4 + $0x50] sm:$0xff]
    %v1313 = vld [vmem:[#allocation4 + $0x58] sm:$0xff]
    %v1314 = vld [vmem:[#allocation4 + $0x60] sm:$0xff]
    %v1315 = vld [vmem:[#allocation4 + $0x68] sm:$0xff]
    %v1316 = vld [vmem:[#allocation4 + $0x70] sm:$0xff]
    %v1317 = vld [vmem:[#allocation4 + $0x78] sm:$0xff]
    %v1318 = vld [vmem:[#allocation4 + $0x80] sm:$0xff]
    %v1319 = vld [vmem:[#allocation4 + $0x88] sm:$0xff]
    %v1320 = vld [vmem:[#allocation4 + $0x90] sm:$0xff]
    %v1321 = vld [vmem:[#allocation4 + $0x98] sm:$0xff]
    %v1322 = vld [vmem:[#allocation4 + $0xa0] sm:$0xff]
    %v1323 = vld [vmem:[#allocation4 + $0xa8] sm:$0xff]
    %v1324 = vld [vmem:[#allocation4 + $0xb0] sm:$0xff]
    %v1325 = vld [vmem:[#allocation4 + $0xb8] sm:$0xff]
    %v1326 = vld [vmem:[#allocation4 + $0xc0] sm:$0xff]
    %v1327 = vld [vmem:[#allocation4 + $0xc8] sm:$0xff]
    %v1328 = vld [vmem:[#allocation4 + $0xd0] sm:$0xff]
    %v1329 = vld [vmem:[#allocation4 + $0xd8] sm:$0xff]
    %v1330 = vld [vmem:[#allocation4 + $0xe0] sm:$0xff]
    %v1331 = vld [vmem:[#allocation4 + $0xe8] sm:$0xff]
    %v1332 = vld [vmem:[#allocation4 + $0xf0] sm:$0xff]
    %v1333 = vld [vmem:[#allocation4 + $0xf8] sm:$0xff]
    %v1336 = vunpack.c.l.b16 %v1300
    %v1337 = vunpack.c.l.b16 %v1301
    %v1338 = vpack.c.b16 %v1337, %v1336
    %v1372 = vunpack.c.l.b16 %v1302
    %v1373 = vunpack.c.h.b16 %v1302
    %v1374 = vunpack.c.l.b16 %v1303
    %v1375 = vunpack.c.h.b16 %v1303
    %v1376 = vunpack.c.l.b16 %v1304
    %v1377 = vunpack.c.h.b16 %v1304
    %v1378 = vunpack.c.l.b16 %v1305
    %v1379 = vunpack.c.h.b16 %v1305
    %v1380 = vunpack.c.l.b16 %v1306
    %v1381 = vunpack.c.h.b16 %v1306
    %v1382 = vunpack.c.l.b16 %v1307
    %v1383 = vunpack.c.h.b16 %v1307
    %v1384 = vunpack.c.l.b16 %v1308
    %v1385 = vunpack.c.h.b16 %v1308
    %v1386 = vunpack.c.l.b16 %v1309
    %v1387 = vunpack.c.h.b16 %v1309
    %v1388 = vunpack.c.l.b16 %v1310
    %v1389 = vunpack.c.h.b16 %v1310
    %v1390 = vunpack.c.l.b16 %v1311
    %v1391 = vunpack.c.h.b16 %v1311
    %v1392 = vunpack.c.l.b16 %v1312
    %v1393 = vunpack.c.h.b16 %v1312
    %v1394 = vunpack.c.l.b16 %v1313
    %v1395 = vunpack.c.h.b16 %v1313
    %v1396 = vunpack.c.l.b16 %v1314
    %v1397 = vunpack.c.h.b16 %v1314
    %v1398 = vunpack.c.l.b16 %v1315
    %v1399 = vunpack.c.h.b16 %v1315
    %v1400 = vunpack.c.l.b16 %v1316
    %v1401 = vunpack.c.h.b16 %v1316
    %v1402 = vunpack.c.l.b16 %v1317
    %v1403 = vunpack.c.h.b16 %v1317
    %v1404 = vunpack.c.l.b16 %v1318
    %v1405 = vunpack.c.h.b16 %v1318
    %v1406 = vunpack.c.l.b16 %v1319
    %v1407 = vunpack.c.h.b16 %v1319
    %v1408 = vunpack.c.l.b16 %v1320
    %v1409 = vunpack.c.h.b16 %v1320
    %v1410 = vunpack.c.l.b16 %v1321
    %v1411 = vunpack.c.h.b16 %v1321
    %v1412 = vunpack.c.l.b16 %v1322
    %v1413 = vunpack.c.h.b16 %v1322
    %v1414 = vunpack.c.l.b16 %v1323
    %v1415 = vunpack.c.h.b16 %v1323
    %v1416 = vunpack.c.l.b16 %v1324
    %v1417 = vunpack.c.h.b16 %v1324
    %v1418 = vunpack.c.l.b16 %v1325
    %v1419 = vunpack.c.h.b16 %v1325
    %v1420 = vunpack.c.l.b16 %v1326
    %v1421 = vunpack.c.h.b16 %v1326
    %v1422 = vunpack.c.l.b16 %v1327
    %v1423 = vunpack.c.h.b16 %v1327
    %v1424 = vunpack.c.l.b16 %v1328
    %v1425 = vunpack.c.h.b16 %v1328
    %v1426 = vunpack.c.l.b16 %v1329
    %v1427 = vunpack.c.h.b16 %v1329
    %v1428 = vunpack.c.l.b16 %v1330
    %v1429 = vunpack.c.h.b16 %v1330
    %v1430 = vunpack.c.l.b16 %v1331
    %v1431 = vunpack.c.h.b16 %v1331
    %v1432 = vunpack.c.l.b16 %v1332
    %v1433 = vunpack.c.h.b16 %v1332
    %v1434 = vunpack.c.l.b16 %v1333
    %v1435 = vunpack.c.h.b16 %v1333
    %v1436 = vpack.c.b16 %v1376, %v1372
    %v1437 = vpack.c.b16 %v1377, %v1373
    %v1438 = vpack.c.b16 %v1378, %v1374
    %v1439 = vpack.c.b16 %v1379, %v1375
    %v1440 = vpack.c.b16 %v1384, %v1380
    %v1441 = vpack.c.b16 %v1385, %v1381
    %v1442 = vpack.c.b16 %v1386, %v1382
    %v1443 = vpack.c.b16 %v1387, %v1383
    %v1444 = vpack.c.b16 %v1392, %v1388
    %v1445 = vpack.c.b16 %v1393, %v1389
    %v1446 = vpack.c.b16 %v1394, %v1390
    %v1447 = vpack.c.b16 %v1395, %v1391
    %v1448 = vpack.c.b16 %v1400, %v1396
    %v1449 = vpack.c.b16 %v1401, %v1397
    %v1450 = vpack.c.b16 %v1402, %v1398
    %v1451 = vpack.c.b16 %v1403, %v1399
    %v1452 = vpack.c.b16 %v1408, %v1404
    %v1453 = vpack.c.b16 %v1409, %v1405
    %v1454 = vpack.c.b16 %v1410, %v1406
    %v1455 = vpack.c.b16 %v1411, %v1407
    %v1456 = vpack.c.b16 %v1416, %v1412
    %v1457 = vpack.c.b16 %v1417, %v1413
    %v1458 = vpack.c.b16 %v1418, %v1414
    %v1459 = vpack.c.b16 %v1419, %v1415
    %v1460 = vpack.c.b16 %v1424, %v1420
    %v1461 = vpack.c.b16 %v1425, %v1421
    %v1462 = vpack.c.b16 %v1426, %v1422
    %v1463 = vpack.c.b16 %v1427, %v1423
    %v1464 = vpack.c.b16 %v1432, %v1428
    %v1465 = vpack.c.b16 %v1433, %v1429
    %v1466 = vpack.c.b16 %v1434, %v1430
    %v1467 = vpack.c.b16 %v1435, %v1431
    %1500 = vmatpush.bf16.msra.mxu0 %v1464
    %1501 = vmatpush.bf16.msra.mxu0 %v1460
    %1502 = vmatpush.bf16.msra.mxu0 %v1456
    %1503 = vmatpush.bf16.msra.mxu0 %v1452
    %1504 = vmatpush.bf16.msra.mxu0 %v1448
    %1505 = vmatpush.bf16.msra.mxu0 %v1444
    %1506 = vmatpush.bf16.msra.mxu0 %v1440
    %1507 = vmatpush.bf16.msra.mxu0 %v1436
    %1508 = vmatmul.bf16.gmra.mxu0 %v1338
    %v1509 = vpop.f32.mrf.mxu0
    %v1510 = vadd.f32 0.0, %v1509
    %v1511 = vpop.f32.mrf.mxu0
    %v1512 = vadd.f32 0.0, %v1511
    %1513 = vdwg.mxu0
    %1514 = vmatpush.bf16.msra.mxu0 %v1465
    %1515 = vmatpush.bf16.msra.mxu0 %v1461
    %1516 = vmatpush.bf16.msra.mxu0 %v1457
    %1517 = vmatpush.bf16.msra.mxu0 %v1453
    %1518 = vmatpush.bf16.msra.mxu0 %v1449
    %1519 = vmatpush.bf16.msra.mxu0 %v1445
    %1520 = vmatpush.bf16.msra.mxu0 %v1441
    %1521 = vmatpush.bf16.msra.mxu0 %v1437
    %1522 = vmatmul.bf16.gmra.mxu0 %v1338
    %v1523 = vpop.f32.mrf.mxu0
    %v1524 = vadd.f32 0.0, %v1523
    %v1525 = vpop.f32.mrf.mxu0
    %v1526 = vadd.f32 0.0, %v1525
    %1527 = vdwg.mxu0
    %1528 = vmatpush.bf16.msra.mxu0 %v1466
    %1529 = vmatpush.bf16.msra.mxu0 %v1462
    %1530 = vmatpush.bf16.msra.mxu0 %v1458
    %1531 = vmatpush.bf16.msra.mxu0 %v1454
    %1532 = vmatpush.bf16.msra.mxu0 %v1450
    %1533 = vmatpush.bf16.msra.mxu0 %v1446
    %1534 = vmatpush.bf16.msra.mxu0 %v1442
    %1535 = vmatpush.bf16.msra.mxu0 %v1438
    %1536 = vmatmul.bf16.gmra.mxu0 %v1338
    %v1537 = vpop.f32.mrf.mxu0
    %v1538 = vadd.f32 0.0, %v1537
    %v1539 = vpop.f32.mrf.mxu0
    %v1540 = vadd.f32 0.0, %v1539
    %1541 = vdwg.mxu0
    %1542 = vmatpush.bf16.msra.mxu0 %v1467
    %1543 = vmatpush.bf16.msra.mxu0 %v1463
    %1544 = vmatpush.bf16.msra.mxu0 %v1459
    %1545 = vmatpush.bf16.msra.mxu0 %v1455
    %1546 = vmatpush.bf16.msra.mxu0 %v1451
    %1547 = vmatpush.bf16.msra.mxu0 %v1447
    %1548 = vmatpush.bf16.msra.mxu0 %v1443
    %1549 = vmatpush.bf16.msra.mxu0 %v1439
    %1550 = vmatmul.bf16.gmra.mxu0 %v1338
    %v1551 = vpop.f32.mrf.mxu0
    %v1552 = vadd.f32 0.0, %v1551
    %v1553 = vpop.f32.mrf.mxu0
    %v1554 = vadd.f32 0.0, %v1553
    %1555 = vdwg.mxu0
    %v1556 = vadd.f32 %v1292, %v1510
    %v1557 = vadd.f32 %v1293, %v1524
    %v1558 = vadd.f32 %v1294, %v1538
    %v1559 = vadd.f32 %v1295, %v1552
    %v1560 = vadd.f32 %v1296, %v1512
    %v1561 = vadd.f32 %v1297, %v1526
    %v1562 = vadd.f32 %v1298, %v1540
    %v1563 = vadd.f32 %v1299, %v1554
    %v1564 = vxor.u32 %v1556, 2147483648
    %v1565 = vxor.u32 %v1557, 2147483648
    %v1566 = vxor.u32 %v1558, 2147483648
    %v1567 = vxor.u32 %v1560, 2147483648
    %v1568 = vxor.u32 %v1561, 2147483648
    %v1569 = vxor.u32 %v1562, 2147483648
    %v1570 = vmul.f32 %v1564, 1.442695
    %v1571 = vpow.pop %v1570
    %v1572 = vmul.f32 %v1565, 1.442695
    %v1573 = vpow.pop %v1572
    %v1574 = vmul.f32 %v1566, 1.442695
    %v1575 = vpow.pop %v1574
    %v1576 = vmul.f32 %v1567, 1.442695
    %v1577 = vpow.pop %v1576
    %v1578 = vmul.f32 %v1568, 1.442695
    %v1579 = vpow.pop %v1578
    %v1580 = vmul.f32 %v1569, 1.442695
    %v1581 = vpow.pop %v1580
    %v1582 = vadd.f32 %v1571, 1.0
    %v1583 = vadd.f32 %v1573, 1.0
    %v1584 = vadd.f32 %v1575, 1.0
    %v1585 = vadd.f32 %v1577, 1.0
    %v1586 = vadd.f32 %v1579, 1.0
    %v1587 = vadd.f32 %v1581, 1.0
    %v1588 = vrcp.pop %v1582
    %v1589 = vmul.f32 %v1582, %v1588
    %v1590 = vsub.f32 1.0, %v1589
    %v1591 = vmul.f32 %v1588, %v1590
    %v1592 = vadd.f32 %v1588, %v1591
    %vm1593 = vweird.f32 %v1582
    %vm1594 = vweird.f32 %v1588
    %vm1595 = vmor %vm1593, %vm1594
    %v1596 = vsel %vm1595, %v1588, %v1592
    %v1597 = vand.u32 2147483647, %v1582
    %vm1598 = vcmp.eq.f32.partialorder %v1597, 8.507059e+37
    %v1599 = vand.u32 %v1582, 2147483648
    %v1600 = vor.u32 1.1754944e-38, %v1599
    %v1601 = vsel %vm1598, %v1600, %v1596
    %v1602 = vmul.f32 1.0, %v1601
    %v1603 = vrcp.pop %v1583
    %v1604 = vmul.f32 %v1583, %v1603
    %v1605 = vsub.f32 1.0, %v1604
    %v1606 = vmul.f32 %v1603, %v1605
    %v1607 = vadd.f32 %v1603, %v1606
    %vm1608 = vweird.f32 %v1583
    %vm1609 = vweird.f32 %v1603
    %vm1610 = vmor %vm1608, %vm1609
    %v1611 = vsel %vm1610, %v1603, %v1607
    %v1612 = vand.u32 2147483647, %v1583
    %vm1613 = vcmp.eq.f32.partialorder %v1612, 8.507059e+37
    %v1614 = vand.u32 %v1583, 2147483648
    %v1615 = vor.u32 1.1754944e-38, %v1614
    %v1616 = vsel %vm1613, %v1615, %v1611
    %v1617 = vmul.f32 1.0, %v1616
    %v1618 = vrcp.pop %v1584
    %v1619 = vmul.f32 %v1584, %v1618
    %v1620 = vsub.f32 1.0, %v1619
    %v1621 = vmul.f32 %v1618, %v1620
    %v1622 = vadd.f32 %v1618, %v1621
    %vm1623 = vweird.f32 %v1584
    %vm1624 = vweird.f32 %v1618
    %vm1625 = vmor %vm1623, %vm1624
    %v1626 = vsel %vm1625, %v1618, %v1622
    %v1627 = vand.u32 2147483647, %v1584
    %vm1628 = vcmp.eq.f32.partialorder %v1627, 8.507059e+37
    %v1629 = vand.u32 %v1584, 2147483648
    %v1630 = vor.u32 1.1754944e-38, %v1629
    %v1631 = vsel %vm1628, %v1630, %v1626
    %v1632 = vmul.f32 1.0, %v1631
    %v1633 = vrcp.pop %v1585
    %v1634 = vmul.f32 %v1585, %v1633
    %v1635 = vsub.f32 1.0, %v1634
    %v1636 = vmul.f32 %v1633, %v1635
    %v1637 = vadd.f32 %v1633, %v1636
    %vm1638 = vweird.f32 %v1585
    %vm1639 = vweird.f32 %v1633
    %vm1640 = vmor %vm1638, %vm1639
    %v1641 = vsel %vm1640, %v1633, %v1637
    %v1642 = vand.u32 2147483647, %v1585
    %vm1643 = vcmp.eq.f32.partialorder %v1642, 8.507059e+37
    %v1644 = vand.u32 %v1585, 2147483648
    %v1645 = vor.u32 1.1754944e-38, %v1644
    %v1646 = vsel %vm1643, %v1645, %v1641
    %v1647 = vmul.f32 1.0, %v1646
    %v1648 = vrcp.pop %v1586
    %v1649 = vmul.f32 %v1586, %v1648
    %v1650 = vsub.f32 1.0, %v1649
    %v1651 = vmul.f32 %v1648, %v1650
    %v1652 = vadd.f32 %v1648, %v1651
    %vm1653 = vweird.f32 %v1586
    %vm1654 = vweird.f32 %v1648
    %vm1655 = vmor %vm1653, %vm1654
    %v1656 = vsel %vm1655, %v1648, %v1652
    %v1657 = vand.u32 2147483647, %v1586
    %vm1658 = vcmp.eq.f32.partialorder %v1657, 8.507059e+37
    %v1659 = vand.u32 %v1586, 2147483648
    %v1660 = vor.u32 1.1754944e-38, %v1659
    %v1661 = vsel %vm1658, %v1660, %v1656
    %v1662 = vmul.f32 1.0, %v1661
    %v1663 = vrcp.pop %v1587
    %v1664 = vmul.f32 %v1587, %v1663
    %v1665 = vsub.f32 1.0, %v1664
    %v1666 = vmul.f32 %v1663, %v1665
    %v1667 = vadd.f32 %v1663, %v1666
    %vm1668 = vweird.f32 %v1587
    %vm1669 = vweird.f32 %v1663
    %vm1670 = vmor %vm1668, %vm1669
    %v1671 = vsel %vm1670, %v1663, %v1667
    %v1672 = vand.u32 2147483647, %v1587
    %vm1673 = vcmp.eq.f32.partialorder %v1672, 8.507059e+37
    %v1674 = vand.u32 %v1587, 2147483648
    %v1675 = vor.u32 1.1754944e-38, %v1674
    %v1676 = vsel %vm1673, %v1675, %v1671
    %v1677 = vmul.f32 1.0, %v1676
    %v1678 = vtanh.pop %v1559
    %v1679 = vtanh.pop %v1563
    %v1680 = vld [vmem:[#allocation3] sm:$0xff]
    %v1681 = vld [vmem:[#allocation3 + $0x8] sm:$0xff]
    %v1682 = vmul.f32 %v1617, %v1680
    %v1683 = vmul.f32 %v1662, %v1681
    %v1684 = vmul.f32 %v1602, %v1678
    %v1685 = vmul.f32 %v1647, %v1679
    %v1686 = vadd.f32 %v1682, %v1684
    %v1687 = vadd.f32 %v1683, %v1685
    %v1688 = vtanh.pop %v1686
    %v1689 = vtanh.pop %v1687
    %v1690 = vmul.f32 %v1632, %v1688
    %v1691 = vmul.f32 %v1677, %v1689
    %1692 = vst [vmem:[#allocation3] sm:$0xff] %v1686
    %1693 = vst [vmem:[#allocation3 + $0x8] sm:$0xff] %v1687
    %v1694 = vpack.c.bf16 %v1690, %v1690
    %v1695 = vpack.c.bf16 %v1691, %v1691
    %1696 = vst [vmem:[#allocation2] sm:$0xf] %v1694
    %1697 = vst [vmem:[#allocation2 + $0x4] sm:$0xf] %v1695
    %s1698 = scalar_lea.vmem %s4, 24
    %1699 = vst [vmem:[%s1698] sm:$0xf] %v1694
    %1700 = vst [vmem:[%s1698 + $0x4] sm:$0xf] %v1695
    %v1701 = vpack.c.bf16 %v1686, %v1686
    %v1702 = vpack.c.bf16 %v1687, %v1687
    %s1703 = scalar_lea.vmem %s5, 24
    %1704 = vst [vmem:[%s1703] sm:$0xf] %v1701
    %1705 = vst [vmem:[%s1703 + $0x4] sm:$0xf] %v1702
    %s1706 = scalar_lea.vmem %s0, 256
    %v1707 = vld [vmem:[%s1706] sm:$0xff]
    %v1708 = vld [vmem:[%s1706 + $0x8] sm:$0xff]
    %v1709 = vld [vmem:[%s1706 + $0x10] sm:$0xff]
    %v1710 = vld [vmem:[%s1706 + $0x18] sm:$0xff]
    %v1711 = vld [vmem:[%s1706 + $0x20] sm:$0xff]
    %v1712 = vld [vmem:[%s1706 + $0x28] sm:$0xff]
    %v1713 = vld [vmem:[%s1706 + $0x30] sm:$0xff]
    %v1714 = vld [vmem:[%s1706 + $0x38] sm:$0xff]
    %v1715 = vld [vmem:[#allocation2] sm:$0xf]
    %v1716 = vld [vmem:[#allocation2 + $0x4] sm:$0xf]
    %v1717 = vld [vmem:[#allocation4] sm:$0xff]
    %v1718 = vld [vmem:[#allocation4 + $0x8] sm:$0xff]
    %v1719 = vld [vmem:[#allocation4 + $0x10] sm:$0xff]
    %v1720 = vld [vmem:[#allocation4 + $0x18] sm:$0xff]
    %v1721 = vld [vmem:[#allocation4 + $0x20] sm:$0xff]
    %v1722 = vld [vmem:[#allocation4 + $0x28] sm:$0xff]
    %v1723 = vld [vmem:[#allocation4 + $0x30] sm:$0xff]
    %v1724 = vld [vmem:[#allocation4 + $0x38] sm:$0xff]
    %v1725 = vld [vmem:[#allocation4 + $0x40] sm:$0xff]
    %v1726 = vld [vmem:[#allocation4 + $0x48] sm:$0xff]
    %v1727 = vld [vmem:[#allocation4 + $0x50] sm:$0xff]
    %v1728 = vld [vmem:[#allocation4 + $0x58] sm:$0xff]
    %v1729 = vld [vmem:[#allocation4 + $0x60] sm:$0xff]
    %v1730 = vld [vmem:[#allocation4 + $0x68] sm:$0xff]
    %v1731 = vld [vmem:[#allocation4 + $0x70] sm:$0xff]
    %v1732 = vld [vmem:[#allocation4 + $0x78] sm:$0xff]
    %v1733 = vld [vmem:[#allocation4 + $0x80] sm:$0xff]
    %v1734 = vld [vmem:[#allocation4 + $0x88] sm:$0xff]
    %v1735 = vld [vmem:[#allocation4 + $0x90] sm:$0xff]
    %v1736 = vld [vmem:[#allocation4 + $0x98] sm:$0xff]
    %v1737 = vld [vmem:[#allocation4 + $0xa0] sm:$0xff]
    %v1738 = vld [vmem:[#allocation4 + $0xa8] sm:$0xff]
    %v1739 = vld [vmem:[#allocation4 + $0xb0] sm:$0xff]
    %v1740 = vld [vmem:[#allocation4 + $0xb8] sm:$0xff]
    %v1741 = vld [vmem:[#allocation4 + $0xc0] sm:$0xff]
    %v1742 = vld [vmem:[#allocation4 + $0xc8] sm:$0xff]
    %v1743 = vld [vmem:[#allocation4 + $0xd0] sm:$0xff]
    %v1744 = vld [vmem:[#allocation4 + $0xd8] sm:$0xff]
    %v1745 = vld [vmem:[#allocation4 + $0xe0] sm:$0xff]
    %v1746 = vld [vmem:[#allocation4 + $0xe8] sm:$0xff]
    %v1747 = vld [vmem:[#allocation4 + $0xf0] sm:$0xff]
    %v1748 = vld [vmem:[#allocation4 + $0xf8] sm:$0xff]
    %v1751 = vunpack.c.l.b16 %v1715
    %v1752 = vunpack.c.l.b16 %v1716
    %v1753 = vpack.c.b16 %v1752, %v1751
    %v1787 = vunpack.c.l.b16 %v1717
    %v1788 = vunpack.c.h.b16 %v1717
    %v1789 = vunpack.c.l.b16 %v1718
    %v1790 = vunpack.c.h.b16 %v1718
    %v1791 = vunpack.c.l.b16 %v1719
    %v1792 = vunpack.c.h.b16 %v1719
    %v1793 = vunpack.c.l.b16 %v1720
    %v1794 = vunpack.c.h.b16 %v1720
    %v1795 = vunpack.c.l.b16 %v1721
    %v1796 = vunpack.c.h.b16 %v1721
    %v1797 = vunpack.c.l.b16 %v1722
    %v1798 = vunpack.c.h.b16 %v1722
    %v1799 = vunpack.c.l.b16 %v1723
    %v1800 = vunpack.c.h.b16 %v1723
    %v1801 = vunpack.c.l.b16 %v1724
    %v1802 = vunpack.c.h.b16 %v1724
    %v1803 = vunpack.c.l.b16 %v1725
    %v1804 = vunpack.c.h.b16 %v1725
    %v1805 = vunpack.c.l.b16 %v1726
    %v1806 = vunpack.c.h.b16 %v1726
    %v1807 = vunpack.c.l.b16 %v1727
    %v1808 = vunpack.c.h.b16 %v1727
    %v1809 = vunpack.c.l.b16 %v1728
    %v1810 = vunpack.c.h.b16 %v1728
    %v1811 = vunpack.c.l.b16 %v1729
    %v1812 = vunpack.c.h.b16 %v1729
    %v1813 = vunpack.c.l.b16 %v1730
    %v1814 = vunpack.c.h.b16 %v1730
    %v1815 = vunpack.c.l.b16 %v1731
    %v1816 = vunpack.c.h.b16 %v1731
    %v1817 = vunpack.c.l.b16 %v1732
    %v1818 = vunpack.c.h.b16 %v1732
    %v1819 = vunpack.c.l.b16 %v1733
    %v1820 = vunpack.c.h.b16 %v1733
    %v1821 = vunpack.c.l.b16 %v1734
    %v1822 = vunpack.c.h.b16 %v1734
    %v1823 = vunpack.c.l.b16 %v1735
    %v1824 = vunpack.c.h.b16 %v1735
    %v1825 = vunpack.c.l.b16 %v1736
    %v1826 = vunpack.c.h.b16 %v1736
    %v1827 = vunpack.c.l.b16 %v1737
    %v1828 = vunpack.c.h.b16 %v1737
    %v1829 = vunpack.c.l.b16 %v1738
    %v1830 = vunpack.c.h.b16 %v1738
    %v1831 = vunpack.c.l.b16 %v1739
    %v1832 = vunpack.c.h.b16 %v1739
    %v1833 = vunpack.c.l.b16 %v1740
    %v1834 = vunpack.c.h.b16 %v1740
    %v1835 = vunpack.c.l.b16 %v1741
    %v1836 = vunpack.c.h.b16 %v1741
    %v1837 = vunpack.c.l.b16 %v1742
    %v1838 = vunpack.c.h.b16 %v1742
    %v1839 = vunpack.c.l.b16 %v1743
    %v1840 = vunpack.c.h.b16 %v1743
    %v1841 = vunpack.c.l.b16 %v1744
    %v1842 = vunpack.c.h.b16 %v1744
    %v1843 = vunpack.c.l.b16 %v1745
    %v1844 = vunpack.c.h.b16 %v1745
    %v1845 = vunpack.c.l.b16 %v1746
    %v1846 = vunpack.c.h.b16 %v1746
    %v1847 = vunpack.c.l.b16 %v1747
    %v1848 = vunpack.c.h.b16 %v1747
    %v1849 = vunpack.c.l.b16 %v1748
    %v1850 = vunpack.c.h.b16 %v1748
    %v1851 = vpack.c.b16 %v1791, %v1787
    %v1852 = vpack.c.b16 %v1792, %v1788
    %v1853 = vpack.c.b16 %v1793, %v1789
    %v1854 = vpack.c.b16 %v1794, %v1790
    %v1855 = vpack.c.b16 %v1799, %v1795
    %v1856 = vpack.c.b16 %v1800, %v1796
    %v1857 = vpack.c.b16 %v1801, %v1797
    %v1858 = vpack.c.b16 %v1802, %v1798
    %v1859 = vpack.c.b16 %v1807, %v1803
    %v1860 = vpack.c.b16 %v1808, %v1804
    %v1861 = vpack.c.b16 %v1809, %v1805
    %v1862 = vpack.c.b16 %v1810, %v1806
    %v1863 = vpack.c.b16 %v1815, %v1811
    %v1864 = vpack.c.b16 %v1816, %v1812
    %v1865 = vpack.c.b16 %v1817, %v1813
    %v1866 = vpack.c.b16 %v1818, %v1814
    %v1867 = vpack.c.b16 %v1823, %v1819
    %v1868 = vpack.c.b16 %v1824, %v1820
    %v1869 = vpack.c.b16 %v1825, %v1821
    %v1870 = vpack.c.b16 %v1826, %v1822
    %v1871 = vpack.c.b16 %v1831, %v1827
    %v1872 = vpack.c.b16 %v1832, %v1828
    %v1873 = vpack.c.b16 %v1833, %v1829
    %v1874 = vpack.c.b16 %v1834, %v1830
    %v1875 = vpack.c.b16 %v1839, %v1835
    %v1876 = vpack.c.b16 %v1840, %v1836
    %v1877 = vpack.c.b16 %v1841, %v1837
    %v1878 = vpack.c.b16 %v1842, %v1838
    %v1879 = vpack.c.b16 %v1847, %v1843
    %v1880 = vpack.c.b16 %v1848, %v1844
    %v1881 = vpack.c.b16 %v1849, %v1845
    %v1882 = vpack.c.b16 %v1850, %v1846
    %1915 = vmatpush.bf16.msra.mxu0 %v1879
    %1916 = vmatpush.bf16.msra.mxu0 %v1875
    %1917 = vmatpush.bf16.msra.mxu0 %v1871
    %1918 = vmatpush.bf16.msra.mxu0 %v1867
    %1919 = vmatpush.bf16.msra.mxu0 %v1863
    %1920 = vmatpush.bf16.msra.mxu0 %v1859
    %1921 = vmatpush.bf16.msra.mxu0 %v1855
    %1922 = vmatpush.bf16.msra.mxu0 %v1851
    %1923 = vmatmul.bf16.gmra.mxu0 %v1753
    %v1924 = vpop.f32.mrf.mxu0
    %v1925 = vadd.f32 0.0, %v1924
    %v1926 = vpop.f32.mrf.mxu0
    %v1927 = vadd.f32 0.0, %v1926
    %1928 = vdwg.mxu0
    %1929 = vmatpush.bf16.msra.mxu0 %v1880
    %1930 = vmatpush.bf16.msra.mxu0 %v1876
    %1931 = vmatpush.bf16.msra.mxu0 %v1872
    %1932 = vmatpush.bf16.msra.mxu0 %v1868
    %1933 = vmatpush.bf16.msra.mxu0 %v1864
    %1934 = vmatpush.bf16.msra.mxu0 %v1860
    %1935 = vmatpush.bf16.msra.mxu0 %v1856
    %1936 = vmatpush.bf16.msra.mxu0 %v1852
    %1937 = vmatmul.bf16.gmra.mxu0 %v1753
    %v1938 = vpop.f32.mrf.mxu0
    %v1939 = vadd.f32 0.0, %v1938
    %v1940 = vpop.f32.mrf.mxu0
    %v1941 = vadd.f32 0.0, %v1940
    %1942 = vdwg.mxu0
    %1943 = vmatpush.bf16.msra.mxu0 %v1881
    %1944 = vmatpush.bf16.msra.mxu0 %v1877
    %1945 = vmatpush.bf16.msra.mxu0 %v1873
    %1946 = vmatpush.bf16.msra.mxu0 %v1869
    %1947 = vmatpush.bf16.msra.mxu0 %v1865
    %1948 = vmatpush.bf16.msra.mxu0 %v1861
    %1949 = vmatpush.bf16.msra.mxu0 %v1857
    %1950 = vmatpush.bf16.msra.mxu0 %v1853
    %1951 = vmatmul.bf16.gmra.mxu0 %v1753
    %v1952 = vpop.f32.mrf.mxu0
    %v1953 = vadd.f32 0.0, %v1952
    %v1954 = vpop.f32.mrf.mxu0
    %v1955 = vadd.f32 0.0, %v1954
    %1956 = vdwg.mxu0
    %1957 = vmatpush.bf16.msra.mxu0 %v1882
    %1958 = vmatpush.bf16.msra.mxu0 %v1878
    %1959 = vmatpush.bf16.msra.mxu0 %v1874
    %1960 = vmatpush.bf16.msra.mxu0 %v1870
    %1961 = vmatpush.bf16.msra.mxu0 %v1866
    %1962 = vmatpush.bf16.msra.mxu0 %v1862
    %1963 = vmatpush.bf16.msra.mxu0 %v1858
    %1964 = vmatpush.bf16.msra.mxu0 %v1854
    %1965 = vmatmul.bf16.gmra.mxu0 %v1753
    %v1966 = vpop.f32.mrf.mxu0
    %v1967 = vadd.f32 0.0, %v1966
    %v1968 = vpop.f32.mrf.mxu0
    %v1969 = vadd.f32 0.0, %v1968
    %1970 = vdwg.mxu0
    %v1971 = vadd.f32 %v1707, %v1925
    %v1972 = vadd.f32 %v1708, %v1939
    %v1973 = vadd.f32 %v1709, %v1953
    %v1974 = vadd.f32 %v1710, %v1967
    %v1975 = vadd.f32 %v1711, %v1927
    %v1976 = vadd.f32 %v1712, %v1941
    %v1977 = vadd.f32 %v1713, %v1955
    %v1978 = vadd.f32 %v1714, %v1969
    %v1979 = vxor.u32 %v1971, 2147483648
    %v1980 = vxor.u32 %v1972, 2147483648
    %v1981 = vxor.u32 %v1973, 2147483648
    %v1982 = vxor.u32 %v1975, 2147483648
    %v1983 = vxor.u32 %v1976, 2147483648
    %v1984 = vxor.u32 %v1977, 2147483648
    %v1985 = vmul.f32 %v1979, 1.442695
    %v1986 = vpow.pop %v1985
    %v1987 = vmul.f32 %v1980, 1.442695
    %v1988 = vpow.pop %v1987
    %v1989 = vmul.f32 %v1981, 1.442695
    %v1990 = vpow.pop %v1989
    %v1991 = vmul.f32 %v1982, 1.442695
    %v1992 = vpow.pop %v1991
    %v1993 = vmul.f32 %v1983, 1.442695
    %v1994 = vpow.pop %v1993
    %v1995 = vmul.f32 %v1984, 1.442695
    %v1996 = vpow.pop %v1995
    %v1997 = vadd.f32 %v1986, 1.0
    %v1998 = vadd.f32 %v1988, 1.0
    %v1999 = vadd.f32 %v1990, 1.0
    %v2000 = vadd.f32 %v1992, 1.0
    %v2001 = vadd.f32 %v1994, 1.0
    %v2002 = vadd.f32 %v1996, 1.0
    %v2003 = vrcp.pop %v1997
    %v2004 = vmul.f32 %v1997, %v2003
    %v2005 = vsub.f32 1.0, %v2004
    %v2006 = vmul.f32 %v2003, %v2005
    %v2007 = vadd.f32 %v2003, %v2006
    %vm2008 = vweird.f32 %v1997
    %vm2009 = vweird.f32 %v2003
    %vm2010 = vmor %vm2008, %vm2009
    %v2011 = vsel %vm2010, %v2003, %v2007
    %v2012 = vand.u32 2147483647, %v1997
    %vm2013 = vcmp.eq.f32.partialorder %v2012, 8.507059e+37
    %v2014 = vand.u32 %v1997, 2147483648
    %v2015 = vor.u32 1.1754944e-38, %v2014
    %v2016 = vsel %vm2013, %v2015, %v2011
    %v2017 = vmul.f32 1.0, %v2016
    %v2018 = vrcp.pop %v1998
    %v2019 = vmul.f32 %v1998, %v2018
    %v2020 = vsub.f32 1.0, %v2019
    %v2021 = vmul.f32 %v2018, %v2020
    %v2022 = vadd.f32 %v2018, %v2021
    %vm2023 = vweird.f32 %v1998
    %vm2024 = vweird.f32 %v2018
    %vm2025 = vmor %vm2023, %vm2024
    %v2026 = vsel %vm2025, %v2018, %v2022
    %v2027 = vand.u32 2147483647, %v1998
    %vm2028 = vcmp.eq.f32.partialorder %v2027, 8.507059e+37
    %v2029 = vand.u32 %v1998, 2147483648
    %v2030 = vor.u32 1.1754944e-38, %v2029
    %v2031 = vsel %vm2028, %v2030, %v2026
    %v2032 = vmul.f32 1.0, %v2031
    %v2033 = vrcp.pop %v1999
    %v2034 = vmul.f32 %v1999, %v2033
    %v2035 = vsub.f32 1.0, %v2034
    %v2036 = vmul.f32 %v2033, %v2035
    %v2037 = vadd.f32 %v2033, %v2036
    %vm2038 = vweird.f32 %v1999
    %vm2039 = vweird.f32 %v2033
    %vm2040 = vmor %vm2038, %vm2039
    %v2041 = vsel %vm2040, %v2033, %v2037
    %v2042 = vand.u32 2147483647, %v1999
    %vm2043 = vcmp.eq.f32.partialorder %v2042, 8.507059e+37
    %v2044 = vand.u32 %v1999, 2147483648
    %v2045 = vor.u32 1.1754944e-38, %v2044
    %v2046 = vsel %vm2043, %v2045, %v2041
    %v2047 = vmul.f32 1.0, %v2046
    %v2048 = vrcp.pop %v2000
    %v2049 = vmul.f32 %v2000, %v2048
    %v2050 = vsub.f32 1.0, %v2049
    %v2051 = vmul.f32 %v2048, %v2050
    %v2052 = vadd.f32 %v2048, %v2051
    %vm2053 = vweird.f32 %v2000
    %vm2054 = vweird.f32 %v2048
    %vm2055 = vmor %vm2053, %vm2054
    %v2056 = vsel %vm2055, %v2048, %v2052
    %v2057 = vand.u32 2147483647, %v2000
    %vm2058 = vcmp.eq.f32.partialorder %v2057, 8.507059e+37
    %v2059 = vand.u32 %v2000, 2147483648
    %v2060 = vor.u32 1.1754944e-38, %v2059
    %v2061 = vsel %vm2058, %v2060, %v2056
    %v2062 = vmul.f32 1.0, %v2061
    %v2063 = vrcp.pop %v2001
    %v2064 = vmul.f32 %v2001, %v2063
    %v2065 = vsub.f32 1.0, %v2064
    %v2066 = vmul.f32 %v2063, %v2065
    %v2067 = vadd.f32 %v2063, %v2066
    %vm2068 = vweird.f32 %v2001
    %vm2069 = vweird.f32 %v2063
    %vm2070 = vmor %vm2068, %vm2069
    %v2071 = vsel %vm2070, %v2063, %v2067
    %v2072 = vand.u32 2147483647, %v2001
    %vm2073 = vcmp.eq.f32.partialorder %v2072, 8.507059e+37
    %v2074 = vand.u32 %v2001, 2147483648
    %v2075 = vor.u32 1.1754944e-38, %v2074
    %v2076 = vsel %vm2073, %v2075, %v2071
    %v2077 = vmul.f32 1.0, %v2076
    %v2078 = vrcp.pop %v2002
    %v2079 = vmul.f32 %v2002, %v2078
    %v2080 = vsub.f32 1.0, %v2079
    %v2081 = vmul.f32 %v2078, %v2080
    %v2082 = vadd.f32 %v2078, %v2081
    %vm2083 = vweird.f32 %v2002
    %vm2084 = vweird.f32 %v2078
    %vm2085 = vmor %vm2083, %vm2084
    %v2086 = vsel %vm2085, %v2078, %v2082
    %v2087 = vand.u32 2147483647, %v2002
    %vm2088 = vcmp.eq.f32.partialorder %v2087, 8.507059e+37
    %v2089 = vand.u32 %v2002, 2147483648
    %v2090 = vor.u32 1.1754944e-38, %v2089
    %v2091 = vsel %vm2088, %v2090, %v2086
    %v2092 = vmul.f32 1.0, %v2091
    %v2093 = vtanh.pop %v1974
    %v2094 = vtanh.pop %v1978
    %v2095 = vld [vmem:[#allocation3] sm:$0xff]
    %v2096 = vld [vmem:[#allocation3 + $0x8] sm:$0xff]
    %v2097 = vmul.f32 %v2032, %v2095
    %v2098 = vmul.f32 %v2077, %v2096
    %v2099 = vmul.f32 %v2017, %v2093
    %v2100 = vmul.f32 %v2062, %v2094
    %v2101 = vadd.f32 %v2097, %v2099
    %v2102 = vadd.f32 %v2098, %v2100
    %v2103 = vtanh.pop %v2101
    %v2104 = vtanh.pop %v2102
    %v2105 = vmul.f32 %v2047, %v2103
    %v2106 = vmul.f32 %v2092, %v2104
    %2107 = vst [vmem:[#allocation3] sm:$0xff] %v2101
    %2108 = vst [vmem:[#allocation3 + $0x8] sm:$0xff] %v2102
    %v2109 = vpack.c.bf16 %v2105, %v2105
    %v2110 = vpack.c.bf16 %v2106, %v2106
    %2111 = vst [vmem:[#allocation2] sm:$0xf] %v2109
    %2112 = vst [vmem:[#allocation2 + $0x4] sm:$0xf] %v2110
    %s2113 = scalar_lea.vmem %s4, 32
    %2114 = vst [vmem:[%s2113] sm:$0xf] %v2109
    %2115 = vst [vmem:[%s2113 + $0x4] sm:$0xf] %v2110
    %v2116 = vpack.c.bf16 %v2101, %v2101
    %v2117 = vpack.c.bf16 %v2102, %v2102
    %s2118 = scalar_lea.vmem %s5, 32
    %2119 = vst [vmem:[%s2118] sm:$0xf] %v2116
    %2120 = vst [vmem:[%s2118 + $0x4] sm:$0xf] %v2117
    %s2121 = scalar_lea.vmem %s0, 320
    %v2122 = vld [vmem:[%s2121] sm:$0xff]
    %v2123 = vld [vmem:[%s2121 + $0x8] sm:$0xff]
    %v2124 = vld [vmem:[%s2121 + $0x10] sm:$0xff]
    %v2125 = vld [vmem:[%s2121 + $0x18] sm:$0xff]
    %v2126 = vld [vmem:[%s2121 + $0x20] sm:$0xff]
    %v2127 = vld [vmem:[%s2121 + $0x28] sm:$0xff]
    %v2128 = vld [vmem:[%s2121 + $0x30] sm:$0xff]
    %v2129 = vld [vmem:[%s2121 + $0x38] sm:$0xff]
    %v2130 = vld [vmem:[#allocation2] sm:$0xf]
    %v2131 = vld [vmem:[#allocation2 + $0x4] sm:$0xf]
    %v2132 = vld [vmem:[#allocation4] sm:$0xff]
    %v2133 = vld [vmem:[#allocation4 + $0x8] sm:$0xff]
    %v2134 = vld [vmem:[#allocation4 + $0x10] sm:$0xff]
    %v2135 = vld [vmem:[#allocation4 + $0x18] sm:$0xff]
    %v2136 = vld [vmem:[#allocation4 + $0x20] sm:$0xff]
    %v2137 = vld [vmem:[#allocation4 + $0x28] sm:$0xff]
    %v2138 = vld [vmem:[#allocation4 + $0x30] sm:$0xff]
    %v2139 = vld [vmem:[#allocation4 + $0x38] sm:$0xff]
    %v2140 = vld [vmem:[#allocation4 + $0x40] sm:$0xff]
    %v2141 = vld [vmem:[#allocation4 + $0x48] sm:$0xff]
    %v2142 = vld [vmem:[#allocation4 + $0x50] sm:$0xff]
    %v2143 = vld [vmem:[#allocation4 + $0x58] sm:$0xff]
    %v2144 = vld [vmem:[#allocation4 + $0x60] sm:$0xff]
    %v2145 = vld [vmem:[#allocation4 + $0x68] sm:$0xff]
    %v2146 = vld [vmem:[#allocation4 + $0x70] sm:$0xff]
    %v2147 = vld [vmem:[#allocation4 + $0x78] sm:$0xff]
    %v2148 = vld [vmem:[#allocation4 + $0x80] sm:$0xff]
    %v2149 = vld [vmem:[#allocation4 + $0x88] sm:$0xff]
    %v2150 = vld [vmem:[#allocation4 + $0x90] sm:$0xff]
    %v2151 = vld [vmem:[#allocation4 + $0x98] sm:$0xff]
    %v2152 = vld [vmem:[#allocation4 + $0xa0] sm:$0xff]
    %v2153 = vld [vmem:[#allocation4 + $0xa8] sm:$0xff]
    %v2154 = vld [vmem:[#allocation4 + $0xb0] sm:$0xff]
    %v2155 = vld [vmem:[#allocation4 + $0xb8] sm:$0xff]
    %v2156 = vld [vmem:[#allocation4 + $0xc0] sm:$0xff]
    %v2157 = vld [vmem:[#allocation4 + $0xc8] sm:$0xff]
    %v2158 = vld [vmem:[#allocation4 + $0xd0] sm:$0xff]
    %v2159 = vld [vmem:[#allocation4 + $0xd8] sm:$0xff]
    %v2160 = vld [vmem:[#allocation4 + $0xe0] sm:$0xff]
    %v2161 = vld [vmem:[#allocation4 + $0xe8] sm:$0xff]
    %v2162 = vld [vmem:[#allocation4 + $0xf0] sm:$0xff]
    %v2163 = vld [vmem:[#allocation4 + $0xf8] sm:$0xff]
    %v2166 = vunpack.c.l.b16 %v2130
    %v2167 = vunpack.c.l.b16 %v2131
    %v2168 = vpack.c.b16 %v2167, %v2166
    %v2202 = vunpack.c.l.b16 %v2132
    %v2203 = vunpack.c.h.b16 %v2132
    %v2204 = vunpack.c.l.b16 %v2133
    %v2205 = vunpack.c.h.b16 %v2133
    %v2206 = vunpack.c.l.b16 %v2134
    %v2207 = vunpack.c.h.b16 %v2134
    %v2208 = vunpack.c.l.b16 %v2135
    %v2209 = vunpack.c.h.b16 %v2135
    %v2210 = vunpack.c.l.b16 %v2136
    %v2211 = vunpack.c.h.b16 %v2136
    %v2212 = vunpack.c.l.b16 %v2137
    %v2213 = vunpack.c.h.b16 %v2137
    %v2214 = vunpack.c.l.b16 %v2138
    %v2215 = vunpack.c.h.b16 %v2138
    %v2216 = vunpack.c.l.b16 %v2139
    %v2217 = vunpack.c.h.b16 %v2139
    %v2218 = vunpack.c.l.b16 %v2140
    %v2219 = vunpack.c.h.b16 %v2140
    %v2220 = vunpack.c.l.b16 %v2141
    %v2221 = vunpack.c.h.b16 %v2141
    %v2222 = vunpack.c.l.b16 %v2142
    %v2223 = vunpack.c.h.b16 %v2142
    %v2224 = vunpack.c.l.b16 %v2143
    %v2225 = vunpack.c.h.b16 %v2143
    %v2226 = vunpack.c.l.b16 %v2144
    %v2227 = vunpack.c.h.b16 %v2144
    %v2228 = vunpack.c.l.b16 %v2145
    %v2229 = vunpack.c.h.b16 %v2145
    %v2230 = vunpack.c.l.b16 %v2146
    %v2231 = vunpack.c.h.b16 %v2146
    %v2232 = vunpack.c.l.b16 %v2147
    %v2233 = vunpack.c.h.b16 %v2147
    %v2234 = vunpack.c.l.b16 %v2148
    %v2235 = vunpack.c.h.b16 %v2148
    %v2236 = vunpack.c.l.b16 %v2149
    %v2237 = vunpack.c.h.b16 %v2149
    %v2238 = vunpack.c.l.b16 %v2150
    %v2239 = vunpack.c.h.b16 %v2150
    %v2240 = vunpack.c.l.b16 %v2151
    %v2241 = vunpack.c.h.b16 %v2151
    %v2242 = vunpack.c.l.b16 %v2152
    %v2243 = vunpack.c.h.b16 %v2152
    %v2244 = vunpack.c.l.b16 %v2153
    %v2245 = vunpack.c.h.b16 %v2153
    %v2246 = vunpack.c.l.b16 %v2154
    %v2247 = vunpack.c.h.b16 %v2154
    %v2248 = vunpack.c.l.b16 %v2155
    %v2249 = vunpack.c.h.b16 %v2155
    %v2250 = vunpack.c.l.b16 %v2156
    %v2251 = vunpack.c.h.b16 %v2156
    %v2252 = vunpack.c.l.b16 %v2157
    %v2253 = vunpack.c.h.b16 %v2157
    %v2254 = vunpack.c.l.b16 %v2158
    %v2255 = vunpack.c.h.b16 %v2158
    %v2256 = vunpack.c.l.b16 %v2159
    %v2257 = vunpack.c.h.b16 %v2159
    %v2258 = vunpack.c.l.b16 %v2160
    %v2259 = vunpack.c.h.b16 %v2160
    %v2260 = vunpack.c.l.b16 %v2161
    %v2261 = vunpack.c.h.b16 %v2161
    %v2262 = vunpack.c.l.b16 %v2162
    %v2263 = vunpack.c.h.b16 %v2162
    %v2264 = vunpack.c.l.b16 %v2163
    %v2265 = vunpack.c.h.b16 %v2163
    %v2266 = vpack.c.b16 %v2206, %v2202
    %v2267 = vpack.c.b16 %v2207, %v2203
    %v2268 = vpack.c.b16 %v2208, %v2204
    %v2269 = vpack.c.b16 %v2209, %v2205
    %v2270 = vpack.c.b16 %v2214, %v2210
    %v2271 = vpack.c.b16 %v2215, %v2211
    %v2272 = vpack.c.b16 %v2216, %v2212
    %v2273 = vpack.c.b16 %v2217, %v2213
    %v2274 = vpack.c.b16 %v2222, %v2218
    %v2275 = vpack.c.b16 %v2223, %v2219
    %v2276 = vpack.c.b16 %v2224, %v2220
    %v2277 = vpack.c.b16 %v2225, %v2221
    %v2278 = vpack.c.b16 %v2230, %v2226
    %v2279 = vpack.c.b16 %v2231, %v2227
    %v2280 = vpack.c.b16 %v2232, %v2228
    %v2281 = vpack.c.b16 %v2233, %v2229
    %v2282 = vpack.c.b16 %v2238, %v2234
    %v2283 = vpack.c.b16 %v2239, %v2235
    %v2284 = vpack.c.b16 %v2240, %v2236
    %v2285 = vpack.c.b16 %v2241, %v2237
    %v2286 = vpack.c.b16 %v2246, %v2242
    %v2287 = vpack.c.b16 %v2247, %v2243
    %v2288 = vpack.c.b16 %v2248, %v2244
    %v2289 = vpack.c.b16 %v2249, %v2245
    %v2290 = vpack.c.b16 %v2254, %v2250
    %v2291 = vpack.c.b16 %v2255, %v2251
    %v2292 = vpack.c.b16 %v2256, %v2252
    %v2293 = vpack.c.b16 %v2257, %v2253
    %v2294 = vpack.c.b16 %v2262, %v2258
    %v2295 = vpack.c.b16 %v2263, %v2259
    %v2296 = vpack.c.b16 %v2264, %v2260
    %v2297 = vpack.c.b16 %v2265, %v2261
    %2330 = vmatpush.bf16.msra.mxu0 %v2294
    %2331 = vmatpush.bf16.msra.mxu0 %v2290
    %2332 = vmatpush.bf16.msra.mxu0 %v2286
    %2333 = vmatpush.bf16.msra.mxu0 %v2282
    %2334 = vmatpush.bf16.msra.mxu0 %v2278
    %2335 = vmatpush.bf16.msra.mxu0 %v2274
    %2336 = vmatpush.bf16.msra.mxu0 %v2270
    %2337 = vmatpush.bf16.msra.mxu0 %v2266
    %2338 = vmatmul.bf16.gmra.mxu0 %v2168
    %v2339 = vpop.f32.mrf.mxu0
    %v2340 = vadd.f32 0.0, %v2339
    %v2341 = vpop.f32.mrf.mxu0
    %v2342 = vadd.f32 0.0, %v2341
    %2343 = vdwg.mxu0
    %2344 = vmatpush.bf16.msra.mxu0 %v2295
    %2345 = vmatpush.bf16.msra.mxu0 %v2291
    %2346 = vmatpush.bf16.msra.mxu0 %v2287
    %2347 = vmatpush.bf16.msra.mxu0 %v2283
    %2348 = vmatpush.bf16.msra.mxu0 %v2279
    %2349 = vmatpush.bf16.msra.mxu0 %v2275
    %2350 = vmatpush.bf16.msra.mxu0 %v2271
    %2351 = vmatpush.bf16.msra.mxu0 %v2267
    %2352 = vmatmul.bf16.gmra.mxu0 %v2168
    %v2353 = vpop.f32.mrf.mxu0
    %v2354 = vadd.f32 0.0, %v2353
    %v2355 = vpop.f32.mrf.mxu0
    %v2356 = vadd.f32 0.0, %v2355
    %2357 = vdwg.mxu0
    %2358 = vmatpush.bf16.msra.mxu0 %v2296
    %2359 = vmatpush.bf16.msra.mxu0 %v2292
    %2360 = vmatpush.bf16.msra.mxu0 %v2288
    %2361 = vmatpush.bf16.msra.mxu0 %v2284
    %2362 = vmatpush.bf16.msra.mxu0 %v2280
    %2363 = vmatpush.bf16.msra.mxu0 %v2276
    %2364 = vmatpush.bf16.msra.mxu0 %v2272
    %2365 = vmatpush.bf16.msra.mxu0 %v2268
    %2366 = vmatmul.bf16.gmra.mxu0 %v2168
    %v2367 = vpop.f32.mrf.mxu0
    %v2368 = vadd.f32 0.0, %v2367
    %v2369 = vpop.f32.mrf.mxu0
    %v2370 = vadd.f32 0.0, %v2369
    %2371 = vdwg.mxu0
    %2372 = vmatpush.bf16.msra.mxu0 %v2297
    %2373 = vmatpush.bf16.msra.mxu0 %v2293
    %2374 = vmatpush.bf16.msra.mxu0 %v2289
    %2375 = vmatpush.bf16.msra.mxu0 %v2285
    %2376 = vmatpush.bf16.msra.mxu0 %v2281
    %2377 = vmatpush.bf16.msra.mxu0 %v2277
    %2378 = vmatpush.bf16.msra.mxu0 %v2273
    %2379 = vmatpush.bf16.msra.mxu0 %v2269
    %2380 = vmatmul.bf16.gmra.mxu0 %v2168
    %v2381 = vpop.f32.mrf.mxu0
    %v2382 = vadd.f32 0.0, %v2381
    %v2383 = vpop.f32.mrf.mxu0
    %v2384 = vadd.f32 0.0, %v2383
    %2385 = vdwg.mxu0
    %v2386 = vadd.f32 %v2122, %v2340
    %v2387 = vadd.f32 %v2123, %v2354
    %v2388 = vadd.f32 %v2124, %v2368
    %v2389 = vadd.f32 %v2125, %v2382
    %v2390 = vadd.f32 %v2126, %v2342
    %v2391 = vadd.f32 %v2127, %v2356
    %v2392 = vadd.f32 %v2128, %v2370
    %v2393 = vadd.f32 %v2129, %v2384
    %v2394 = vxor.u32 %v2386, 2147483648
    %v2395 = vxor.u32 %v2387, 2147483648
    %v2396 = vxor.u32 %v2388, 2147483648
    %v2397 = vxor.u32 %v2390, 2147483648
    %v2398 = vxor.u32 %v2391, 2147483648
    %v2399 = vxor.u32 %v2392, 2147483648
    %v2400 = vmul.f32 %v2394, 1.442695
    %v2401 = vpow.pop %v2400
    %v2402 = vmul.f32 %v2395, 1.442695
    %v2403 = vpow.pop %v2402
    %v2404 = vmul.f32 %v2396, 1.442695
    %v2405 = vpow.pop %v2404
    %v2406 = vmul.f32 %v2397, 1.442695
    %v2407 = vpow.pop %v2406
    %v2408 = vmul.f32 %v2398, 1.442695
    %v2409 = vpow.pop %v2408
    %v2410 = vmul.f32 %v2399, 1.442695
    %v2411 = vpow.pop %v2410
    %v2412 = vadd.f32 %v2401, 1.0
    %v2413 = vadd.f32 %v2403, 1.0
    %v2414 = vadd.f32 %v2405, 1.0
    %v2415 = vadd.f32 %v2407, 1.0
    %v2416 = vadd.f32 %v2409, 1.0
    %v2417 = vadd.f32 %v2411, 1.0
    %v2418 = vrcp.pop %v2412
    %v2419 = vmul.f32 %v2412, %v2418
    %v2420 = vsub.f32 1.0, %v2419
    %v2421 = vmul.f32 %v2418, %v2420
    %v2422 = vadd.f32 %v2418, %v2421
    %vm2423 = vweird.f32 %v2412
    %vm2424 = vweird.f32 %v2418
    %vm2425 = vmor %vm2423, %vm2424
    %v2426 = vsel %vm2425, %v2418, %v2422
    %v2427 = vand.u32 2147483647, %v2412
    %vm2428 = vcmp.eq.f32.partialorder %v2427, 8.507059e+37
    %v2429 = vand.u32 %v2412, 2147483648
    %v2430 = vor.u32 1.1754944e-38, %v2429
    %v2431 = vsel %vm2428, %v2430, %v2426
    %v2432 = vmul.f32 1.0, %v2431
    %v2433 = vrcp.pop %v2413
    %v2434 = vmul.f32 %v2413, %v2433
    %v2435 = vsub.f32 1.0, %v2434
    %v2436 = vmul.f32 %v2433, %v2435
    %v2437 = vadd.f32 %v2433, %v2436
    %vm2438 = vweird.f32 %v2413
    %vm2439 = vweird.f32 %v2433
    %vm2440 = vmor %vm2438, %vm2439
    %v2441 = vsel %vm2440, %v2433, %v2437
    %v2442 = vand.u32 2147483647, %v2413
    %vm2443 = vcmp.eq.f32.partialorder %v2442, 8.507059e+37
    %v2444 = vand.u32 %v2413, 2147483648
    %v2445 = vor.u32 1.1754944e-38, %v2444
    %v2446 = vsel %vm2443, %v2445, %v2441
    %v2447 = vmul.f32 1.0, %v2446
    %v2448 = vrcp.pop %v2414
    %v2449 = vmul.f32 %v2414, %v2448
    %v2450 = vsub.f32 1.0, %v2449
    %v2451 = vmul.f32 %v2448, %v2450
    %v2452 = vadd.f32 %v2448, %v2451
    %vm2453 = vweird.f32 %v2414
    %vm2454 = vweird.f32 %v2448
    %vm2455 = vmor %vm2453, %vm2454
    %v2456 = vsel %vm2455, %v2448, %v2452
    %v2457 = vand.u32 2147483647, %v2414
    %vm2458 = vcmp.eq.f32.partialorder %v2457, 8.507059e+37
    %v2459 = vand.u32 %v2414, 2147483648
    %v2460 = vor.u32 1.1754944e-38, %v2459
    %v2461 = vsel %vm2458, %v2460, %v2456
    %v2462 = vmul.f32 1.0, %v2461
    %v2463 = vrcp.pop %v2415
    %v2464 = vmul.f32 %v2415, %v2463
    %v2465 = vsub.f32 1.0, %v2464
    %v2466 = vmul.f32 %v2463, %v2465
    %v2467 = vadd.f32 %v2463, %v2466
    %vm2468 = vweird.f32 %v2415
    %vm2469 = vweird.f32 %v2463
    %vm2470 = vmor %vm2468, %vm2469
    %v2471 = vsel %vm2470, %v2463, %v2467
    %v2472 = vand.u32 2147483647, %v2415
    %vm2473 = vcmp.eq.f32.partialorder %v2472, 8.507059e+37
    %v2474 = vand.u32 %v2415, 2147483648
    %v2475 = vor.u32 1.1754944e-38, %v2474
    %v2476 = vsel %vm2473, %v2475, %v2471
    %v2477 = vmul.f32 1.0, %v2476
    %v2478 = vrcp.pop %v2416
    %v2479 = vmul.f32 %v2416, %v2478
    %v2480 = vsub.f32 1.0, %v2479
    %v2481 = vmul.f32 %v2478, %v2480
    %v2482 = vadd.f32 %v2478, %v2481
    %vm2483 = vweird.f32 %v2416
    %vm2484 = vweird.f32 %v2478
    %vm2485 = vmor %vm2483, %vm2484
    %v2486 = vsel %vm2485, %v2478, %v2482
    %v2487 = vand.u32 2147483647, %v2416
    %vm2488 = vcmp.eq.f32.partialorder %v2487, 8.507059e+37
    %v2489 = vand.u32 %v2416, 2147483648
    %v2490 = vor.u32 1.1754944e-38, %v2489
    %v2491 = vsel %vm2488, %v2490, %v2486
    %v2492 = vmul.f32 1.0, %v2491
    %v2493 = vrcp.pop %v2417
    %v2494 = vmul.f32 %v2417, %v2493
    %v2495 = vsub.f32 1.0, %v2494
    %v2496 = vmul.f32 %v2493, %v2495
    %v2497 = vadd.f32 %v2493, %v2496
    %vm2498 = vweird.f32 %v2417
    %vm2499 = vweird.f32 %v2493
    %vm2500 = vmor %vm2498, %vm2499
    %v2501 = vsel %vm2500, %v2493, %v2497
    %v2502 = vand.u32 2147483647, %v2417
    %vm2503 = vcmp.eq.f32.partialorder %v2502, 8.507059e+37
    %v2504 = vand.u32 %v2417, 2147483648
    %v2505 = vor.u32 1.1754944e-38, %v2504
    %v2506 = vsel %vm2503, %v2505, %v2501
    %v2507 = vmul.f32 1.0, %v2506
    %v2508 = vtanh.pop %v2389
    %v2509 = vtanh.pop %v2393
    %v2510 = vld [vmem:[#allocation3] sm:$0xff]
    %v2511 = vld [vmem:[#allocation3 + $0x8] sm:$0xff]
    %v2512 = vmul.f32 %v2447, %v2510
    %v2513 = vmul.f32 %v2492, %v2511
    %v2514 = vmul.f32 %v2432, %v2508
    %v2515 = vmul.f32 %v2477, %v2509
    %v2516 = vadd.f32 %v2512, %v2514
    %v2517 = vadd.f32 %v2513, %v2515
    %v2518 = vtanh.pop %v2516
    %v2519 = vtanh.pop %v2517
    %v2520 = vmul.f32 %v2462, %v2518
    %v2521 = vmul.f32 %v2507, %v2519
    %2522 = vst [vmem:[#allocation3] sm:$0xff] %v2516
    %2523 = vst [vmem:[#allocation3 + $0x8] sm:$0xff] %v2517
    %v2524 = vpack.c.bf16 %v2520, %v2520
    %v2525 = vpack.c.bf16 %v2521, %v2521
    %2526 = vst [vmem:[#allocation2] sm:$0xf] %v2524
    %2527 = vst [vmem:[#allocation2 + $0x4] sm:$0xf] %v2525
    %s2528 = scalar_lea.vmem %s4, 40
    %2529 = vst [vmem:[%s2528] sm:$0xf] %v2524
    %2530 = vst [vmem:[%s2528 + $0x4] sm:$0xf] %v2525
    %v2531 = vpack.c.bf16 %v2516, %v2516
    %v2532 = vpack.c.bf16 %v2517, %v2517
    %s2533 = scalar_lea.vmem %s5, 40
    %2534 = vst [vmem:[%s2533] sm:$0xf] %v2531
    %2535 = vst [vmem:[%s2533 + $0x4] sm:$0xf] %v2532
    %s2536 = scalar_lea.vmem %s0, 384
    %v2537 = vld [vmem:[%s2536] sm:$0xff]
    %v2538 = vld [vmem:[%s2536 + $0x8] sm:$0xff]
    %v2539 = vld [vmem:[%s2536 + $0x10] sm:$0xff]
    %v2540 = vld [vmem:[%s2536 + $0x18] sm:$0xff]
    %v2541 = vld [vmem:[%s2536 + $0x20] sm:$0xff]
    %v2542 = vld [vmem:[%s2536 + $0x28] sm:$0xff]
    %v2543 = vld [vmem:[%s2536 + $0x30] sm:$0xff]
    %v2544 = vld [vmem:[%s2536 + $0x38] sm:$0xff]
    %v2545 = vld [vmem:[#allocation2] sm:$0xf]
    %v2546 = vld [vmem:[#allocation2 + $0x4] sm:$0xf]
    %v2547 = vld [vmem:[#allocation4] sm:$0xff]
    %v2548 = vld [vmem:[#allocation4 + $0x8] sm:$0xff]
    %v2549 = vld [vmem:[#allocation4 + $0x10] sm:$0xff]
    %v2550 = vld [vmem:[#allocation4 + $0x18] sm:$0xff]
    %v2551 = vld [vmem:[#allocation4 + $0x20] sm:$0xff]
    %v2552 = vld [vmem:[#allocation4 + $0x28] sm:$0xff]
    %v2553 = vld [vmem:[#allocation4 + $0x30] sm:$0xff]
    %v2554 = vld [vmem:[#allocation4 + $0x38] sm:$0xff]
    %v2555 = vld [vmem:[#allocation4 + $0x40] sm:$0xff]
    %v2556 = vld [vmem:[#allocation4 + $0x48] sm:$0xff]
    %v2557 = vld [vmem:[#allocation4 + $0x50] sm:$0xff]
    %v2558 = vld [vmem:[#allocation4 + $0x58] sm:$0xff]
    %v2559 = vld [vmem:[#allocation4 + $0x60] sm:$0xff]
    %v2560 = vld [vmem:[#allocation4 + $0x68] sm:$0xff]
    %v2561 = vld [vmem:[#allocation4 + $0x70] sm:$0xff]
    %v2562 = vld [vmem:[#allocation4 + $0x78] sm:$0xff]
    %v2563 = vld [vmem:[#allocation4 + $0x80] sm:$0xff]
    %v2564 = vld [vmem:[#allocation4 + $0x88] sm:$0xff]
    %v2565 = vld [vmem:[#allocation4 + $0x90] sm:$0xff]
    %v2566 = vld [vmem:[#allocation4 + $0x98] sm:$0xff]
    %v2567 = vld [vmem:[#allocation4 + $0xa0] sm:$0xff]
    %v2568 = vld [vmem:[#allocation4 + $0xa8] sm:$0xff]
    %v2569 = vld [vmem:[#allocation4 + $0xb0] sm:$0xff]
    %v2570 = vld [vmem:[#allocation4 + $0xb8] sm:$0xff]
    %v2571 = vld [vmem:[#allocation4 + $0xc0] sm:$0xff]
    %v2572 = vld [vmem:[#allocation4 + $0xc8] sm:$0xff]
    %v2573 = vld [vmem:[#allocation4 + $0xd0] sm:$0xff]
    %v2574 = vld [vmem:[#allocation4 + $0xd8] sm:$0xff]
    %v2575 = vld [vmem:[#allocation4 + $0xe0] sm:$0xff]
    %v2576 = vld [vmem:[#allocation4 + $0xe8] sm:$0xff]
    %v2577 = vld [vmem:[#allocation4 + $0xf0] sm:$0xff]
    %v2578 = vld [vmem:[#allocation4 + $0xf8] sm:$0xff]
    %v2581 = vunpack.c.l.b16 %v2545
    %v2582 = vunpack.c.l.b16 %v2546
    %v2583 = vpack.c.b16 %v2582, %v2581
    %v2617 = vunpack.c.l.b16 %v2547
    %v2618 = vunpack.c.h.b16 %v2547
    %v2619 = vunpack.c.l.b16 %v2548
    %v2620 = vunpack.c.h.b16 %v2548
    %v2621 = vunpack.c.l.b16 %v2549
    %v2622 = vunpack.c.h.b16 %v2549
    %v2623 = vunpack.c.l.b16 %v2550
    %v2624 = vunpack.c.h.b16 %v2550
    %v2625 = vunpack.c.l.b16 %v2551
    %v2626 = vunpack.c.h.b16 %v2551
    %v2627 = vunpack.c.l.b16 %v2552
    %v2628 = vunpack.c.h.b16 %v2552
    %v2629 = vunpack.c.l.b16 %v2553
    %v2630 = vunpack.c.h.b16 %v2553
    %v2631 = vunpack.c.l.b16 %v2554
    %v2632 = vunpack.c.h.b16 %v2554
    %v2633 = vunpack.c.l.b16 %v2555
    %v2634 = vunpack.c.h.b16 %v2555
    %v2635 = vunpack.c.l.b16 %v2556
    %v2636 = vunpack.c.h.b16 %v2556
    %v2637 = vunpack.c.l.b16 %v2557
    %v2638 = vunpack.c.h.b16 %v2557
    %v2639 = vunpack.c.l.b16 %v2558
    %v2640 = vunpack.c.h.b16 %v2558
    %v2641 = vunpack.c.l.b16 %v2559
    %v2642 = vunpack.c.h.b16 %v2559
    %v2643 = vunpack.c.l.b16 %v2560
    %v2644 = vunpack.c.h.b16 %v2560
    %v2645 = vunpack.c.l.b16 %v2561
    %v2646 = vunpack.c.h.b16 %v2561
    %v2647 = vunpack.c.l.b16 %v2562
    %v2648 = vunpack.c.h.b16 %v2562
    %v2649 = vunpack.c.l.b16 %v2563
    %v2650 = vunpack.c.h.b16 %v2563
    %v2651 = vunpack.c.l.b16 %v2564
    %v2652 = vunpack.c.h.b16 %v2564
    %v2653 = vunpack.c.l.b16 %v2565
    %v2654 = vunpack.c.h.b16 %v2565
    %v2655 = vunpack.c.l.b16 %v2566
    %v2656 = vunpack.c.h.b16 %v2566
    %v2657 = vunpack.c.l.b16 %v2567
    %v2658 = vunpack.c.h.b16 %v2567
    %v2659 = vunpack.c.l.b16 %v2568
    %v2660 = vunpack.c.h.b16 %v2568
    %v2661 = vunpack.c.l.b16 %v2569
    %v2662 = vunpack.c.h.b16 %v2569
    %v2663 = vunpack.c.l.b16 %v2570
    %v2664 = vunpack.c.h.b16 %v2570
    %v2665 = vunpack.c.l.b16 %v2571
    %v2666 = vunpack.c.h.b16 %v2571
    %v2667 = vunpack.c.l.b16 %v2572
    %v2668 = vunpack.c.h.b16 %v2572
    %v2669 = vunpack.c.l.b16 %v2573
    %v2670 = vunpack.c.h.b16 %v2573
    %v2671 = vunpack.c.l.b16 %v2574
    %v2672 = vunpack.c.h.b16 %v2574
    %v2673 = vunpack.c.l.b16 %v2575
    %v2674 = vunpack.c.h.b16 %v2575
    %v2675 = vunpack.c.l.b16 %v2576
    %v2676 = vunpack.c.h.b16 %v2576
    %v2677 = vunpack.c.l.b16 %v2577
    %v2678 = vunpack.c.h.b16 %v2577
    %v2679 = vunpack.c.l.b16 %v2578
    %v2680 = vunpack.c.h.b16 %v2578
    %v2681 = vpack.c.b16 %v2621, %v2617
    %v2682 = vpack.c.b16 %v2622, %v2618
    %v2683 = vpack.c.b16 %v2623, %v2619
    %v2684 = vpack.c.b16 %v2624, %v2620
    %v2685 = vpack.c.b16 %v2629, %v2625
    %v2686 = vpack.c.b16 %v2630, %v2626
    %v2687 = vpack.c.b16 %v2631, %v2627
    %v2688 = vpack.c.b16 %v2632, %v2628
    %v2689 = vpack.c.b16 %v2637, %v2633
    %v2690 = vpack.c.b16 %v2638, %v2634
    %v2691 = vpack.c.b16 %v2639, %v2635
    %v2692 = vpack.c.b16 %v2640, %v2636
    %v2693 = vpack.c.b16 %v2645, %v2641
    %v2694 = vpack.c.b16 %v2646, %v2642
    %v2695 = vpack.c.b16 %v2647, %v2643
    %v2696 = vpack.c.b16 %v2648, %v2644
    %v2697 = vpack.c.b16 %v2653, %v2649
    %v2698 = vpack.c.b16 %v2654, %v2650
    %v2699 = vpack.c.b16 %v2655, %v2651
    %v2700 = vpack.c.b16 %v2656, %v2652
    %v2701 = vpack.c.b16 %v2661, %v2657
    %v2702 = vpack.c.b16 %v2662, %v2658
    %v2703 = vpack.c.b16 %v2663, %v2659
    %v2704 = vpack.c.b16 %v2664, %v2660
    %v2705 = vpack.c.b16 %v2669, %v2665
    %v2706 = vpack.c.b16 %v2670, %v2666
    %v2707 = vpack.c.b16 %v2671, %v2667
    %v2708 = vpack.c.b16 %v2672, %v2668
    %v2709 = vpack.c.b16 %v2677, %v2673
    %v2710 = vpack.c.b16 %v2678, %v2674
    %v2711 = vpack.c.b16 %v2679, %v2675
    %v2712 = vpack.c.b16 %v2680, %v2676
    %2745 = vmatpush.bf16.msra.mxu0 %v2709
    %2746 = vmatpush.bf16.msra.mxu0 %v2705
    %2747 = vmatpush.bf16.msra.mxu0 %v2701
    %2748 = vmatpush.bf16.msra.mxu0 %v2697
    %2749 = vmatpush.bf16.msra.mxu0 %v2693
    %2750 = vmatpush.bf16.msra.mxu0 %v2689
    %2751 = vmatpush.bf16.msra.mxu0 %v2685
    %2752 = vmatpush.bf16.msra.mxu0 %v2681
    %2753 = vmatmul.bf16.gmra.mxu0 %v2583
    %v2754 = vpop.f32.mrf.mxu0
    %v2755 = vadd.f32 0.0, %v2754
    %v2756 = vpop.f32.mrf.mxu0
    %v2757 = vadd.f32 0.0, %v2756
    %2758 = vdwg.mxu0
    %2759 = vmatpush.bf16.msra.mxu0 %v2710
    %2760 = vmatpush.bf16.msra.mxu0 %v2706
    %2761 = vmatpush.bf16.msra.mxu0 %v2702
    %2762 = vmatpush.bf16.msra.mxu0 %v2698
    %2763 = vmatpush.bf16.msra.mxu0 %v2694
    %2764 = vmatpush.bf16.msra.mxu0 %v2690
    %2765 = vmatpush.bf16.msra.mxu0 %v2686
    %2766 = vmatpush.bf16.msra.mxu0 %v2682
    %2767 = vmatmul.bf16.gmra.mxu0 %v2583
    %v2768 = vpop.f32.mrf.mxu0
    %v2769 = vadd.f32 0.0, %v2768
    %v2770 = vpop.f32.mrf.mxu0
    %v2771 = vadd.f32 0.0, %v2770
    %2772 = vdwg.mxu0
    %2773 = vmatpush.bf16.msra.mxu0 %v2711
    %2774 = vmatpush.bf16.msra.mxu0 %v2707
    %2775 = vmatpush.bf16.msra.mxu0 %v2703
    %2776 = vmatpush.bf16.msra.mxu0 %v2699
    %2777 = vmatpush.bf16.msra.mxu0 %v2695
    %2778 = vmatpush.bf16.msra.mxu0 %v2691
    %2779 = vmatpush.bf16.msra.mxu0 %v2687
    %2780 = vmatpush.bf16.msra.mxu0 %v2683
    %2781 = vmatmul.bf16.gmra.mxu0 %v2583
    %v2782 = vpop.f32.mrf.mxu0
    %v2783 = vadd.f32 0.0, %v2782
    %v2784 = vpop.f32.mrf.mxu0
    %v2785 = vadd.f32 0.0, %v2784
    %2786 = vdwg.mxu0
    %2787 = vmatpush.bf16.msra.mxu0 %v2712
    %2788 = vmatpush.bf16.msra.mxu0 %v2708
    %2789 = vmatpush.bf16.msra.mxu0 %v2704
    %2790 = vmatpush.bf16.msra.mxu0 %v2700
    %2791 = vmatpush.bf16.msra.mxu0 %v2696
    %2792 = vmatpush.bf16.msra.mxu0 %v2692
    %2793 = vmatpush.bf16.msra.mxu0 %v2688
    %2794 = vmatpush.bf16.msra.mxu0 %v2684
    %2795 = vmatmul.bf16.gmra.mxu0 %v2583
    %v2796 = vpop.f32.mrf.mxu0
    %v2797 = vadd.f32 0.0, %v2796
    %v2798 = vpop.f32.mrf.mxu0
    %v2799 = vadd.f32 0.0, %v2798
    %2800 = vdwg.mxu0
    %v2801 = vadd.f32 %v2537, %v2755
    %v2802 = vadd.f32 %v2538, %v2769
    %v2803 = vadd.f32 %v2539, %v2783
    %v2804 = vadd.f32 %v2540, %v2797
    %v2805 = vadd.f32 %v2541, %v2757
    %v2806 = vadd.f32 %v2542, %v2771
    %v2807 = vadd.f32 %v2543, %v2785
    %v2808 = vadd.f32 %v2544, %v2799
    %v2809 = vxor.u32 %v2801, 2147483648
    %v2810 = vxor.u32 %v2802, 2147483648
    %v2811 = vxor.u32 %v2803, 2147483648
    %v2812 = vxor.u32 %v2805, 2147483648
    %v2813 = vxor.u32 %v2806, 2147483648
    %v2814 = vxor.u32 %v2807, 2147483648
    %v2815 = vmul.f32 %v2809, 1.442695
    %v2816 = vpow.pop %v2815
    %v2817 = vmul.f32 %v2810, 1.442695
    %v2818 = vpow.pop %v2817
    %v2819 = vmul.f32 %v2811, 1.442695
    %v2820 = vpow.pop %v2819
    %v2821 = vmul.f32 %v2812, 1.442695
    %v2822 = vpow.pop %v2821
    %v2823 = vmul.f32 %v2813, 1.442695
    %v2824 = vpow.pop %v2823
    %v2825 = vmul.f32 %v2814, 1.442695
    %v2826 = vpow.pop %v2825
    %v2827 = vadd.f32 %v2816, 1.0
    %v2828 = vadd.f32 %v2818, 1.0
    %v2829 = vadd.f32 %v2820, 1.0
    %v2830 = vadd.f32 %v2822, 1.0
    %v2831 = vadd.f32 %v2824, 1.0
    %v2832 = vadd.f32 %v2826, 1.0
    %v2833 = vrcp.pop %v2827
    %v2834 = vmul.f32 %v2827, %v2833
    %v2835 = vsub.f32 1.0, %v2834
    %v2836 = vmul.f32 %v2833, %v2835
    %v2837 = vadd.f32 %v2833, %v2836
    %vm2838 = vweird.f32 %v2827
    %vm2839 = vweird.f32 %v2833
    %vm2840 = vmor %vm2838, %vm2839
    %v2841 = vsel %vm2840, %v2833, %v2837
    %v2842 = vand.u32 2147483647, %v2827
    %vm2843 = vcmp.eq.f32.partialorder %v2842, 8.507059e+37
    %v2844 = vand.u32 %v2827, 2147483648
    %v2845 = vor.u32 1.1754944e-38, %v2844
    %v2846 = vsel %vm2843, %v2845, %v2841
    %v2847 = vmul.f32 1.0, %v2846
    %v2848 = vrcp.pop %v2828
    %v2849 = vmul.f32 %v2828, %v2848
    %v2850 = vsub.f32 1.0, %v2849
    %v2851 = vmul.f32 %v2848, %v2850
    %v2852 = vadd.f32 %v2848, %v2851
    %vm2853 = vweird.f32 %v2828
    %vm2854 = vweird.f32 %v2848
    %vm2855 = vmor %vm2853, %vm2854
    %v2856 = vsel %vm2855, %v2848, %v2852
    %v2857 = vand.u32 2147483647, %v2828
    %vm2858 = vcmp.eq.f32.partialorder %v2857, 8.507059e+37
    %v2859 = vand.u32 %v2828, 2147483648
    %v2860 = vor.u32 1.1754944e-38, %v2859
    %v2861 = vsel %vm2858, %v2860, %v2856
    %v2862 = vmul.f32 1.0, %v2861
    %v2863 = vrcp.pop %v2829
    %v2864 = vmul.f32 %v2829, %v2863
    %v2865 = vsub.f32 1.0, %v2864
    %v2866 = vmul.f32 %v2863, %v2865
    %v2867 = vadd.f32 %v2863, %v2866
    %vm2868 = vweird.f32 %v2829
    %vm2869 = vweird.f32 %v2863
    %vm2870 = vmor %vm2868, %vm2869
    %v2871 = vsel %vm2870, %v2863, %v2867
    %v2872 = vand.u32 2147483647, %v2829
    %vm2873 = vcmp.eq.f32.partialorder %v2872, 8.507059e+37
    %v2874 = vand.u32 %v2829, 2147483648
    %v2875 = vor.u32 1.1754944e-38, %v2874
    %v2876 = vsel %vm2873, %v2875, %v2871
    %v2877 = vmul.f32 1.0, %v2876
    %v2878 = vrcp.pop %v2830
    %v2879 = vmul.f32 %v2830, %v2878
    %v2880 = vsub.f32 1.0, %v2879
    %v2881 = vmul.f32 %v2878, %v2880
    %v2882 = vadd.f32 %v2878, %v2881
    %vm2883 = vweird.f32 %v2830
    %vm2884 = vweird.f32 %v2878
    %vm2885 = vmor %vm2883, %vm2884
    %v2886 = vsel %vm2885, %v2878, %v2882
    %v2887 = vand.u32 2147483647, %v2830
    %vm2888 = vcmp.eq.f32.partialorder %v2887, 8.507059e+37
    %v2889 = vand.u32 %v2830, 2147483648
    %v2890 = vor.u32 1.1754944e-38, %v2889
    %v2891 = vsel %vm2888, %v2890, %v2886
    %v2892 = vmul.f32 1.0, %v2891
    %v2893 = vrcp.pop %v2831
    %v2894 = vmul.f32 %v2831, %v2893
    %v2895 = vsub.f32 1.0, %v2894
    %v2896 = vmul.f32 %v2893, %v2895
    %v2897 = vadd.f32 %v2893, %v2896
    %vm2898 = vweird.f32 %v2831
    %vm2899 = vweird.f32 %v2893
    %vm2900 = vmor %vm2898, %vm2899
    %v2901 = vsel %vm2900, %v2893, %v2897
    %v2902 = vand.u32 2147483647, %v2831
    %vm2903 = vcmp.eq.f32.partialorder %v2902, 8.507059e+37
    %v2904 = vand.u32 %v2831, 2147483648
    %v2905 = vor.u32 1.1754944e-38, %v2904
    %v2906 = vsel %vm2903, %v2905, %v2901
    %v2907 = vmul.f32 1.0, %v2906
    %v2908 = vrcp.pop %v2832
    %v2909 = vmul.f32 %v2832, %v2908
    %v2910 = vsub.f32 1.0, %v2909
    %v2911 = vmul.f32 %v2908, %v2910
    %v2912 = vadd.f32 %v2908, %v2911
    %vm2913 = vweird.f32 %v2832
    %vm2914 = vweird.f32 %v2908
    %vm2915 = vmor %vm2913, %vm2914
    %v2916 = vsel %vm2915, %v2908, %v2912
    %v2917 = vand.u32 2147483647, %v2832
    %vm2918 = vcmp.eq.f32.partialorder %v2917, 8.507059e+37
    %v2919 = vand.u32 %v2832, 2147483648
    %v2920 = vor.u32 1.1754944e-38, %v2919
    %v2921 = vsel %vm2918, %v2920, %v2916
    %v2922 = vmul.f32 1.0, %v2921
    %v2923 = vtanh.pop %v2804
    %v2924 = vtanh.pop %v2808
    %v2925 = vld [vmem:[#allocation3] sm:$0xff]
    %v2926 = vld [vmem:[#allocation3 + $0x8] sm:$0xff]
    %v2927 = vmul.f32 %v2862, %v2925
    %v2928 = vmul.f32 %v2907, %v2926
    %v2929 = vmul.f32 %v2847, %v2923
    %v2930 = vmul.f32 %v2892, %v2924
    %v2931 = vadd.f32 %v2927, %v2929
    %v2932 = vadd.f32 %v2928, %v2930
    %v2933 = vtanh.pop %v2931
    %v2934 = vtanh.pop %v2932
    %v2935 = vmul.f32 %v2877, %v2933
    %v2936 = vmul.f32 %v2922, %v2934
    %2937 = vst [vmem:[#allocation3] sm:$0xff] %v2931
    %2938 = vst [vmem:[#allocation3 + $0x8] sm:$0xff] %v2932
    %v2939 = vpack.c.bf16 %v2935, %v2935
    %v2940 = vpack.c.bf16 %v2936, %v2936
    %2941 = vst [vmem:[#allocation2] sm:$0xf] %v2939
    %2942 = vst [vmem:[#allocation2 + $0x4] sm:$0xf] %v2940
    %s2943 = scalar_lea.vmem %s4, 48
    %2944 = vst [vmem:[%s2943] sm:$0xf] %v2939
    %2945 = vst [vmem:[%s2943 + $0x4] sm:$0xf] %v2940
    %v2946 = vpack.c.bf16 %v2931, %v2931
    %v2947 = vpack.c.bf16 %v2932, %v2932
    %s2948 = scalar_lea.vmem %s5, 48
    %2949 = vst [vmem:[%s2948] sm:$0xf] %v2946
    %2950 = vst [vmem:[%s2948 + $0x4] sm:$0xf] %v2947
    %s2951 = scalar_lea.vmem %s0, 448
    %v2952 = vld [vmem:[%s2951] sm:$0xff]
    %v2953 = vld [vmem:[%s2951 + $0x8] sm:$0xff]
    %v2954 = vld [vmem:[%s2951 + $0x10] sm:$0xff]
    %v2955 = vld [vmem:[%s2951 + $0x18] sm:$0xff]
    %v2956 = vld [vmem:[%s2951 + $0x20] sm:$0xff]
    %v2957 = vld [vmem:[%s2951 + $0x28] sm:$0xff]
    %v2958 = vld [vmem:[%s2951 + $0x30] sm:$0xff]
    %v2959 = vld [vmem:[%s2951 + $0x38] sm:$0xff]
    %v2960 = vld [vmem:[#allocation2] sm:$0xf]
    %v2961 = vld [vmem:[#allocation2 + $0x4] sm:$0xf]
    %v2962 = vld [vmem:[#allocation4] sm:$0xff]
    %v2963 = vld [vmem:[#allocation4 + $0x8] sm:$0xff]
    %v2964 = vld [vmem:[#allocation4 + $0x10] sm:$0xff]
    %v2965 = vld [vmem:[#allocation4 + $0x18] sm:$0xff]
    %v2966 = vld [vmem:[#allocation4 + $0x20] sm:$0xff]
    %v2967 = vld [vmem:[#allocation4 + $0x28] sm:$0xff]
    %v2968 = vld [vmem:[#allocation4 + $0x30] sm:$0xff]
    %v2969 = vld [vmem:[#allocation4 + $0x38] sm:$0xff]
    %v2970 = vld [vmem:[#allocation4 + $0x40] sm:$0xff]
    %v2971 = vld [vmem:[#allocation4 + $0x48] sm:$0xff]
    %v2972 = vld [vmem:[#allocation4 + $0x50] sm:$0xff]
    %v2973 = vld [vmem:[#allocation4 + $0x58] sm:$0xff]
    %v2974 = vld [vmem:[#allocation4 + $0x60] sm:$0xff]
    %v2975 = vld [vmem:[#allocation4 + $0x68] sm:$0xff]
    %v2976 = vld [vmem:[#allocation4 + $0x70] sm:$0xff]
    %v2977 = vld [vmem:[#allocation4 + $0x78] sm:$0xff]
    %v2978 = vld [vmem:[#allocation4 + $0x80] sm:$0xff]
    %v2979 = vld [vmem:[#allocation4 + $0x88] sm:$0xff]
    %v2980 = vld [vmem:[#allocation4 + $0x90] sm:$0xff]
    %v2981 = vld [vmem:[#allocation4 + $0x98] sm:$0xff]
    %v2982 = vld [vmem:[#allocation4 + $0xa0] sm:$0xff]
    %v2983 = vld [vmem:[#allocation4 + $0xa8] sm:$0xff]
    %v2984 = vld [vmem:[#allocation4 + $0xb0] sm:$0xff]
    %v2985 = vld [vmem:[#allocation4 + $0xb8] sm:$0xff]
    %v2986 = vld [vmem:[#allocation4 + $0xc0] sm:$0xff]
    %v2987 = vld [vmem:[#allocation4 + $0xc8] sm:$0xff]
    %v2988 = vld [vmem:[#allocation4 + $0xd0] sm:$0xff]
    %v2989 = vld [vmem:[#allocation4 + $0xd8] sm:$0xff]
    %v2990 = vld [vmem:[#allocation4 + $0xe0] sm:$0xff]
    %v2991 = vld [vmem:[#allocation4 + $0xe8] sm:$0xff]
    %v2992 = vld [vmem:[#allocation4 + $0xf0] sm:$0xff]
    %v2993 = vld [vmem:[#allocation4 + $0xf8] sm:$0xff]
    %v2996 = vunpack.c.l.b16 %v2960
    %v2997 = vunpack.c.l.b16 %v2961
    %v2998 = vpack.c.b16 %v2997, %v2996
    %v3032 = vunpack.c.l.b16 %v2962
    %v3033 = vunpack.c.h.b16 %v2962
    %v3034 = vunpack.c.l.b16 %v2963
    %v3035 = vunpack.c.h.b16 %v2963
    %v3036 = vunpack.c.l.b16 %v2964
    %v3037 = vunpack.c.h.b16 %v2964
    %v3038 = vunpack.c.l.b16 %v2965
    %v3039 = vunpack.c.h.b16 %v2965
    %v3040 = vunpack.c.l.b16 %v2966
    %v3041 = vunpack.c.h.b16 %v2966
    %v3042 = vunpack.c.l.b16 %v2967
    %v3043 = vunpack.c.h.b16 %v2967
    %v3044 = vunpack.c.l.b16 %v2968
    %v3045 = vunpack.c.h.b16 %v2968
    %v3046 = vunpack.c.l.b16 %v2969
    %v3047 = vunpack.c.h.b16 %v2969
    %v3048 = vunpack.c.l.b16 %v2970
    %v3049 = vunpack.c.h.b16 %v2970
    %v3050 = vunpack.c.l.b16 %v2971
    %v3051 = vunpack.c.h.b16 %v2971
    %v3052 = vunpack.c.l.b16 %v2972
    %v3053 = vunpack.c.h.b16 %v2972
    %v3054 = vunpack.c.l.b16 %v2973
    %v3055 = vunpack.c.h.b16 %v2973
    %v3056 = vunpack.c.l.b16 %v2974
    %v3057 = vunpack.c.h.b16 %v2974
    %v3058 = vunpack.c.l.b16 %v2975
    %v3059 = vunpack.c.h.b16 %v2975
    %v3060 = vunpack.c.l.b16 %v2976
    %v3061 = vunpack.c.h.b16 %v2976
    %v3062 = vunpack.c.l.b16 %v2977
    %v3063 = vunpack.c.h.b16 %v2977
    %v3064 = vunpack.c.l.b16 %v2978
    %v3065 = vunpack.c.h.b16 %v2978
    %v3066 = vunpack.c.l.b16 %v2979
    %v3067 = vunpack.c.h.b16 %v2979
    %v3068 = vunpack.c.l.b16 %v2980
    %v3069 = vunpack.c.h.b16 %v2980
    %v3070 = vunpack.c.l.b16 %v2981
    %v3071 = vunpack.c.h.b16 %v2981
    %v3072 = vunpack.c.l.b16 %v2982
    %v3073 = vunpack.c.h.b16 %v2982
    %v3074 = vunpack.c.l.b16 %v2983
    %v3075 = vunpack.c.h.b16 %v2983
    %v3076 = vunpack.c.l.b16 %v2984
    %v3077 = vunpack.c.h.b16 %v2984
    %v3078 = vunpack.c.l.b16 %v2985
    %v3079 = vunpack.c.h.b16 %v2985
    %v3080 = vunpack.c.l.b16 %v2986
    %v3081 = vunpack.c.h.b16 %v2986
    %v3082 = vunpack.c.l.b16 %v2987
    %v3083 = vunpack.c.h.b16 %v2987
    %v3084 = vunpack.c.l.b16 %v2988
    %v3085 = vunpack.c.h.b16 %v2988
    %v3086 = vunpack.c.l.b16 %v2989
    %v3087 = vunpack.c.h.b16 %v2989
    %v3088 = vunpack.c.l.b16 %v2990
    %v3089 = vunpack.c.h.b16 %v2990
    %v3090 = vunpack.c.l.b16 %v2991
    %v3091 = vunpack.c.h.b16 %v2991
    %v3092 = vunpack.c.l.b16 %v2992
    %v3093 = vunpack.c.h.b16 %v2992
    %v3094 = vunpack.c.l.b16 %v2993
    %v3095 = vunpack.c.h.b16 %v2993
    %v3096 = vpack.c.b16 %v3036, %v3032
    %v3097 = vpack.c.b16 %v3037, %v3033
    %v3098 = vpack.c.b16 %v3038, %v3034
    %v3099 = vpack.c.b16 %v3039, %v3035
    %v3100 = vpack.c.b16 %v3044, %v3040
    %v3101 = vpack.c.b16 %v3045, %v3041
    %v3102 = vpack.c.b16 %v3046, %v3042
    %v3103 = vpack.c.b16 %v3047, %v3043
    %v3104 = vpack.c.b16 %v3052, %v3048
    %v3105 = vpack.c.b16 %v3053, %v3049
    %v3106 = vpack.c.b16 %v3054, %v3050
    %v3107 = vpack.c.b16 %v3055, %v3051
    %v3108 = vpack.c.b16 %v3060, %v3056
    %v3109 = vpack.c.b16 %v3061, %v3057
    %v3110 = vpack.c.b16 %v3062, %v3058
    %v3111 = vpack.c.b16 %v3063, %v3059
    %v3112 = vpack.c.b16 %v3068, %v3064
    %v3113 = vpack.c.b16 %v3069, %v3065
    %v3114 = vpack.c.b16 %v3070, %v3066
    %v3115 = vpack.c.b16 %v3071, %v3067
    %v3116 = vpack.c.b16 %v3076, %v3072
    %v3117 = vpack.c.b16 %v3077, %v3073
    %v3118 = vpack.c.b16 %v3078, %v3074
    %v3119 = vpack.c.b16 %v3079, %v3075
    %v3120 = vpack.c.b16 %v3084, %v3080
    %v3121 = vpack.c.b16 %v3085, %v3081
    %v3122 = vpack.c.b16 %v3086, %v3082
    %v3123 = vpack.c.b16 %v3087, %v3083
    %v3124 = vpack.c.b16 %v3092, %v3088
    %v3125 = vpack.c.b16 %v3093, %v3089
    %v3126 = vpack.c.b16 %v3094, %v3090
    %v3127 = vpack.c.b16 %v3095, %v3091
    %3160 = vmatpush.bf16.msra.mxu0 %v3124
    %3161 = vmatpush.bf16.msra.mxu0 %v3120
    %3162 = vmatpush.bf16.msra.mxu0 %v3116
    %3163 = vmatpush.bf16.msra.mxu0 %v3112
    %3164 = vmatpush.bf16.msra.mxu0 %v3108
    %3165 = vmatpush.bf16.msra.mxu0 %v3104
    %3166 = vmatpush.bf16.msra.mxu0 %v3100
    %3167 = vmatpush.bf16.msra.mxu0 %v3096
    %3168 = vmatmul.bf16.gmra.mxu0 %v2998
    %v3169 = vpop.f32.mrf.mxu0
    %v3170 = vadd.f32 0.0, %v3169
    %v3171 = vpop.f32.mrf.mxu0
    %v3172 = vadd.f32 0.0, %v3171
    %3173 = vdwg.mxu0
    %3174 = vmatpush.bf16.msra.mxu0 %v3125
    %3175 = vmatpush.bf16.msra.mxu0 %v3121
    %3176 = vmatpush.bf16.msra.mxu0 %v3117
    %3177 = vmatpush.bf16.msra.mxu0 %v3113
    %3178 = vmatpush.bf16.msra.mxu0 %v3109
    %3179 = vmatpush.bf16.msra.mxu0 %v3105
    %3180 = vmatpush.bf16.msra.mxu0 %v3101
    %3181 = vmatpush.bf16.msra.mxu0 %v3097
    %3182 = vmatmul.bf16.gmra.mxu0 %v2998
    %v3183 = vpop.f32.mrf.mxu0
    %v3184 = vadd.f32 0.0, %v3183
    %v3185 = vpop.f32.mrf.mxu0
    %v3186 = vadd.f32 0.0, %v3185
    %3187 = vdwg.mxu0
    %3188 = vmatpush.bf16.msra.mxu0 %v3126
    %3189 = vmatpush.bf16.msra.mxu0 %v3122
    %3190 = vmatpush.bf16.msra.mxu0 %v3118
    %3191 = vmatpush.bf16.msra.mxu0 %v3114
    %3192 = vmatpush.bf16.msra.mxu0 %v3110
    %3193 = vmatpush.bf16.msra.mxu0 %v3106
    %3194 = vmatpush.bf16.msra.mxu0 %v3102
    %3195 = vmatpush.bf16.msra.mxu0 %v3098
    %3196 = vmatmul.bf16.gmra.mxu0 %v2998
    %v3197 = vpop.f32.mrf.mxu0
    %v3198 = vadd.f32 0.0, %v3197
    %v3199 = vpop.f32.mrf.mxu0
    %v3200 = vadd.f32 0.0, %v3199
    %3201 = vdwg.mxu0
    %3202 = vmatpush.bf16.msra.mxu0 %v3127
    %3203 = vmatpush.bf16.msra.mxu0 %v3123
    %3204 = vmatpush.bf16.msra.mxu0 %v3119
    %3205 = vmatpush.bf16.msra.mxu0 %v3115
    %3206 = vmatpush.bf16.msra.mxu0 %v3111
    %3207 = vmatpush.bf16.msra.mxu0 %v3107
    %3208 = vmatpush.bf16.msra.mxu0 %v3103
    %3209 = vmatpush.bf16.msra.mxu0 %v3099
    %3210 = vmatmul.bf16.gmra.mxu0 %v2998
    %v3211 = vpop.f32.mrf.mxu0
    %v3212 = vadd.f32 0.0, %v3211
    %v3213 = vpop.f32.mrf.mxu0
    %v3214 = vadd.f32 0.0, %v3213
    %3215 = vdwg.mxu0
    %v3216 = vadd.f32 %v2952, %v3170
    %v3217 = vadd.f32 %v2953, %v3184
    %v3218 = vadd.f32 %v2954, %v3198
    %v3219 = vadd.f32 %v2955, %v3212
    %v3220 = vadd.f32 %v2956, %v3172
    %v3221 = vadd.f32 %v2957, %v3186
    %v3222 = vadd.f32 %v2958, %v3200
    %v3223 = vadd.f32 %v2959, %v3214
    %v3224 = vxor.u32 %v3216, 2147483648
    %v3225 = vxor.u32 %v3217, 2147483648
    %v3226 = vxor.u32 %v3218, 2147483648
    %v3227 = vxor.u32 %v3220, 2147483648
    %v3228 = vxor.u32 %v3221, 2147483648
    %v3229 = vxor.u32 %v3222, 2147483648
    %v3230 = vmul.f32 %v3224, 1.442695
    %v3231 = vpow.pop %v3230
    %v3232 = vmul.f32 %v3225, 1.442695
    %v3233 = vpow.pop %v3232
    %v3234 = vmul.f32 %v3226, 1.442695
    %v3235 = vpow.pop %v3234
    %v3236 = vmul.f32 %v3227, 1.442695
    %v3237 = vpow.pop %v3236
    %v3238 = vmul.f32 %v3228, 1.442695
    %v3239 = vpow.pop %v3238
    %v3240 = vmul.f32 %v3229, 1.442695
    %v3241 = vpow.pop %v3240
    %v3242 = vadd.f32 %v3231, 1.0
    %v3243 = vadd.f32 %v3233, 1.0
    %v3244 = vadd.f32 %v3235, 1.0
    %v3245 = vadd.f32 %v3237, 1.0
    %v3246 = vadd.f32 %v3239, 1.0
    %v3247 = vadd.f32 %v3241, 1.0
    %v3248 = vrcp.pop %v3242
    %v3249 = vmul.f32 %v3242, %v3248
    %v3250 = vsub.f32 1.0, %v3249
    %v3251 = vmul.f32 %v3248, %v3250
    %v3252 = vadd.f32 %v3248, %v3251
    %vm3253 = vweird.f32 %v3242
    %vm3254 = vweird.f32 %v3248
    %vm3255 = vmor %vm3253, %vm3254
    %v3256 = vsel %vm3255, %v3248, %v3252
    %v3257 = vand.u32 2147483647, %v3242
    %vm3258 = vcmp.eq.f32.partialorder %v3257, 8.507059e+37
    %v3259 = vand.u32 %v3242, 2147483648
    %v3260 = vor.u32 1.1754944e-38, %v3259
    %v3261 = vsel %vm3258, %v3260, %v3256
    %v3262 = vmul.f32 1.0, %v3261
    %v3263 = vrcp.pop %v3243
    %v3264 = vmul.f32 %v3243, %v3263
    %v3265 = vsub.f32 1.0, %v3264
    %v3266 = vmul.f32 %v3263, %v3265
    %v3267 = vadd.f32 %v3263, %v3266
    %vm3268 = vweird.f32 %v3243
    %vm3269 = vweird.f32 %v3263
    %vm3270 = vmor %vm3268, %vm3269
    %v3271 = vsel %vm3270, %v3263, %v3267
    %v3272 = vand.u32 2147483647, %v3243
    %vm3273 = vcmp.eq.f32.partialorder %v3272, 8.507059e+37
    %v3274 = vand.u32 %v3243, 2147483648
    %v3275 = vor.u32 1.1754944e-38, %v3274
    %v3276 = vsel %vm3273, %v3275, %v3271
    %v3277 = vmul.f32 1.0, %v3276
    %v3278 = vrcp.pop %v3244
    %v3279 = vmul.f32 %v3244, %v3278
    %v3280 = vsub.f32 1.0, %v3279
    %v3281 = vmul.f32 %v3278, %v3280
    %v3282 = vadd.f32 %v3278, %v3281
    %vm3283 = vweird.f32 %v3244
    %vm3284 = vweird.f32 %v3278
    %vm3285 = vmor %vm3283, %vm3284
    %v3286 = vsel %vm3285, %v3278, %v3282
    %v3287 = vand.u32 2147483647, %v3244
    %vm3288 = vcmp.eq.f32.partialorder %v3287, 8.507059e+37
    %v3289 = vand.u32 %v3244, 2147483648
    %v3290 = vor.u32 1.1754944e-38, %v3289
    %v3291 = vsel %vm3288, %v3290, %v3286
    %v3292 = vmul.f32 1.0, %v3291
    %v3293 = vrcp.pop %v3245
    %v3294 = vmul.f32 %v3245, %v3293
    %v3295 = vsub.f32 1.0, %v3294
    %v3296 = vmul.f32 %v3293, %v3295
    %v3297 = vadd.f32 %v3293, %v3296
    %vm3298 = vweird.f32 %v3245
    %vm3299 = vweird.f32 %v3293
    %vm3300 = vmor %vm3298, %vm3299
    %v3301 = vsel %vm3300, %v3293, %v3297
    %v3302 = vand.u32 2147483647, %v3245
    %vm3303 = vcmp.eq.f32.partialorder %v3302, 8.507059e+37
    %v3304 = vand.u32 %v3245, 2147483648
    %v3305 = vor.u32 1.1754944e-38, %v3304
    %v3306 = vsel %vm3303, %v3305, %v3301
    %v3307 = vmul.f32 1.0, %v3306
    %v3308 = vrcp.pop %v3246
    %v3309 = vmul.f32 %v3246, %v3308
    %v3310 = vsub.f32 1.0, %v3309
    %v3311 = vmul.f32 %v3308, %v3310
    %v3312 = vadd.f32 %v3308, %v3311
    %vm3313 = vweird.f32 %v3246
    %vm3314 = vweird.f32 %v3308
    %vm3315 = vmor %vm3313, %vm3314
    %v3316 = vsel %vm3315, %v3308, %v3312
    %v3317 = vand.u32 2147483647, %v3246
    %vm3318 = vcmp.eq.f32.partialorder %v3317, 8.507059e+37
    %v3319 = vand.u32 %v3246, 2147483648
    %v3320 = vor.u32 1.1754944e-38, %v3319
    %v3321 = vsel %vm3318, %v3320, %v3316
    %v3322 = vmul.f32 1.0, %v3321
    %v3323 = vrcp.pop %v3247
    %v3324 = vmul.f32 %v3247, %v3323
    %v3325 = vsub.f32 1.0, %v3324
    %v3326 = vmul.f32 %v3323, %v3325
    %v3327 = vadd.f32 %v3323, %v3326
    %vm3328 = vweird.f32 %v3247
    %vm3329 = vweird.f32 %v3323
    %vm3330 = vmor %vm3328, %vm3329
    %v3331 = vsel %vm3330, %v3323, %v3327
    %v3332 = vand.u32 2147483647, %v3247
    %vm3333 = vcmp.eq.f32.partialorder %v3332, 8.507059e+37
    %v3334 = vand.u32 %v3247, 2147483648
    %v3335 = vor.u32 1.1754944e-38, %v3334
    %v3336 = vsel %vm3333, %v3335, %v3331
    %v3337 = vmul.f32 1.0, %v3336
    %v3338 = vtanh.pop %v3219
    %v3339 = vtanh.pop %v3223
    %v3340 = vld [vmem:[#allocation3] sm:$0xff]
    %v3341 = vld [vmem:[#allocation3 + $0x8] sm:$0xff]
    %v3342 = vmul.f32 %v3277, %v3340
    %v3343 = vmul.f32 %v3322, %v3341
    %v3344 = vmul.f32 %v3262, %v3338
    %v3345 = vmul.f32 %v3307, %v3339
    %v3346 = vadd.f32 %v3342, %v3344
    %v3347 = vadd.f32 %v3343, %v3345
    %v3348 = vtanh.pop %v3346
    %v3349 = vtanh.pop %v3347
    %v3350 = vmul.f32 %v3292, %v3348
    %v3351 = vmul.f32 %v3337, %v3349
    %3352 = vst [vmem:[#allocation3] sm:$0xff] %v3346
    %3353 = vst [vmem:[#allocation3 + $0x8] sm:$0xff] %v3347
    %v3354 = vpack.c.bf16 %v3350, %v3350
    %v3355 = vpack.c.bf16 %v3351, %v3351
    %3356 = vst [vmem:[#allocation2] sm:$0xf] %v3354
    %3357 = vst [vmem:[#allocation2 + $0x4] sm:$0xf] %v3355
    %s3358 = scalar_lea.vmem %s4, 56
    %3359 = vst [vmem:[%s3358] sm:$0xf] %v3354
    %3360 = vst [vmem:[%s3358 + $0x4] sm:$0xf] %v3355
    %v3361 = vpack.c.bf16 %v3346, %v3346
    %v3362 = vpack.c.bf16 %v3347, %v3347
    %s3363 = scalar_lea.vmem %s5, 56
    %3364 = vst [vmem:[%s3363] sm:$0xf] %v3361
    %3365 = vst [vmem:[%s3363 + $0x4] sm:$0xf] %v3362
    // Predicated region
    $region26: #{lstm_sequence_forward.3} parent=1 // pred_check
      _
    $region27: #{lstm_sequence_forward.3} parent=1 // pred_check_branch
      %3367 = sbr.rel (0) target = $region29
    $region28: #{lstm_sequence_forward.3} parent=1 // pred_region
      _
    $region29: #{lstm_sequence_forward.3} parent=1 // pred_fallthru
      _
    // Predicated region
    $region30: #{lstm_sequence_forward.3} parent=1 // pred_check
      _
    $region31: #{lstm_sequence_forward.3} parent=1 // pred_check_branch
      %3369 = sbr.rel (0) target = $region33
    $region32: #{lstm_sequence_forward.3} parent=1 // pred_region
      _
    $region33: #{lstm_sequence_forward.3} parent=1 // pred_fallthru
      _
    // Predicated region
    $region34: #{lstm_sequence_forward.3} parent=1 // pred_check
      _
    $region35: #{lstm_sequence_forward.3} parent=1 // pred_check_branch
      %3371 = sbr.rel (0) target = $region37
    $region36: #{lstm_sequence_forward.3} parent=1 // pred_region
      _
    $region37: #{lstm_sequence_forward.3} parent=1 // pred_fallthru
      _
    // Predicated region
    $region38: #{lstm_sequence_forward.3} parent=1 // pred_check
      _
    $region39: #{lstm_sequence_forward.3} parent=1 // pred_check_branch
      %3373 = sbr.rel (0) target = $region41
    $region40: #{lstm_sequence_forward.3} parent=1 // pred_region
      _
    $region41: #{lstm_sequence_forward.3} parent=1 // pred_fallthru
      _
    %3374 = vsyncpa [#allocation5], 1

</llo_original>
